<compile_context>
chip_gen: v5e
topology: v5e:2x2
jax: 0.10.0
libtpu: 0.0.40
codegen_flags: <defaults>
</compile_context>

<pallas_src>
import functools

import jax
import jax.numpy as jnp
from jax.experimental import pallas as pl
from jax.experimental.pallas import tpu as pltpu


def _ce_diag_kernel(s_ref, o_ref, m_sc, l_sc, d_sc, *, batch, mask_cols):
    """Online logsumexp + diagonal gather over one (tm, tn) tile of scores."""
    i = pl.program_id(0)          # row-block index   ("parallel")
    j = pl.program_id(1)          # col-block index   ("arbitrary" reduction)
    nj = pl.num_programs(1)
    tm, tn = s_ref.shape
    row0 = i * tm
    col0 = j * tn

    @pl.when(j == 0)
    def _init():
        m_sc[...] = jnp.full_like(m_sc, -jnp.inf)
        l_sc[...] = jnp.zeros_like(l_sc)
        d_sc[...] = jnp.zeros_like(d_sc)

    s = s_ref[...].astype(jnp.float32)                                  # (tm, tn)
    c = col0 + jax.lax.broadcasted_iota(jnp.int32, (tm, tn), 1)
    if mask_cols:
        # Ragged last column block: padding columns hold unspecified VMEM and
        # must not leak into the row-wise logsumexp.
        s = jnp.where(c < batch, s, -jnp.inf)

    # Diagonal contribution — only tiles whose column range overlaps this row
    # block's global rows can contain diagonal entries (VALU/XLU side-work,
    # hides under the HBM DMA).
    @pl.when(jnp.logical_and(row0 < col0 + tn, row0 + tm > col0))
    def _diag():
        r = row0 + jax.lax.broadcasted_iota(jnp.int32, (tm, tn), 0)
        d_sc[...] += jnp.sum(jnp.where(r == c, s, 0.0), axis=-1, keepdims=True)

    # Online, numerically stable logsumexp accumulation (flash-style).
    m_blk = jnp.max(s, axis=-1, keepdims=True)                          # (tm, 1)
    m_new = jnp.maximum(m_sc[...], m_blk)
    alpha = jnp.exp(m_sc[...] - m_new)
    l_sc[...] = alpha * l_sc[...] + jnp.sum(jnp.exp(s - m_new), axis=-1,
                                            keepdims=True)
    m_sc[...] = m_new

    @pl.when(j == nj - 1)
    def _finalize():
        lse = m_sc[...] + jnp.log(l_sc[...])                            # (tm, 1)
        # Mask rows past the true batch size (ragged last row block).
        valid = (row0 + jax.lax.broadcasted_iota(jnp.int32, (tm, 1), 0)) < batch
        per_row = jnp.where(valid, lse - d_sc[...], 0.0)
        # Lane/sublane-dense partial output: one full (8,128) vreg per block.
        o_ref[...] = jnp.broadcast_to(jnp.sum(per_row), o_ref.shape)


def _pick_tiles(batch, itemsize):
    """Choose (tm, tn): ~2 MiB per input buffer, >= 2 (even) row blocks once
    the matrix is big enough to benefit from pipelining / 2-TC split, and
    column tiling only for very large batch (keeps VMEM constant in B)."""
    sub = max(8, 32 // itemsize)            # sublane packing multiple (f32/bf16/i8)
    target = 2 * 1024 * 1024                # ~HBM-roofline knee per buffer

    # Tiny matrix: one full block; per-step overhead would dominate otherwise.
    if batch * batch * itemsize <= (1 << 20):
        return batch, batch

    # Column width: full rows unless even a 256-row full-width stripe exceeds
    # ~2x the target buffer size (very large batch) -> tile columns too.
    if batch * itemsize * 256 <= 2 * target:
        tn = batch
    else:
        tn = max(128, ((target // (256 * itemsize)) // 128) * 128)

    # Row tile height: ~target bytes per buffer, multiple of the sublane pack.
    tm = max(sub, ((target // (tn * itemsize)) // sub) * sub)
    tm = min(tm, batch)
    nt = pl.cdiv(batch, tm)

    # Guarantee >= 2 row blocks (>= 4 for >= 4 MiB matrices) and an even count
    # so v7x's two TensorCores each take an equal half of the row grid.
    min_nt = 4 if batch * batch * itemsize >= (4 << 20) else 2
    if nt < min_nt or nt % 2 != 0:
        nt = max(min_nt, nt + (nt % 2))
        tm = -(-batch // nt)                # ceil
        tm = -(-tm // sub) * sub            # round up to sublane multiple
    return tm, tn


def tirg_loss(scores, *, block_rows=None, block_cols=None):
    """Cross-entropy over rows of `scores` with diagonal ground-truth labels."""
    B, B2 = scores.shape
    assert B == B2, "scores must be square (batch, batch)"
    itemsize = scores.dtype.itemsize
    sub = max(8, 32 // itemsize)

    tm_auto, tn_auto = _pick_tiles(B, itemsize)
    tm = min(block_rows if block_rows is not None else tm_auto, B)
    tn = min(block_cols if block_cols is not None else tn_auto, B)
    assert tm == B or tm % sub == 0, f"block_rows must be a multiple of {sub}"
    assert tn == B or tn % 128 == 0, "block_cols must be a multiple of 128"

    nt = pl.cdiv(B, tm)
    nc = pl.cdiv(B, tn)
    mask_cols = (B % tn) != 0

    kernel = functools.partial(_ce_diag_kernel, batch=B, mask_cols=mask_cols)

    # Right-sized scoped VMEM: double-buffered input tile + f32 compute copy
    # + lane-padded (tm,1) scratch + slack. Avoid over-reserving on v7x/v5e.
    vmem_limit = int(2 * tm * tn * itemsize + tm * tn * 4
                     + 3 * tm * 128 * 4 + (4 << 20))
    vmem_limit = max(min(vmem_limit, 64 << 20), 4 << 20)

    partials = pl.pallas_call(
        kernel,
        out_shape=jax.ShapeDtypeStruct((nt, 8, 128), jnp.float32),
        grid=(nt, nc),
        in_specs=[pl.BlockSpec((tm, tn), lambda i, j: (i, j))],
        out_specs=pl.BlockSpec((1, 8, 128), lambda i, j: (i, 0, 0)),
        scratch_shapes=[pltpu.VMEM((tm, 1), jnp.float32),   # running max
                        pltpu.VMEM((tm, 1), jnp.float32),   # running sum-exp
                        pltpu.VMEM((tm, 1), jnp.float32)],  # diagonal
        compiler_params=pltpu.CompilerParams(
            dimension_semantics=("parallel", "arbitrary"),
            vmem_limit_bytes=vmem_limit,
        ),
        cost_estimate=pl.CostEstimate(
            flops=8 * B * B,
            transcendentals=B * B,
            bytes_accessed=B * B * itemsize + nt * 8 * 128 * 4,
        ),
    )(scores)

    # Tiny final reduction + mean in plain JAX (one partial per row block).
    return jnp.sum(partials[:, 0, 0]) / jnp.float32(B)


if __name__ == "__main__":
    k0, k1 = jax.random.split(jax.random.PRNGKey(0))

    # Small demo matrix (square scores, diagonal = ground truth).
    B = 384
    scores = jax.random.normal(k0, (B, B), dtype=jnp.float32)
    ref = jnp.mean(jax.nn.logsumexp(scores, axis=-1) - jnp.diagonal(scores))

    loss_auto = tirg_loss(scores)                                  # single block
    loss_rows = tirg_loss(scores, block_rows=256)                  # ragged row tile
    loss_2d = tirg_loss(scores, block_rows=128, block_cols=128)    # online-lse path
    jax.block_until_ready((loss_auto, loss_rows, loss_2d))
    for out in (loss_auto, loss_rows, loss_2d):
        assert jnp.allclose(out, ref, atol=1e-5, rtol=1e-5), (out, ref)

    # Ragged rows AND ragged columns (B not a multiple of the tiles).
    B2 = 200
    scores2 = jax.random.normal(k1, (B2, B2), dtype=jnp.float32)
    ref2 = jnp.mean(jax.nn.logsumexp(scores2, axis=-1) - jnp.diagonal(scores2))
    loss2 = tirg_loss(scores2, block_rows=64, block_cols=128)
    jax.block_until_ready(loss2)
    assert jnp.allclose(loss2, ref2, atol=1e-5, rtol=1e-5), (loss2, ref2)

    # bf16 input path (halves HBM traffic; in-kernel accumulation stays f32).
    scores_bf16 = scores.astype(jnp.bfloat16)
    ref_bf16 = jnp.mean(
        jax.nn.logsumexp(scores_bf16.astype(jnp.float32), axis=-1)
        - jnp.diagonal(scores_bf16).astype(jnp.float32))
    loss_bf16 = tirg_loss(scores_bf16, block_rows=192)
    jax.block_until_ready(loss_bf16)
    assert jnp.allclose(loss_bf16, ref_bf16, atol=1e-3, rtol=1e-3), (loss_bf16,
                                                                     ref_bf16)

    print("KERNEL_OK")
</pallas_src>

<mosaic_0001>
module attributes {stable_mosaic.version = 11 : i64} {
  func.func @_ce_diag_kernel(%arg0: i32, %arg1: i32, %arg2: memref<384x384xf32, #tpu.memory_space<vmem>>, %arg3: memref<1x8x128xf32, #tpu.memory_space<vmem>>, %arg4: memref<384x1xf32, #tpu.memory_space<vmem>>, %arg5: memref<384x1xf32, #tpu.memory_space<vmem>>, %arg6: memref<384x1xf32, #tpu.memory_space<vmem>>) attributes {dimension_semantics = [#tpu.dimension_semantics<parallel>, #tpu.dimension_semantics<arbitrary>], iteration_bounds = array<i64: 1, 1>, scalar_prefetch = 0 : i64, scratch_operands = 3 : i64, tpu.core_type = #tpu.core_type<tc>, window_params = [{transform_indices = @transform_0, window_bounds = array<i64: 384, 384>}, {transform_indices = @transform_1, window_bounds = array<i64: 1, 8, 128>}]} {
    %c384_i32 = arith.constant 384 : i32
    %0 = arith.muli %arg0, %c384_i32 : i32
    %c384_i32_0 = arith.constant 384 : i32
    %1 = arith.muli %arg1, %c384_i32_0 : i32
    %c0_i32 = arith.constant 0 : i32
    %2 = arith.cmpi eq, %arg1, %c0_i32 : i32
    %3 = arith.extui %2 : i1 to i32
    %c0_i32_1 = arith.constant 0 : i32
    %4 = arith.cmpi ne, %3, %c0_i32_1 : i32
    scf.if %4 {
      %cst_19 = arith.constant 0xFF800000 : f32
      %36 = vector.broadcast %cst_19 : f32 to vector<384x1xf32>
      %c0_20 = arith.constant 0 : index
      %c0_21 = arith.constant 0 : index
      %37 = vector.load %arg4[%c0_20, %c0_21] : memref<384x1xf32, #tpu.memory_space<vmem>>, vector<384x1xf32>
      tpu.vector_store %arg4[%c0_20, %c0_21], %36 {strides = array<i32>} : memref<384x1xf32, #tpu.memory_space<vmem>>, vector<384x1xf32>,
      %cst_22 = arith.constant 0.000000e+00 : f32
      %38 = vector.broadcast %cst_22 : f32 to vector<384x1xf32>
      %c0_23 = arith.constant 0 : index
      %c0_24 = arith.constant 0 : index
      %39 = vector.load %arg5[%c0_23, %c0_24] : memref<384x1xf32, #tpu.memory_space<vmem>>, vector<384x1xf32>
      tpu.vector_store %arg5[%c0_23, %c0_24], %38 {strides = array<i32>} : memref<384x1xf32, #tpu.memory_space<vmem>>, vector<384x1xf32>,
      %cst_25 = arith.constant 0.000000e+00 : f32
      %40 = vector.broadcast %cst_25 : f32 to vector<384x1xf32>
      %c0_26 = arith.constant 0 : index
      %c0_27 = arith.constant 0 : index
      %41 = vector.load %arg6[%c0_26, %c0_27] : memref<384x1xf32, #tpu.memory_space<vmem>>, vector<384x1xf32>
      tpu.vector_store %arg6[%c0_26, %c0_27], %40 {strides = array<i32>} : memref<384x1xf32, #tpu.memory_space<vmem>>, vector<384x1xf32>,
    } else {
    }
    %c0 = arith.constant 0 : index
    %c0_2 = arith.constant 0 : index
    %5 = vector.load %arg2[%c0, %c0_2] : memref<384x384xf32, #tpu.memory_space<vmem>>, vector<384x384xf32>
    %6 = tpu.iota {dimensions = array<i32: 1>} : vector<384x384xi32>
    %7 = vector.broadcast %1 : i32 to vector<384x384xi32>
    %8 = arith.addi %7, %6 : vector<384x384xi32>
    %c384_i32_3 = arith.constant 384 : i32
    %9 = arith.addi %1, %c384_i32_3 : i32
    %10 = arith.cmpi slt, %0, %9 : i32
    %c384_i32_4 = arith.constant 384 : i32
    %11 = arith.addi %0, %c384_i32_4 : i32
    %12 = arith.cmpi sgt, %11, %1 : i32
    %13 = arith.andi %10, %12 : i1
    %14 = arith.extui %13 : i1 to i32
    %c0_i32_5 = arith.constant 0 : i32
    %15 = arith.cmpi ne, %14, %c0_i32_5 : i32
    scf.if %15 {
      %36 = tpu.iota {dimensions = array<i32: 0>} : vector<384x384xi32>
      %37 = vector.broadcast %0 : i32 to vector<384x384xi32>
      %38 = arith.addi %37, %36 : vector<384x384xi32>
      %c0_19 = arith.constant 0 : index
      %c0_20 = arith.constant 0 : index
      %39 = vector.load %arg6[%c0_19, %c0_20] : memref<384x1xf32, #tpu.memory_space<vmem>>, vector<384x1xf32>
      %40 = arith.cmpi eq, %38, %8 : vector<384x384xi32>
      %cst_21 = arith.constant 0.000000e+00 : f32
      %41 = vector.broadcast %cst_21 : f32 to vector<384x384xf32>
      %42 = arith.select %40, %5, %41 : vector<384x384xi1>, vector<384x384xf32>
      %cst_22 = arith.constant dense<0.000000e+00> : vector<384xf32>
      %43 = vector.multi_reduction <add>, %42, %cst_22 [1] : vector<384x384xf32> to vector<384xf32>
      %44 = vector.shape_cast %43 : vector<384xf32> to vector<384x1xf32>
      %45 = arith.addf %39, %44 : vector<384x1xf32>
      %c0_23 = arith.constant 0 : index
      %c0_24 = arith.constant 0 : index
      %46 = vector.load %arg6[%c0_23, %c0_24] : memref<384x1xf32, #tpu.memory_space<vmem>>, vector<384x1xf32>
      tpu.vector_store %arg6[%c0_23, %c0_24], %45 {strides = array<i32>} : memref<384x1xf32, #tpu.memory_space<vmem>>, vector<384x1xf32>,
    } else {
    }
    %cst = arith.constant dense<0xFF800000> : vector<384xf32>
    %16 = vector.multi_reduction <maximumf>, %5, %cst [1] : vector<384x384xf32> to vector<384xf32>
    %17 = vector.shape_cast %16 : vector<384xf32> to vector<384x1xf32>
    %c0_6 = arith.constant 0 : index
    %c0_7 = arith.constant 0 : index
    %18 = vector.load %arg4[%c0_6, %c0_7] : memref<384x1xf32, #tpu.memory_space<vmem>>, vector<384x1xf32>
    %19 = arith.maximumf %18, %17 : vector<384x1xf32>
    %c0_8 = arith.constant 0 : index
    %c0_9 = arith.constant 0 : index
    %20 = vector.load %arg4[%c0_8, %c0_9] : memref<384x1xf32, #tpu.memory_space<vmem>>, vector<384x1xf32>
    %21 = arith.subf %20, %19 : vector<384x1xf32>
    %22 = math.exp %21 : vector<384x1xf32>
    %c0_10 = arith.constant 0 : index
    %c0_11 = arith.constant 0 : index
    %23 = vector.load %arg5[%c0_10, %c0_11] : memref<384x1xf32, #tpu.memory_space<vmem>>, vector<384x1xf32>
    %24 = arith.mulf %22, %23 : vector<384x1xf32>
    %25 = vector.broadcast %19 : vector<384x1xf32> to vector<384x384xf32>
    %26 = arith.subf %5, %25 : vector<384x384xf32>
    %27 = math.exp %26 : vector<384x384xf32>
    %cst_12 = arith.constant dense<0.000000e+00> : vector<384xf32>
    %28 = vector.multi_reduction <add>, %27, %cst_12 [1] : vector<384x384xf32> to vector<384xf32>
    %29 = vector.shape_cast %28 : vector<384xf32> to vector<384x1xf32>
    %30 = arith.addf %24, %29 : vector<384x1xf32>
    %c0_13 = arith.constant 0 : index
    %c0_14 = arith.constant 0 : index
    %31 = vector.load %arg5[%c0_13, %c0_14] : memref<384x1xf32, #tpu.memory_space<vmem>>, vector<384x1xf32>
    tpu.vector_store %arg5[%c0_13, %c0_14], %30 {strides = array<i32>} : memref<384x1xf32, #tpu.memory_space<vmem>>, vector<384x1xf32>,
    %c0_15 = arith.constant 0 : index
    %c0_16 = arith.constant 0 : index
    %32 = vector.load %arg4[%c0_15, %c0_16] : memref<384x1xf32, #tpu.memory_space<vmem>>, vector<384x1xf32>
    tpu.vector_store %arg4[%c0_15, %c0_16], %19 {strides = array<i32>} : memref<384x1xf32, #tpu.memory_space<vmem>>, vector<384x1xf32>,
    %c0_i32_17 = arith.constant 0 : i32
    %33 = arith.cmpi eq, %arg1, %c0_i32_17 : i32
    %34 = arith.extui %33 : i1 to i32
    %c0_i32_18 = arith.constant 0 : i32
    %35 = arith.cmpi ne, %34, %c0_i32_18 : i32
    scf.if %35 {
      %c0_19 = arith.constant 0 : index
      %c0_20 = arith.constant 0 : index
      %36 = vector.load %arg4[%c0_19, %c0_20] : memref<384x1xf32, #tpu.memory_space<vmem>>, vector<384x1xf32>
      %c0_21 = arith.constant 0 : index
      %c0_22 = arith.constant 0 : index
      %37 = vector.load %arg5[%c0_21, %c0_22] : memref<384x1xf32, #tpu.memory_space<vmem>>, vector<384x1xf32>
      %38 = math.log %37 : vector<384x1xf32>
      %39 = arith.addf %36, %38 : vector<384x1xf32>
      %40 = tpu.iota {dimensions = array<i32: 0>} : vector<384x1xi32>
      %41 = vector.broadcast %0 : i32 to vector<384x1xi32>
      %42 = arith.addi %41, %40 : vector<384x1xi32>
      %c384_i32_23 = arith.constant 384 : i32
      %43 = vector.broadcast %c384_i32_23 : i32 to vector<384x1xi32>
      %44 = arith.cmpi slt, %42, %43 : vector<384x1xi32>
      %c0_24 = arith.constant 0 : index
      %c0_25 = arith.constant 0 : index
      %45 = vector.load %arg6[%c0_24, %c0_25] : memref<384x1xf32, #tpu.memory_space<vmem>>, vector<384x1xf32>
      %46 = arith.subf %39, %45 : vector<384x1xf32>
      %cst_26 = arith.constant 0.000000e+00 : f32
      %47 = vector.broadcast %cst_26 : f32 to vector<384x1xf32>
      %48 = arith.select %44, %46, %47 : vector<384x1xi1>, vector<384x1xf32>
      %49 = vector.shape_cast %48 : vector<384x1xf32> to vector<1x384x1xf32>
      %cst_27 = arith.constant dense<0.000000e+00> : vector<1xf32>
      %50 = vector.multi_reduction <add>, %49, %cst_27 [1, 2] : vector<1x384x1xf32> to vector<1xf32>
      %51 = vector.shape_cast %50 : vector<1xf32> to vector<1x1x1xf32>
      %52 = vector.extract %51[0, 0, 0] : f32 from vector<1x1x1xf32>
      %53 = vector.broadcast %52 : f32 to vector<1x8x128xf32>
      %c0_28 = arith.constant 0 : index
      %c0_29 = arith.constant 0 : index
      %c0_30 = arith.constant 0 : index
      %54 = vector.load %arg3[%c0_28, %c0_29, %c0_30] : memref<1x8x128xf32, #tpu.memory_space<vmem>>, vector<1x8x128xf32>
      tpu.vector_store %arg3[%c0_28, %c0_29, %c0_30], %53 {strides = array<i32>} : memref<1x8x128xf32, #tpu.memory_space<vmem>>, vector<1x8x128xf32>,
    } else {
    }
    return
  }
  func.func @transform_0(%arg0: i32, %arg1: i32) -> (i32, i32) {
    %c0_i32 = arith.constant 0 : i32
    return %arg0, %arg1 : i32, i32
  }
  func.func @transform_1(%arg0: i32, %arg1: i32) -> (i32, i32, i32) {
    %c0_i32 = arith.constant 0 : i32
    %c0_i32_0 = arith.constant 0 : i32
    %c0_i32_1 = arith.constant 0 : i32
    return %arg0, %c0_i32, %c0_i32_0 : i32, i32, i32
  }
}

</mosaic_0001>

<llo_original>
// kernel: tpu_custom_call.1
$region0: #{tpu_custom_call.1}
  #allocation0 [shape = 'u32[]', space=smem, size = 0x4, offset = 0x4, fixed_abs, tag = 'smem constant byte address 0x4 - core index']
  #allocation1 [shape = 'u32[72,128]{1,0:T(1,128)}', space=vmem, size = 0x9000, scoped, tag = 'internal scratch']
  #allocation2 [shape = 'f32[384,1]{1,0:T(8,128)}', space=vmem, size = 0x30000, scoped, tag = 'scratch operand']
  #allocation3 [shape = 'f32[384,1]{1,0:T(8,128)}', space=vmem, size = 0x30000, scoped, tag = 'scratch operand']
  #allocation4 [shape = 'f32[384,1]{1,0:T(8,128)}', space=vmem, size = 0x30000, scoped, tag = 'scratch operand']
  %s0 = inlined_call_operand.hbm [shape: f32[384,384], index: 0, kind: input, shape index: {}]
  %s1 = inlined_call_operand.hbm [shape: f32[1,8,128], index: 1, kind: output, shape index: {}]
  %s2 = sld [smem:[#allocation0]]
  $region30: #{tpu_custom_call.1} parent=0
    _
  %s4 = ssub.s32 1, %s2
  %s5 = scalar_select 0, %s4, %s2
  $region1: #{tpu_custom_call.1} parent=0
    #allocation5 [shape = 'u8[589824]{0}', space=vmem, size = 0x90000, scoped, tag = 'input window, operand 0, single buffered']
    #allocation6 [shape = 's32[1]{0}', space=sflag, size = 0x4, scoped, tag = 'scoped memory for tpu_custom_call.1']
    #allocation7 [shape = 's32[1]{0}', space=sflag, size = 0x4, scoped, tag = 'scoped memory for tpu_custom_call.1']
    #allocation8 [shape = 'u8[4096]{0}', space=vmem, size = 0x1000, scoped, tag = 'output window, operand 0, single buffered']
    %6 = vsyncpa [#allocation6], 0
    %7 = vsyncpa [#allocation7], 0
    // Predicated region
    $region2: #{tpu_custom_call.1} parent=1 // pred_check
      _
    $region3: #{tpu_custom_call.1} parent=1 // pred_check_branch
      %9 = sbr.rel (0) target = $region5
    $region4: #{tpu_custom_call.1} parent=1 // pred_region
      %11 = vsyncadd [#allocation6], 0
      %s12 = sshll.u32 %s0, 4
      %s13 = int_to_ptr.hbm [resolvable:$true] %s12
      %s14 = sshll.u32 [#allocation5], 4
      %s15 = int_to_ptr.vmem [resolvable:$true] %s14
      %20 = dma.hbm_to_vmem [thread:$0]  %s13, 18432, %s15, [#allocation6], 384, 384, 24
    $region5: #{tpu_custom_call.1} parent=1 // pred_fallthru
      _
    // Predicated region
    $region6: #{tpu_custom_call.1} parent=1 // pred_check
      _
    $region7: #{tpu_custom_call.1} parent=1 // pred_check_branch
      %22 = sbr.rel (0) target = $region9
    $region8: #{tpu_custom_call.1} parent=1 // pred_region
      %24 = dma.done [#allocation6], 18432
    $region9: #{tpu_custom_call.1} parent=1 // pred_fallthru
      _
    %s25 = smul.u32 0, 384
    %s26 = smul.u32 0, 384
    %p27 = scmp.eq.s32.totalorder 0, 0
    // Predicated region
    $region10: #{tpu_custom_call.1} parent=1 // pred_check
      %p28 = pneg %p27
    $region11: #{tpu_custom_call.1} parent=1 // pred_check_branch
      %30 = sbr.rel (%p28) target = $region13
    $region12: #{tpu_custom_call.1} parent=1 // pred_region
      %vm31 = vcmask 7168
      %32 = vst.msk [vmem:[#allocation2] sm:$0xff] %vm31, -inf
      %33 = vst.msk [vmem:[#allocation2 + $0x8] sm:$0xff] %vm31, -inf
      %34 = vst.msk [vmem:[#allocation2 + $0x10] sm:$0xff] %vm31, -inf
      %35 = vst.msk [vmem:[#allocation2 + $0x18] sm:$0xff] %vm31, -inf
      %36 = vst.msk [vmem:[#allocation2 + $0x20] sm:$0xff] %vm31, -inf
      %37 = vst.msk [vmem:[#allocation2 + $0x28] sm:$0xff] %vm31, -inf
      %38 = vst.msk [vmem:[#allocation2 + $0x30] sm:$0xff] %vm31, -inf
      %39 = vst.msk [vmem:[#allocation2 + $0x38] sm:$0xff] %vm31, -inf
      %40 = vst.msk [vmem:[#allocation2 + $0x40] sm:$0xff] %vm31, -inf
      %41 = vst.msk [vmem:[#allocation2 + $0x48] sm:$0xff] %vm31, -inf
      %42 = vst.msk [vmem:[#allocation2 + $0x50] sm:$0xff] %vm31, -inf
      %43 = vst.msk [vmem:[#allocation2 + $0x58] sm:$0xff] %vm31, -inf
      %44 = vst.msk [vmem:[#allocation2 + $0x60] sm:$0xff] %vm31, -inf
      %45 = vst.msk [vmem:[#allocation2 + $0x68] sm:$0xff] %vm31, -inf
      %46 = vst.msk [vmem:[#allocation2 + $0x70] sm:$0xff] %vm31, -inf
      %47 = vst.msk [vmem:[#allocation2 + $0x78] sm:$0xff] %vm31, -inf
      %48 = vst.msk [vmem:[#allocation2 + $0x80] sm:$0xff] %vm31, -inf
      %49 = vst.msk [vmem:[#allocation2 + $0x88] sm:$0xff] %vm31, -inf
      %50 = vst.msk [vmem:[#allocation2 + $0x90] sm:$0xff] %vm31, -inf
      %51 = vst.msk [vmem:[#allocation2 + $0x98] sm:$0xff] %vm31, -inf
      %52 = vst.msk [vmem:[#allocation2 + $0xa0] sm:$0xff] %vm31, -inf
      %53 = vst.msk [vmem:[#allocation2 + $0xa8] sm:$0xff] %vm31, -inf
      %54 = vst.msk [vmem:[#allocation2 + $0xb0] sm:$0xff] %vm31, -inf
      %55 = vst.msk [vmem:[#allocation2 + $0xb8] sm:$0xff] %vm31, -inf
      %56 = vst.msk [vmem:[#allocation2 + $0xc0] sm:$0xff] %vm31, -inf
      %57 = vst.msk [vmem:[#allocation2 + $0xc8] sm:$0xff] %vm31, -inf
      %58 = vst.msk [vmem:[#allocation2 + $0xd0] sm:$0xff] %vm31, -inf
      %59 = vst.msk [vmem:[#allocation2 + $0xd8] sm:$0xff] %vm31, -inf
      %60 = vst.msk [vmem:[#allocation2 + $0xe0] sm:$0xff] %vm31, -inf
      %61 = vst.msk [vmem:[#allocation2 + $0xe8] sm:$0xff] %vm31, -inf
      %62 = vst.msk [vmem:[#allocation2 + $0xf0] sm:$0xff] %vm31, -inf
      %63 = vst.msk [vmem:[#allocation2 + $0xf8] sm:$0xff] %vm31, -inf
      %64 = vst.msk [vmem:[#allocation2 + $0x100] sm:$0xff] %vm31, -inf
      %65 = vst.msk [vmem:[#allocation2 + $0x108] sm:$0xff] %vm31, -inf
      %66 = vst.msk [vmem:[#allocation2 + $0x110] sm:$0xff] %vm31, -inf
      %67 = vst.msk [vmem:[#allocation2 + $0x118] sm:$0xff] %vm31, -inf
      %68 = vst.msk [vmem:[#allocation2 + $0x120] sm:$0xff] %vm31, -inf
      %69 = vst.msk [vmem:[#allocation2 + $0x128] sm:$0xff] %vm31, -inf
      %70 = vst.msk [vmem:[#allocation2 + $0x130] sm:$0xff] %vm31, -inf
      %71 = vst.msk [vmem:[#allocation2 + $0x138] sm:$0xff] %vm31, -inf
      %72 = vst.msk [vmem:[#allocation2 + $0x140] sm:$0xff] %vm31, -inf
      %73 = vst.msk [vmem:[#allocation2 + $0x148] sm:$0xff] %vm31, -inf
      %74 = vst.msk [vmem:[#allocation2 + $0x150] sm:$0xff] %vm31, -inf
      %75 = vst.msk [vmem:[#allocation2 + $0x158] sm:$0xff] %vm31, -inf
      %76 = vst.msk [vmem:[#allocation2 + $0x160] sm:$0xff] %vm31, -inf
      %77 = vst.msk [vmem:[#allocation2 + $0x168] sm:$0xff] %vm31, -inf
      %78 = vst.msk [vmem:[#allocation2 + $0x170] sm:$0xff] %vm31, -inf
      %79 = vst.msk [vmem:[#allocation2 + $0x178] sm:$0xff] %vm31, -inf
      %80 = vst.msk [vmem:[#allocation3] sm:$0xff] %vm31, 0.0
      %81 = vst.msk [vmem:[#allocation3 + $0x8] sm:$0xff] %vm31, 0.0
      %82 = vst.msk [vmem:[#allocation3 + $0x10] sm:$0xff] %vm31, 0.0
      %83 = vst.msk [vmem:[#allocation3 + $0x18] sm:$0xff] %vm31, 0.0
      %84 = vst.msk [vmem:[#allocation3 + $0x20] sm:$0xff] %vm31, 0.0
      %85 = vst.msk [vmem:[#allocation3 + $0x28] sm:$0xff] %vm31, 0.0
      %86 = vst.msk [vmem:[#allocation3 + $0x30] sm:$0xff] %vm31, 0.0
      %87 = vst.msk [vmem:[#allocation3 + $0x38] sm:$0xff] %vm31, 0.0
      %88 = vst.msk [vmem:[#allocation3 + $0x40] sm:$0xff] %vm31, 0.0
      %89 = vst.msk [vmem:[#allocation3 + $0x48] sm:$0xff] %vm31, 0.0
      %90 = vst.msk [vmem:[#allocation3 + $0x50] sm:$0xff] %vm31, 0.0
      %91 = vst.msk [vmem:[#allocation3 + $0x58] sm:$0xff] %vm31, 0.0
      %92 = vst.msk [vmem:[#allocation3 + $0x60] sm:$0xff] %vm31, 0.0
      %93 = vst.msk [vmem:[#allocation3 + $0x68] sm:$0xff] %vm31, 0.0
      %94 = vst.msk [vmem:[#allocation3 + $0x70] sm:$0xff] %vm31, 0.0
      %95 = vst.msk [vmem:[#allocation3 + $0x78] sm:$0xff] %vm31, 0.0
      %96 = vst.msk [vmem:[#allocation3 + $0x80] sm:$0xff] %vm31, 0.0
      %97 = vst.msk [vmem:[#allocation3 + $0x88] sm:$0xff] %vm31, 0.0
      %98 = vst.msk [vmem:[#allocation3 + $0x90] sm:$0xff] %vm31, 0.0
      %99 = vst.msk [vmem:[#allocation3 + $0x98] sm:$0xff] %vm31, 0.0
      %100 = vst.msk [vmem:[#allocation3 + $0xa0] sm:$0xff] %vm31, 0.0
      %101 = vst.msk [vmem:[#allocation3 + $0xa8] sm:$0xff] %vm31, 0.0
      %102 = vst.msk [vmem:[#allocation3 + $0xb0] sm:$0xff] %vm31, 0.0
      %103 = vst.msk [vmem:[#allocation3 + $0xb8] sm:$0xff] %vm31, 0.0
      %104 = vst.msk [vmem:[#allocation3 + $0xc0] sm:$0xff] %vm31, 0.0
      %105 = vst.msk [vmem:[#allocation3 + $0xc8] sm:$0xff] %vm31, 0.0
      %106 = vst.msk [vmem:[#allocation3 + $0xd0] sm:$0xff] %vm31, 0.0
      %107 = vst.msk [vmem:[#allocation3 + $0xd8] sm:$0xff] %vm31, 0.0
      %108 = vst.msk [vmem:[#allocation3 + $0xe0] sm:$0xff] %vm31, 0.0
      %109 = vst.msk [vmem:[#allocation3 + $0xe8] sm:$0xff] %vm31, 0.0
      %110 = vst.msk [vmem:[#allocation3 + $0xf0] sm:$0xff] %vm31, 0.0
      %111 = vst.msk [vmem:[#allocation3 + $0xf8] sm:$0xff] %vm31, 0.0
      %112 = vst.msk [vmem:[#allocation3 + $0x100] sm:$0xff] %vm31, 0.0
      %113 = vst.msk [vmem:[#allocation3 + $0x108] sm:$0xff] %vm31, 0.0
      %114 = vst.msk [vmem:[#allocation3 + $0x110] sm:$0xff] %vm31, 0.0
      %115 = vst.msk [vmem:[#allocation3 + $0x118] sm:$0xff] %vm31, 0.0
      %116 = vst.msk [vmem:[#allocation3 + $0x120] sm:$0xff] %vm31, 0.0
      %117 = vst.msk [vmem:[#allocation3 + $0x128] sm:$0xff] %vm31, 0.0
      %118 = vst.msk [vmem:[#allocation3 + $0x130] sm:$0xff] %vm31, 0.0
      %119 = vst.msk [vmem:[#allocation3 + $0x138] sm:$0xff] %vm31, 0.0
      %120 = vst.msk [vmem:[#allocation3 + $0x140] sm:$0xff] %vm31, 0.0
      %121 = vst.msk [vmem:[#allocation3 + $0x148] sm:$0xff] %vm31, 0.0
      %122 = vst.msk [vmem:[#allocation3 + $0x150] sm:$0xff] %vm31, 0.0
      %123 = vst.msk [vmem:[#allocation3 + $0x158] sm:$0xff] %vm31, 0.0
      %124 = vst.msk [vmem:[#allocation3 + $0x160] sm:$0xff] %vm31, 0.0
      %125 = vst.msk [vmem:[#allocation3 + $0x168] sm:$0xff] %vm31, 0.0
      %126 = vst.msk [vmem:[#allocation3 + $0x170] sm:$0xff] %vm31, 0.0
      %127 = vst.msk [vmem:[#allocation3 + $0x178] sm:$0xff] %vm31, 0.0
      %128 = vst.msk [vmem:[#allocation4] sm:$0xff] %vm31, 0.0
      %129 = vst.msk [vmem:[#allocation4 + $0x8] sm:$0xff] %vm31, 0.0
      %130 = vst.msk [vmem:[#allocation4 + $0x10] sm:$0xff] %vm31, 0.0
      %131 = vst.msk [vmem:[#allocation4 + $0x18] sm:$0xff] %vm31, 0.0
      %132 = vst.msk [vmem:[#allocation4 + $0x20] sm:$0xff] %vm31, 0.0
      %133 = vst.msk [vmem:[#allocation4 + $0x28] sm:$0xff] %vm31, 0.0
      %134 = vst.msk [vmem:[#allocation4 + $0x30] sm:$0xff] %vm31, 0.0
      %135 = vst.msk [vmem:[#allocation4 + $0x38] sm:$0xff] %vm31, 0.0
      %136 = vst.msk [vmem:[#allocation4 + $0x40] sm:$0xff] %vm31, 0.0
      %137 = vst.msk [vmem:[#allocation4 + $0x48] sm:$0xff] %vm31, 0.0
      %138 = vst.msk [vmem:[#allocation4 + $0x50] sm:$0xff] %vm31, 0.0
      %139 = vst.msk [vmem:[#allocation4 + $0x58] sm:$0xff] %vm31, 0.0
      %140 = vst.msk [vmem:[#allocation4 + $0x60] sm:$0xff] %vm31, 0.0
      %141 = vst.msk [vmem:[#allocation4 + $0x68] sm:$0xff] %vm31, 0.0
      %142 = vst.msk [vmem:[#allocation4 + $0x70] sm:$0xff] %vm31, 0.0
      %143 = vst.msk [vmem:[#allocation4 + $0x78] sm:$0xff] %vm31, 0.0
      %144 = vst.msk [vmem:[#allocation4 + $0x80] sm:$0xff] %vm31, 0.0
      %145 = vst.msk [vmem:[#allocation4 + $0x88] sm:$0xff] %vm31, 0.0
      %146 = vst.msk [vmem:[#allocation4 + $0x90] sm:$0xff] %vm31, 0.0
      %147 = vst.msk [vmem:[#allocation4 + $0x98] sm:$0xff] %vm31, 0.0
      %148 = vst.msk [vmem:[#allocation4 + $0xa0] sm:$0xff] %vm31, 0.0
      %149 = vst.msk [vmem:[#allocation4 + $0xa8] sm:$0xff] %vm31, 0.0
      %150 = vst.msk [vmem:[#allocation4 + $0xb0] sm:$0xff] %vm31, 0.0
      %151 = vst.msk [vmem:[#allocation4 + $0xb8] sm:$0xff] %vm31, 0.0
      %152 = vst.msk [vmem:[#allocation4 + $0xc0] sm:$0xff] %vm31, 0.0
      %153 = vst.msk [vmem:[#allocation4 + $0xc8] sm:$0xff] %vm31, 0.0
      %154 = vst.msk [vmem:[#allocation4 + $0xd0] sm:$0xff] %vm31, 0.0
      %155 = vst.msk [vmem:[#allocation4 + $0xd8] sm:$0xff] %vm31, 0.0
      %156 = vst.msk [vmem:[#allocation4 + $0xe0] sm:$0xff] %vm31, 0.0
      %157 = vst.msk [vmem:[#allocation4 + $0xe8] sm:$0xff] %vm31, 0.0
      %158 = vst.msk [vmem:[#allocation4 + $0xf0] sm:$0xff] %vm31, 0.0
      %159 = vst.msk [vmem:[#allocation4 + $0xf8] sm:$0xff] %vm31, 0.0
      %160 = vst.msk [vmem:[#allocation4 + $0x100] sm:$0xff] %vm31, 0.0
      %161 = vst.msk [vmem:[#allocation4 + $0x108] sm:$0xff] %vm31, 0.0
      %162 = vst.msk [vmem:[#allocation4 + $0x110] sm:$0xff] %vm31, 0.0
      %163 = vst.msk [vmem:[#allocation4 + $0x118] sm:$0xff] %vm31, 0.0
      %164 = vst.msk [vmem:[#allocation4 + $0x120] sm:$0xff] %vm31, 0.0
      %165 = vst.msk [vmem:[#allocation4 + $0x128] sm:$0xff] %vm31, 0.0
      %166 = vst.msk [vmem:[#allocation4 + $0x130] sm:$0xff] %vm31, 0.0
      %167 = vst.msk [vmem:[#allocation4 + $0x138] sm:$0xff] %vm31, 0.0
      %168 = vst.msk [vmem:[#allocation4 + $0x140] sm:$0xff] %vm31, 0.0
      %169 = vst.msk [vmem:[#allocation4 + $0x148] sm:$0xff] %vm31, 0.0
      %170 = vst.msk [vmem:[#allocation4 + $0x150] sm:$0xff] %vm31, 0.0
      %171 = vst.msk [vmem:[#allocation4 + $0x158] sm:$0xff] %vm31, 0.0
      %172 = vst.msk [vmem:[#allocation4 + $0x160] sm:$0xff] %vm31, 0.0
      %173 = vst.msk [vmem:[#allocation4 + $0x168] sm:$0xff] %vm31, 0.0
      %174 = vst.msk [vmem:[#allocation4 + $0x170] sm:$0xff] %vm31, 0.0
      %175 = vst.msk [vmem:[#allocation4 + $0x178] sm:$0xff] %vm31, 0.0
    $region13: #{tpu_custom_call.1} parent=1 // pred_fallthru
      _
    %v176 = vld [vmem:[#allocation5] sm:$0xff]
    %v177 = vld [vmem:[#allocation5 + $0x8] sm:$0xff]
    %v178 = vld [vmem:[#allocation5 + $0x10] sm:$0xff]
    %v179 = vld [vmem:[#allocation5 + $0x18] sm:$0xff]
    %v180 = vld [vmem:[#allocation5 + $0x20] sm:$0xff]
    %v181 = vld [vmem:[#allocation5 + $0x28] sm:$0xff]
    %v182 = vld [vmem:[#allocation5 + $0x30] sm:$0xff]
    %v183 = vld [vmem:[#allocation5 + $0x38] sm:$0xff]
    %v184 = vld [vmem:[#allocation5 + $0x40] sm:$0xff]
    %v185 = vld [vmem:[#allocation5 + $0x48] sm:$0xff]
    %v186 = vld [vmem:[#allocation5 + $0x50] sm:$0xff]
    %v187 = vld [vmem:[#allocation5 + $0x58] sm:$0xff]
    %v188 = vld [vmem:[#allocation5 + $0x60] sm:$0xff]
    %v189 = vld [vmem:[#allocation5 + $0x68] sm:$0xff]
    %v190 = vld [vmem:[#allocation5 + $0x70] sm:$0xff]
    %v191 = vld [vmem:[#allocation5 + $0x78] sm:$0xff]
    %v192 = vld [vmem:[#allocation5 + $0x80] sm:$0xff]
    %v193 = vld [vmem:[#allocation5 + $0x88] sm:$0xff]
    %v194 = vld [vmem:[#allocation5 + $0x90] sm:$0xff]
    %v195 = vld [vmem:[#allocation5 + $0x98] sm:$0xff]
    %v196 = vld [vmem:[#allocation5 + $0xa0] sm:$0xff]
    %v197 = vld [vmem:[#allocation5 + $0xa8] sm:$0xff]
    %v198 = vld [vmem:[#allocation5 + $0xb0] sm:$0xff]
    %v199 = vld [vmem:[#allocation5 + $0xb8] sm:$0xff]
    %v200 = vld [vmem:[#allocation5 + $0xc0] sm:$0xff]
    %v201 = vld [vmem:[#allocation5 + $0xc8] sm:$0xff]
    %v202 = vld [vmem:[#allocation5 + $0xd0] sm:$0xff]
    %v203 = vld [vmem:[#allocation5 + $0xd8] sm:$0xff]
    %v204 = vld [vmem:[#allocation5 + $0xe0] sm:$0xff]
    %v205 = vld [vmem:[#allocation5 + $0xe8] sm:$0xff]
    %v206 = vld [vmem:[#allocation5 + $0xf0] sm:$0xff]
    %v207 = vld [vmem:[#allocation5 + $0xf8] sm:$0xff]
    %v208 = vld [vmem:[#allocation5 + $0x100] sm:$0xff]
    %v209 = vld [vmem:[#allocation5 + $0x108] sm:$0xff]
    %v210 = vld [vmem:[#allocation5 + $0x110] sm:$0xff]
    %v211 = vld [vmem:[#allocation5 + $0x118] sm:$0xff]
    %v212 = vld [vmem:[#allocation5 + $0x120] sm:$0xff]
    %v213 = vld [vmem:[#allocation5 + $0x128] sm:$0xff]
    %v214 = vld [vmem:[#allocation5 + $0x130] sm:$0xff]
    %v215 = vld [vmem:[#allocation5 + $0x138] sm:$0xff]
    %v216 = vld [vmem:[#allocation5 + $0x140] sm:$0xff]
    %v217 = vld [vmem:[#allocation5 + $0x148] sm:$0xff]
    %v218 = vld [vmem:[#allocation5 + $0x150] sm:$0xff]
    %v219 = vld [vmem:[#allocation5 + $0x158] sm:$0xff]
    %v220 = vld [vmem:[#allocation5 + $0x160] sm:$0xff]
    %v221 = vld [vmem:[#allocation5 + $0x168] sm:$0xff]
    %v222 = vld [vmem:[#allocation5 + $0x170] sm:$0xff]
    %v223 = vld [vmem:[#allocation5 + $0x178] sm:$0xff]
    %v224 = vld [vmem:[#allocation5 + $0x180] sm:$0xff]
    %v225 = vld [vmem:[#allocation5 + $0x188] sm:$0xff]
    %v226 = vld [vmem:[#allocation5 + $0x190] sm:$0xff]
    %v227 = vld [vmem:[#allocation5 + $0x198] sm:$0xff]
    %v228 = vld [vmem:[#allocation5 + $0x1a0] sm:$0xff]
    %v229 = vld [vmem:[#allocation5 + $0x1a8] sm:$0xff]
    %v230 = vld [vmem:[#allocation5 + $0x1b0] sm:$0xff]
    %v231 = vld [vmem:[#allocation5 + $0x1b8] sm:$0xff]
    %v232 = vld [vmem:[#allocation5 + $0x1c0] sm:$0xff]
    %v233 = vld [vmem:[#allocation5 + $0x1c8] sm:$0xff]
    %v234 = vld [vmem:[#allocation5 + $0x1d0] sm:$0xff]
    %v235 = vld [vmem:[#allocation5 + $0x1d8] sm:$0xff]
    %v236 = vld [vmem:[#allocation5 + $0x1e0] sm:$0xff]
    %v237 = vld [vmem:[#allocation5 + $0x1e8] sm:$0xff]
    %v238 = vld [vmem:[#allocation5 + $0x1f0] sm:$0xff]
    %v239 = vld [vmem:[#allocation5 + $0x1f8] sm:$0xff]
    %v240 = vld [vmem:[#allocation5 + $0x200] sm:$0xff]
    %v241 = vld [vmem:[#allocation5 + $0x208] sm:$0xff]
    %v242 = vld [vmem:[#allocation5 + $0x210] sm:$0xff]
    %v243 = vld [vmem:[#allocation5 + $0x218] sm:$0xff]
    %v244 = vld [vmem:[#allocation5 + $0x220] sm:$0xff]
    %v245 = vld [vmem:[#allocation5 + $0x228] sm:$0xff]
    %v246 = vld [vmem:[#allocation5 + $0x230] sm:$0xff]
    %v247 = vld [vmem:[#allocation5 + $0x238] sm:$0xff]
    %v248 = vld [vmem:[#allocation5 + $0x240] sm:$0xff]
    %v249 = vld [vmem:[#allocation5 + $0x248] sm:$0xff]
    %v250 = vld [vmem:[#allocation5 + $0x250] sm:$0xff]
    %v251 = vld [vmem:[#allocation5 + $0x258] sm:$0xff]
    %v252 = vld [vmem:[#allocation5 + $0x260] sm:$0xff]
    %v253 = vld [vmem:[#allocation5 + $0x268] sm:$0xff]
    %v254 = vld [vmem:[#allocation5 + $0x270] sm:$0xff]
    %v255 = vld [vmem:[#allocation5 + $0x278] sm:$0xff]
    %v256 = vld [vmem:[#allocation5 + $0x280] sm:$0xff]
    %v257 = vld [vmem:[#allocation5 + $0x288] sm:$0xff]
    %v258 = vld [vmem:[#allocation5 + $0x290] sm:$0xff]
    %v259 = vld [vmem:[#allocation5 + $0x298] sm:$0xff]
    %v260 = vld [vmem:[#allocation5 + $0x2a0] sm:$0xff]
    %v261 = vld [vmem:[#allocation5 + $0x2a8] sm:$0xff]
    %v262 = vld [vmem:[#allocation5 + $0x2b0] sm:$0xff]
    %v263 = vld [vmem:[#allocation5 + $0x2b8] sm:$0xff]
    %v264 = vld [vmem:[#allocation5 + $0x2c0] sm:$0xff]
    %v265 = vld [vmem:[#allocation5 + $0x2c8] sm:$0xff]
    %v266 = vld [vmem:[#allocation5 + $0x2d0] sm:$0xff]
    %v267 = vld [vmem:[#allocation5 + $0x2d8] sm:$0xff]
    %v268 = vld [vmem:[#allocation5 + $0x2e0] sm:$0xff]
    %v269 = vld [vmem:[#allocation5 + $0x2e8] sm:$0xff]
    %v270 = vld [vmem:[#allocation5 + $0x2f0] sm:$0xff]
    %v271 = vld [vmem:[#allocation5 + $0x2f8] sm:$0xff]
    %v272 = vld [vmem:[#allocation5 + $0x300] sm:$0xff]
    %v273 = vld [vmem:[#allocation5 + $0x308] sm:$0xff]
    %v274 = vld [vmem:[#allocation5 + $0x310] sm:$0xff]
    %v275 = vld [vmem:[#allocation5 + $0x318] sm:$0xff]
    %v276 = vld [vmem:[#allocation5 + $0x320] sm:$0xff]
    %v277 = vld [vmem:[#allocation5 + $0x328] sm:$0xff]
    %v278 = vld [vmem:[#allocation5 + $0x330] sm:$0xff]
    %v279 = vld [vmem:[#allocation5 + $0x338] sm:$0xff]
    %v280 = vld [vmem:[#allocation5 + $0x340] sm:$0xff]
    %v281 = vld [vmem:[#allocation5 + $0x348] sm:$0xff]
    %v282 = vld [vmem:[#allocation5 + $0x350] sm:$0xff]
    %v283 = vld [vmem:[#allocation5 + $0x358] sm:$0xff]
    %v284 = vld [vmem:[#allocation5 + $0x360] sm:$0xff]
    %v285 = vld [vmem:[#allocation5 + $0x368] sm:$0xff]
    %v286 = vld [vmem:[#allocation5 + $0x370] sm:$0xff]
    %v287 = vld [vmem:[#allocation5 + $0x378] sm:$0xff]
    %v288 = vld [vmem:[#allocation5 + $0x380] sm:$0xff]
    %v289 = vld [vmem:[#allocation5 + $0x388] sm:$0xff]
    %v290 = vld [vmem:[#allocation5 + $0x390] sm:$0xff]
    %v291 = vld [vmem:[#allocation5 + $0x398] sm:$0xff]
    %v292 = vld [vmem:[#allocation5 + $0x3a0] sm:$0xff]
    %v293 = vld [vmem:[#allocation5 + $0x3a8] sm:$0xff]
    %v294 = vld [vmem:[#allocation5 + $0x3b0] sm:$0xff]
    %v295 = vld [vmem:[#allocation5 + $0x3b8] sm:$0xff]
    %v296 = vld [vmem:[#allocation5 + $0x3c0] sm:$0xff]
    %v297 = vld [vmem:[#allocation5 + $0x3c8] sm:$0xff]
    %v298 = vld [vmem:[#allocation5 + $0x3d0] sm:$0xff]
    %v299 = vld [vmem:[#allocation5 + $0x3d8] sm:$0xff]
    %v300 = vld [vmem:[#allocation5 + $0x3e0] sm:$0xff]
    %v301 = vld [vmem:[#allocation5 + $0x3e8] sm:$0xff]
    %v302 = vld [vmem:[#allocation5 + $0x3f0] sm:$0xff]
    %v303 = vld [vmem:[#allocation5 + $0x3f8] sm:$0xff]
    %v304 = vld [vmem:[#allocation5 + $0x400] sm:$0xff]
    %v305 = vld [vmem:[#allocation5 + $0x408] sm:$0xff]
    %v306 = vld [vmem:[#allocation5 + $0x410] sm:$0xff]
    %v307 = vld [vmem:[#allocation5 + $0x418] sm:$0xff]
    %v308 = vld [vmem:[#allocation5 + $0x420] sm:$0xff]
    %v309 = vld [vmem:[#allocation5 + $0x428] sm:$0xff]
    %v310 = vld [vmem:[#allocation5 + $0x430] sm:$0xff]
    %v311 = vld [vmem:[#allocation5 + $0x438] sm:$0xff]
    %v312 = vld [vmem:[#allocation5 + $0x440] sm:$0xff]
    %v313 = vld [vmem:[#allocation5 + $0x448] sm:$0xff]
    %v314 = vld [vmem:[#allocation5 + $0x450] sm:$0xff]
    %v315 = vld [vmem:[#allocation5 + $0x458] sm:$0xff]
    %v316 = vld [vmem:[#allocation5 + $0x460] sm:$0xff]
    %v317 = vld [vmem:[#allocation5 + $0x468] sm:$0xff]
    %v318 = vld [vmem:[#allocation5 + $0x470] sm:$0xff]
    %v319 = vld [vmem:[#allocation5 + $0x478] sm:$0xff]
    %v320 = vlaneseq
    %v321 = vand.u32 %v320, 127
    %v322 = vadd.s32 %v321, 128
    %v323 = vadd.s32 %v321, 256
    %v324 = vstv %s26
    %v325 = vadd.s32 %v324, %v321
    %v326 = vadd.s32 %v324, %v322
    %v327 = vadd.s32 %v324, %v323
    %s328 = sadd.s32 %s26, 384
    %p329 = scmp.lt.s32.totalorder %s25, %s328
    %s330 = sadd.s32 %s25, 384
    %p331 = scmp.gt.s32.totalorder %s330, %s26
    %p332 = pnand %p329, %p331
    %p333 = pneg %p332
    // Predicated region
    $region14: #{tpu_custom_call.1} parent=1 // pred_check
      _
    $region15: #{tpu_custom_call.1} parent=1 // pred_check_branch
      %335 = sbr.rel (%p332) target = $region17
    $region16: #{tpu_custom_call.1} parent=1 // pred_region
      %v336 = vlaneseq
      %v337 = vshrl.u32 %v336, 7
      %v338 = vadd.s32 %v337, 8
      %v339 = vadd.s32 %v337, 16
      %v340 = vadd.s32 %v337, 24
      %v341 = vadd.s32 %v337, 32
      %v342 = vadd.s32 %v337, 40
      %v343 = vadd.s32 %v337, 48
      %v344 = vadd.s32 %v337, 56
      %v345 = vadd.s32 %v337, 64
      %v346 = vadd.s32 %v337, 72
      %v347 = vadd.s32 %v337, 80
      %v348 = vadd.s32 %v337, 88
      %v349 = vadd.s32 %v337, 96
      %v350 = vadd.s32 %v337, 104
      %v351 = vadd.s32 %v337, 112
      %v352 = vadd.s32 %v337, 120
      %v353 = vadd.s32 %v337, 128
      %v354 = vadd.s32 %v337, 136
      %v355 = vadd.s32 %v337, 144
      %v356 = vadd.s32 %v337, 152
      %v357 = vadd.s32 %v337, 160
      %v358 = vadd.s32 %v337, 168
      %v359 = vadd.s32 %v337, 176
      %v360 = vadd.s32 %v337, 184
      %v361 = vadd.s32 %v337, 192
      %v362 = vadd.s32 %v337, 200
      %v363 = vadd.s32 %v337, 208
      %v364 = vadd.s32 %v337, 216
      %v365 = vadd.s32 %v337, 224
      %v366 = vadd.s32 %v337, 232
      %v367 = vadd.s32 %v337, 240
      %v368 = vadd.s32 %v337, 248
      %v369 = vadd.s32 %v337, 256
      %v370 = vadd.s32 %v337, 264
      %v371 = vadd.s32 %v337, 272
      %v372 = vadd.s32 %v337, 280
      %v373 = vadd.s32 %v337, 288
      %v374 = vadd.s32 %v337, 296
      %v375 = vadd.s32 %v337, 304
      %v376 = vadd.s32 %v337, 312
      %v377 = vadd.s32 %v337, 320
      %v378 = vadd.s32 %v337, 328
      %v379 = vadd.s32 %v337, 336
      %v380 = vadd.s32 %v337, 344
      %v381 = vadd.s32 %v337, 352
      %v382 = vadd.s32 %v337, 360
      %v383 = vadd.s32 %v337, 368
      %v384 = vadd.s32 %v337, 376
      %v385 = vstv %s25
      %v386 = vadd.s32 %v385, %v337
      %v387 = vadd.s32 %v385, %v338
      %v388 = vadd.s32 %v385, %v339
      %v389 = vadd.s32 %v385, %v340
      %v390 = vadd.s32 %v385, %v341
      %v391 = vadd.s32 %v385, %v342
      %v392 = vadd.s32 %v385, %v343
      %v393 = vadd.s32 %v385, %v344
      %v394 = vadd.s32 %v385, %v345
      %v395 = vadd.s32 %v385, %v346
      %v396 = vadd.s32 %v385, %v347
      %v397 = vadd.s32 %v385, %v348
      %v398 = vadd.s32 %v385, %v349
      %v399 = vadd.s32 %v385, %v350
      %v400 = vadd.s32 %v385, %v351
      %v401 = vadd.s32 %v385, %v352
      %v402 = vadd.s32 %v385, %v353
      %v403 = vadd.s32 %v385, %v354
      %v404 = vadd.s32 %v385, %v355
      %v405 = vadd.s32 %v385, %v356
      %v406 = vadd.s32 %v385, %v357
      %v407 = vadd.s32 %v385, %v358
      %v408 = vadd.s32 %v385, %v359
      %v409 = vadd.s32 %v385, %v360
      %v410 = vadd.s32 %v385, %v361
      %v411 = vadd.s32 %v385, %v362
      %v412 = vadd.s32 %v385, %v363
      %v413 = vadd.s32 %v385, %v364
      %v414 = vadd.s32 %v385, %v365
      %v415 = vadd.s32 %v385, %v366
      %v416 = vadd.s32 %v385, %v367
      %v417 = vadd.s32 %v385, %v368
      %v418 = vadd.s32 %v385, %v369
      %v419 = vadd.s32 %v385, %v370
      %v420 = vadd.s32 %v385, %v371
      %v421 = vadd.s32 %v385, %v372
      %v422 = vadd.s32 %v385, %v373
      %v423 = vadd.s32 %v385, %v374
      %v424 = vadd.s32 %v385, %v375
      %v425 = vadd.s32 %v385, %v376
      %v426 = vadd.s32 %v385, %v377
      %v427 = vadd.s32 %v385, %v378
      %v428 = vadd.s32 %v385, %v379
      %v429 = vadd.s32 %v385, %v380
      %v430 = vadd.s32 %v385, %v381
      %v431 = vadd.s32 %v385, %v382
      %v432 = vadd.s32 %v385, %v383
      %v433 = vadd.s32 %v385, %v384
      %v434 = vld [vmem:[#allocation4] sm:$0xff]
      %v435 = vld [vmem:[#allocation4 + $0x8] sm:$0xff]
      %v436 = vld [vmem:[#allocation4 + $0x10] sm:$0xff]
      %v437 = vld [vmem:[#allocation4 + $0x18] sm:$0xff]
      %v438 = vld [vmem:[#allocation4 + $0x20] sm:$0xff]
      %v439 = vld [vmem:[#allocation4 + $0x28] sm:$0xff]
      %v440 = vld [vmem:[#allocation4 + $0x30] sm:$0xff]
      %v441 = vld [vmem:[#allocation4 + $0x38] sm:$0xff]
      %v442 = vld [vmem:[#allocation4 + $0x40] sm:$0xff]
      %v443 = vld [vmem:[#allocation4 + $0x48] sm:$0xff]
      %v444 = vld [vmem:[#allocation4 + $0x50] sm:$0xff]
      %v445 = vld [vmem:[#allocation4 + $0x58] sm:$0xff]
      %v446 = vld [vmem:[#allocation4 + $0x60] sm:$0xff]
      %v447 = vld [vmem:[#allocation4 + $0x68] sm:$0xff]
      %v448 = vld [vmem:[#allocation4 + $0x70] sm:$0xff]
      %v449 = vld [vmem:[#allocation4 + $0x78] sm:$0xff]
      %v450 = vld [vmem:[#allocation4 + $0x80] sm:$0xff]
      %v451 = vld [vmem:[#allocation4 + $0x88] sm:$0xff]
      %v452 = vld [vmem:[#allocation4 + $0x90] sm:$0xff]
      %v453 = vld [vmem:[#allocation4 + $0x98] sm:$0xff]
      %v454 = vld [vmem:[#allocation4 + $0xa0] sm:$0xff]
      %v455 = vld [vmem:[#allocation4 + $0xa8] sm:$0xff]
      %v456 = vld [vmem:[#allocation4 + $0xb0] sm:$0xff]
      %v457 = vld [vmem:[#allocation4 + $0xb8] sm:$0xff]
      %v458 = vld [vmem:[#allocation4 + $0xc0] sm:$0xff]
      %v459 = vld [vmem:[#allocation4 + $0xc8] sm:$0xff]
      %v460 = vld [vmem:[#allocation4 + $0xd0] sm:$0xff]
      %v461 = vld [vmem:[#allocation4 + $0xd8] sm:$0xff]
      %v462 = vld [vmem:[#allocation4 + $0xe0] sm:$0xff]
      %v463 = vld [vmem:[#allocation4 + $0xe8] sm:$0xff]
      %v464 = vld [vmem:[#allocation4 + $0xf0] sm:$0xff]
      %v465 = vld [vmem:[#allocation4 + $0xf8] sm:$0xff]
      %v466 = vld [vmem:[#allocation4 + $0x100] sm:$0xff]
      %v467 = vld [vmem:[#allocation4 + $0x108] sm:$0xff]
      %v468 = vld [vmem:[#allocation4 + $0x110] sm:$0xff]
      %v469 = vld [vmem:[#allocation4 + $0x118] sm:$0xff]
      %v470 = vld [vmem:[#allocation4 + $0x120] sm:$0xff]
      %v471 = vld [vmem:[#allocation4 + $0x128] sm:$0xff]
      %v472 = vld [vmem:[#allocation4 + $0x130] sm:$0xff]
      %v473 = vld [vmem:[#allocation4 + $0x138] sm:$0xff]
      %v474 = vld [vmem:[#allocation4 + $0x140] sm:$0xff]
      %v475 = vld [vmem:[#allocation4 + $0x148] sm:$0xff]
      %v476 = vld [vmem:[#allocation4 + $0x150] sm:$0xff]
      %v477 = vld [vmem:[#allocation4 + $0x158] sm:$0xff]
      %v478 = vld [vmem:[#allocation4 + $0x160] sm:$0xff]
      %v479 = vld [vmem:[#allocation4 + $0x168] sm:$0xff]
      %v480 = vld [vmem:[#allocation4 + $0x170] sm:$0xff]
      %v481 = vld [vmem:[#allocation4 + $0x178] sm:$0xff]
      %vm482 = vcmp.eq.s32.totalorder %v386, %v325
      %vm483 = vcmp.eq.s32.totalorder %v386, %v326
      %vm484 = vcmp.eq.s32.totalorder %v386, %v327
      %vm485 = vcmp.eq.s32.totalorder %v387, %v325
      %vm486 = vcmp.eq.s32.totalorder %v387, %v326
      %vm487 = vcmp.eq.s32.totalorder %v387, %v327
      %vm488 = vcmp.eq.s32.totalorder %v388, %v325
      %vm489 = vcmp.eq.s32.totalorder %v388, %v326
      %vm490 = vcmp.eq.s32.totalorder %v388, %v327
      %vm491 = vcmp.eq.s32.totalorder %v389, %v325
      %vm492 = vcmp.eq.s32.totalorder %v389, %v326
      %vm493 = vcmp.eq.s32.totalorder %v389, %v327
      %vm494 = vcmp.eq.s32.totalorder %v390, %v325
      %vm495 = vcmp.eq.s32.totalorder %v390, %v326
      %vm496 = vcmp.eq.s32.totalorder %v390, %v327
      %vm497 = vcmp.eq.s32.totalorder %v391, %v325
      %vm498 = vcmp.eq.s32.totalorder %v391, %v326
      %vm499 = vcmp.eq.s32.totalorder %v391, %v327
      %vm500 = vcmp.eq.s32.totalorder %v392, %v325
      %vm501 = vcmp.eq.s32.totalorder %v392, %v326
      %vm502 = vcmp.eq.s32.totalorder %v392, %v327
      %vm503 = vcmp.eq.s32.totalorder %v393, %v325
      %vm504 = vcmp.eq.s32.totalorder %v393, %v326
      %vm505 = vcmp.eq.s32.totalorder %v393, %v327
      %vm506 = vcmp.eq.s32.totalorder %v394, %v325
      %vm507 = vcmp.eq.s32.totalorder %v394, %v326
      %vm508 = vcmp.eq.s32.totalorder %v394, %v327
      %vm509 = vcmp.eq.s32.totalorder %v395, %v325
      %vm510 = vcmp.eq.s32.totalorder %v395, %v326
      %vm511 = vcmp.eq.s32.totalorder %v395, %v327
      %vm512 = vcmp.eq.s32.totalorder %v396, %v325
      %vm513 = vcmp.eq.s32.totalorder %v396, %v326
      %vm514 = vcmp.eq.s32.totalorder %v396, %v327
      %vm515 = vcmp.eq.s32.totalorder %v397, %v325
      %vm516 = vcmp.eq.s32.totalorder %v397, %v326
      %vm517 = vcmp.eq.s32.totalorder %v397, %v327
      %vm518 = vcmp.eq.s32.totalorder %v398, %v325
      %vm519 = vcmp.eq.s32.totalorder %v398, %v326
      %vm520 = vcmp.eq.s32.totalorder %v398, %v327
      %vm521 = vcmp.eq.s32.totalorder %v399, %v325
      %vm522 = vcmp.eq.s32.totalorder %v399, %v326
      %vm523 = vcmp.eq.s32.totalorder %v399, %v327
      %vm524 = vcmp.eq.s32.totalorder %v400, %v325
      %vm525 = vcmp.eq.s32.totalorder %v400, %v326
      %vm526 = vcmp.eq.s32.totalorder %v400, %v327
      %vm527 = vcmp.eq.s32.totalorder %v401, %v325
      %vm528 = vcmp.eq.s32.totalorder %v401, %v326
      %vm529 = vcmp.eq.s32.totalorder %v401, %v327
      %vm530 = vcmp.eq.s32.totalorder %v402, %v325
      %vm531 = vcmp.eq.s32.totalorder %v402, %v326
      %vm532 = vcmp.eq.s32.totalorder %v402, %v327
      %vm533 = vcmp.eq.s32.totalorder %v403, %v325
      %vm534 = vcmp.eq.s32.totalorder %v403, %v326
      %vm535 = vcmp.eq.s32.totalorder %v403, %v327
      %vm536 = vcmp.eq.s32.totalorder %v404, %v325
      %vm537 = vcmp.eq.s32.totalorder %v404, %v326
      %vm538 = vcmp.eq.s32.totalorder %v404, %v327
      %vm539 = vcmp.eq.s32.totalorder %v405, %v325
      %vm540 = vcmp.eq.s32.totalorder %v405, %v326
      %vm541 = vcmp.eq.s32.totalorder %v405, %v327
      %vm542 = vcmp.eq.s32.totalorder %v406, %v325
      %vm543 = vcmp.eq.s32.totalorder %v406, %v326
      %vm544 = vcmp.eq.s32.totalorder %v406, %v327
      %vm545 = vcmp.eq.s32.totalorder %v407, %v325
      %vm546 = vcmp.eq.s32.totalorder %v407, %v326
      %vm547 = vcmp.eq.s32.totalorder %v407, %v327
      %vm548 = vcmp.eq.s32.totalorder %v408, %v325
      %vm549 = vcmp.eq.s32.totalorder %v408, %v326
      %vm550 = vcmp.eq.s32.totalorder %v408, %v327
      %vm551 = vcmp.eq.s32.totalorder %v409, %v325
      %vm552 = vcmp.eq.s32.totalorder %v409, %v326
      %vm553 = vcmp.eq.s32.totalorder %v409, %v327
      %vm554 = vcmp.eq.s32.totalorder %v410, %v325
      %vm555 = vcmp.eq.s32.totalorder %v410, %v326
      %vm556 = vcmp.eq.s32.totalorder %v410, %v327
      %vm557 = vcmp.eq.s32.totalorder %v411, %v325
      %vm558 = vcmp.eq.s32.totalorder %v411, %v326
      %vm559 = vcmp.eq.s32.totalorder %v411, %v327
      %vm560 = vcmp.eq.s32.totalorder %v412, %v325
      %vm561 = vcmp.eq.s32.totalorder %v412, %v326
      %vm562 = vcmp.eq.s32.totalorder %v412, %v327
      %vm563 = vcmp.eq.s32.totalorder %v413, %v325
      %vm564 = vcmp.eq.s32.totalorder %v413, %v326
      %vm565 = vcmp.eq.s32.totalorder %v413, %v327
      %vm566 = vcmp.eq.s32.totalorder %v414, %v325
      %vm567 = vcmp.eq.s32.totalorder %v414, %v326
      %vm568 = vcmp.eq.s32.totalorder %v414, %v327
      %vm569 = vcmp.eq.s32.totalorder %v415, %v325
      %vm570 = vcmp.eq.s32.totalorder %v415, %v326
      %vm571 = vcmp.eq.s32.totalorder %v415, %v327
      %vm572 = vcmp.eq.s32.totalorder %v416, %v325
      %vm573 = vcmp.eq.s32.totalorder %v416, %v326
      %vm574 = vcmp.eq.s32.totalorder %v416, %v327
      %vm575 = vcmp.eq.s32.totalorder %v417, %v325
      %vm576 = vcmp.eq.s32.totalorder %v417, %v326
      %vm577 = vcmp.eq.s32.totalorder %v417, %v327
      %vm578 = vcmp.eq.s32.totalorder %v418, %v325
      %vm579 = vcmp.eq.s32.totalorder %v418, %v326
      %vm580 = vcmp.eq.s32.totalorder %v418, %v327
      %vm581 = vcmp.eq.s32.totalorder %v419, %v325
      %vm582 = vcmp.eq.s32.totalorder %v419, %v326
      %vm583 = vcmp.eq.s32.totalorder %v419, %v327
      %vm584 = vcmp.eq.s32.totalorder %v420, %v325
      %vm585 = vcmp.eq.s32.totalorder %v420, %v326
      %vm586 = vcmp.eq.s32.totalorder %v420, %v327
      %vm587 = vcmp.eq.s32.totalorder %v421, %v325
      %vm588 = vcmp.eq.s32.totalorder %v421, %v326
      %vm589 = vcmp.eq.s32.totalorder %v421, %v327
      %vm590 = vcmp.eq.s32.totalorder %v422, %v325
      %vm591 = vcmp.eq.s32.totalorder %v422, %v326
      %vm592 = vcmp.eq.s32.totalorder %v422, %v327
      %vm593 = vcmp.eq.s32.totalorder %v423, %v325
      %vm594 = vcmp.eq.s32.totalorder %v423, %v326
      %vm595 = vcmp.eq.s32.totalorder %v423, %v327
      %vm596 = vcmp.eq.s32.totalorder %v424, %v325
      %vm597 = vcmp.eq.s32.totalorder %v424, %v326
      %vm598 = vcmp.eq.s32.totalorder %v424, %v327
      %vm599 = vcmp.eq.s32.totalorder %v425, %v325
      %vm600 = vcmp.eq.s32.totalorder %v425, %v326
      %vm601 = vcmp.eq.s32.totalorder %v425, %v327
      %vm602 = vcmp.eq.s32.totalorder %v426, %v325
      %vm603 = vcmp.eq.s32.totalorder %v426, %v326
      %vm604 = vcmp.eq.s32.totalorder %v426, %v327
      %vm605 = vcmp.eq.s32.totalorder %v427, %v325
      %vm606 = vcmp.eq.s32.totalorder %v427, %v326
      %vm607 = vcmp.eq.s32.totalorder %v427, %v327
      %vm608 = vcmp.eq.s32.totalorder %v428, %v325
      %vm609 = vcmp.eq.s32.totalorder %v428, %v326
      %vm610 = vcmp.eq.s32.totalorder %v428, %v327
      %vm611 = vcmp.eq.s32.totalorder %v429, %v325
      %vm612 = vcmp.eq.s32.totalorder %v429, %v326
      %vm613 = vcmp.eq.s32.totalorder %v429, %v327
      %vm614 = vcmp.eq.s32.totalorder %v430, %v325
      %vm615 = vcmp.eq.s32.totalorder %v430, %v326
      %vm616 = vcmp.eq.s32.totalorder %v430, %v327
      %vm617 = vcmp.eq.s32.totalorder %v431, %v325
      %vm618 = vcmp.eq.s32.totalorder %v431, %v326
      %vm619 = vcmp.eq.s32.totalorder %v431, %v327
      %vm620 = vcmp.eq.s32.totalorder %v432, %v325
      %vm621 = vcmp.eq.s32.totalorder %v432, %v326
      %vm622 = vcmp.eq.s32.totalorder %v432, %v327
      %vm623 = vcmp.eq.s32.totalorder %v433, %v325
      %vm624 = vcmp.eq.s32.totalorder %v433, %v326
      %vm625 = vcmp.eq.s32.totalorder %v433, %v327
      %v626 = vsel %vm482, %v176, 0.0
      %v627 = vsel %vm483, %v177, 0.0
      %v628 = vsel %vm484, %v178, 0.0
      %v629 = vsel %vm485, %v179, 0.0
      %v630 = vsel %vm486, %v180, 0.0
      %v631 = vsel %vm487, %v181, 0.0
      %v632 = vsel %vm488, %v182, 0.0
      %v633 = vsel %vm489, %v183, 0.0
      %v634 = vsel %vm490, %v184, 0.0
      %v635 = vsel %vm491, %v185, 0.0
      %v636 = vsel %vm492, %v186, 0.0
      %v637 = vsel %vm493, %v187, 0.0
      %v638 = vsel %vm494, %v188, 0.0
      %v639 = vsel %vm495, %v189, 0.0
      %v640 = vsel %vm496, %v190, 0.0
      %v641 = vsel %vm497, %v191, 0.0
      %v642 = vsel %vm498, %v192, 0.0
      %v643 = vsel %vm499, %v193, 0.0
      %v644 = vsel %vm500, %v194, 0.0
      %v645 = vsel %vm501, %v195, 0.0
      %v646 = vsel %vm502, %v196, 0.0
      %v647 = vsel %vm503, %v197, 0.0
      %v648 = vsel %vm504, %v198, 0.0
      %v649 = vsel %vm505, %v199, 0.0
      %v650 = vsel %vm506, %v200, 0.0
      %v651 = vsel %vm507, %v201, 0.0
      %v652 = vsel %vm508, %v202, 0.0
      %v653 = vsel %vm509, %v203, 0.0
      %v654 = vsel %vm510, %v204, 0.0
      %v655 = vsel %vm511, %v205, 0.0
      %v656 = vsel %vm512, %v206, 0.0
      %v657 = vsel %vm513, %v207, 0.0
      %v658 = vsel %vm514, %v208, 0.0
      %v659 = vsel %vm515, %v209, 0.0
      %v660 = vsel %vm516, %v210, 0.0
      %v661 = vsel %vm517, %v211, 0.0
      %v662 = vsel %vm518, %v212, 0.0
      %v663 = vsel %vm519, %v213, 0.0
      %v664 = vsel %vm520, %v214, 0.0
      %v665 = vsel %vm521, %v215, 0.0
      %v666 = vsel %vm522, %v216, 0.0
      %v667 = vsel %vm523, %v217, 0.0
      %v668 = vsel %vm524, %v218, 0.0
      %v669 = vsel %vm525, %v219, 0.0
      %v670 = vsel %vm526, %v220, 0.0
      %v671 = vsel %vm527, %v221, 0.0
      %v672 = vsel %vm528, %v222, 0.0
      %v673 = vsel %vm529, %v223, 0.0
      %v674 = vsel %vm530, %v224, 0.0
      %v675 = vsel %vm531, %v225, 0.0
      %v676 = vsel %vm532, %v226, 0.0
      %v677 = vsel %vm533, %v227, 0.0
      %v678 = vsel %vm534, %v228, 0.0
      %v679 = vsel %vm535, %v229, 0.0
      %v680 = vsel %vm536, %v230, 0.0
      %v681 = vsel %vm537, %v231, 0.0
      %v682 = vsel %vm538, %v232, 0.0
      %v683 = vsel %vm539, %v233, 0.0
      %v684 = vsel %vm540, %v234, 0.0
      %v685 = vsel %vm541, %v235, 0.0
      %v686 = vsel %vm542, %v236, 0.0
      %v687 = vsel %vm543, %v237, 0.0
      %v688 = vsel %vm544, %v238, 0.0
      %v689 = vsel %vm545, %v239, 0.0
      %v690 = vsel %vm546, %v240, 0.0
      %v691 = vsel %vm547, %v241, 0.0
      %v692 = vsel %vm548, %v242, 0.0
      %v693 = vsel %vm549, %v243, 0.0
      %v694 = vsel %vm550, %v244, 0.0
      %v695 = vsel %vm551, %v245, 0.0
      %v696 = vsel %vm552, %v246, 0.0
      %v697 = vsel %vm553, %v247, 0.0
      %v698 = vsel %vm554, %v248, 0.0
      %v699 = vsel %vm555, %v249, 0.0
      %v700 = vsel %vm556, %v250, 0.0
      %v701 = vsel %vm557, %v251, 0.0
      %v702 = vsel %vm558, %v252, 0.0
      %v703 = vsel %vm559, %v253, 0.0
      %v704 = vsel %vm560, %v254, 0.0
      %v705 = vsel %vm561, %v255, 0.0
      %v706 = vsel %vm562, %v256, 0.0
      %v707 = vsel %vm563, %v257, 0.0
      %v708 = vsel %vm564, %v258, 0.0
      %v709 = vsel %vm565, %v259, 0.0
      %v710 = vsel %vm566, %v260, 0.0
      %v711 = vsel %vm567, %v261, 0.0
      %v712 = vsel %vm568, %v262, 0.0
      %v713 = vsel %vm569, %v263, 0.0
      %v714 = vsel %vm570, %v264, 0.0
      %v715 = vsel %vm571, %v265, 0.0
      %v716 = vsel %vm572, %v266, 0.0
      %v717 = vsel %vm573, %v267, 0.0
      %v718 = vsel %vm574, %v268, 0.0
      %v719 = vsel %vm575, %v269, 0.0
      %v720 = vsel %vm576, %v270, 0.0
      %v721 = vsel %vm577, %v271, 0.0
      %v722 = vsel %vm578, %v272, 0.0
      %v723 = vsel %vm579, %v273, 0.0
      %v724 = vsel %vm580, %v274, 0.0
      %v725 = vsel %vm581, %v275, 0.0
      %v726 = vsel %vm582, %v276, 0.0
      %v727 = vsel %vm583, %v277, 0.0
      %v728 = vsel %vm584, %v278, 0.0
      %v729 = vsel %vm585, %v279, 0.0
      %v730 = vsel %vm586, %v280, 0.0
      %v731 = vsel %vm587, %v281, 0.0
      %v732 = vsel %vm588, %v282, 0.0
      %v733 = vsel %vm589, %v283, 0.0
      %v734 = vsel %vm590, %v284, 0.0
      %v735 = vsel %vm591, %v285, 0.0
      %v736 = vsel %vm592, %v286, 0.0
      %v737 = vsel %vm593, %v287, 0.0
      %v738 = vsel %vm594, %v288, 0.0
      %v739 = vsel %vm595, %v289, 0.0
      %v740 = vsel %vm596, %v290, 0.0
      %v741 = vsel %vm597, %v291, 0.0
      %v742 = vsel %vm598, %v292, 0.0
      %v743 = vsel %vm599, %v293, 0.0
      %v744 = vsel %vm600, %v294, 0.0
      %v745 = vsel %vm601, %v295, 0.0
      %v746 = vsel %vm602, %v296, 0.0
      %v747 = vsel %vm603, %v297, 0.0
      %v748 = vsel %vm604, %v298, 0.0
      %v749 = vsel %vm605, %v299, 0.0
      %v750 = vsel %vm606, %v300, 0.0
      %v751 = vsel %vm607, %v301, 0.0
      %v752 = vsel %vm608, %v302, 0.0
      %v753 = vsel %vm609, %v303, 0.0
      %v754 = vsel %vm610, %v304, 0.0
      %v755 = vsel %vm611, %v305, 0.0
      %v756 = vsel %vm612, %v306, 0.0
      %v757 = vsel %vm613, %v307, 0.0
      %v758 = vsel %vm614, %v308, 0.0
      %v759 = vsel %vm615, %v309, 0.0
      %v760 = vsel %vm616, %v310, 0.0
      %v761 = vsel %vm617, %v311, 0.0
      %v762 = vsel %vm618, %v312, 0.0
      %v763 = vsel %vm619, %v313, 0.0
      %v764 = vsel %vm620, %v314, 0.0
      %v765 = vsel %vm621, %v315, 0.0
      %v766 = vsel %vm622, %v316, 0.0
      %v767 = vsel %vm623, %v317, 0.0
      %v768 = vsel %vm624, %v318, 0.0
      %v769 = vsel %vm625, %v319, 0.0
      %v770 = vadd.f32 %v626, %v627
      %v771 = vadd.f32 %v770, %v628
      %772 = vadd.xlane.f32.xlu0 %v771
      %v773 = vpop.xlane.xlu0 %772
      %v774 = vadd.f32 %v629, %v630
      %v775 = vadd.f32 %v774, %v631
      %776 = vadd.xlane.f32.xlu0 %v775
      %v777 = vpop.xlane.xlu0 %776
      %v778 = vadd.f32 %v632, %v633
      %v779 = vadd.f32 %v778, %v634
      %780 = vadd.xlane.f32.xlu0 %v779
      %v781 = vpop.xlane.xlu0 %780
      %v782 = vadd.f32 %v635, %v636
      %v783 = vadd.f32 %v782, %v637
      %784 = vadd.xlane.f32.xlu0 %v783
      %v785 = vpop.xlane.xlu0 %784
      %v786 = vadd.f32 %v638, %v639
      %v787 = vadd.f32 %v786, %v640
      %788 = vadd.xlane.f32.xlu0 %v787
      %v789 = vpop.xlane.xlu0 %788
      %v790 = vadd.f32 %v641, %v642
      %v791 = vadd.f32 %v790, %v643
      %792 = vadd.xlane.f32.xlu0 %v791
      %v793 = vpop.xlane.xlu0 %792
      %v794 = vadd.f32 %v644, %v645
      %v795 = vadd.f32 %v794, %v646
      %796 = vadd.xlane.f32.xlu0 %v795
      %v797 = vpop.xlane.xlu0 %796
      %v798 = vadd.f32 %v647, %v648
      %v799 = vadd.f32 %v798, %v649
      %800 = vadd.xlane.f32.xlu0 %v799
      %v801 = vpop.xlane.xlu0 %800
      %v802 = vadd.f32 %v650, %v651
      %v803 = vadd.f32 %v802, %v652
      %804 = vadd.xlane.f32.xlu0 %v803
      %v805 = vpop.xlane.xlu0 %804
      %v806 = vadd.f32 %v653, %v654
      %v807 = vadd.f32 %v806, %v655
      %808 = vadd.xlane.f32.xlu0 %v807
      %v809 = vpop.xlane.xlu0 %808
      %v810 = vadd.f32 %v656, %v657
      %v811 = vadd.f32 %v810, %v658
      %812 = vadd.xlane.f32.xlu0 %v811
      %v813 = vpop.xlane.xlu0 %812
      %v814 = vadd.f32 %v659, %v660
      %v815 = vadd.f32 %v814, %v661
      %816 = vadd.xlane.f32.xlu0 %v815
      %v817 = vpop.xlane.xlu0 %816
      %v818 = vadd.f32 %v662, %v663
      %v819 = vadd.f32 %v818, %v664
      %820 = vadd.xlane.f32.xlu0 %v819
      %v821 = vpop.xlane.xlu0 %820
      %v822 = vadd.f32 %v665, %v666
      %v823 = vadd.f32 %v822, %v667
      %824 = vadd.xlane.f32.xlu0 %v823
      %v825 = vpop.xlane.xlu0 %824
      %v826 = vadd.f32 %v668, %v669
      %v827 = vadd.f32 %v826, %v670
      %828 = vadd.xlane.f32.xlu0 %v827
      %v829 = vpop.xlane.xlu0 %828
      %v830 = vadd.f32 %v671, %v672
      %v831 = vadd.f32 %v830, %v673
      %832 = vadd.xlane.f32.xlu0 %v831
      %v833 = vpop.xlane.xlu0 %832
      %v834 = vadd.f32 %v674, %v675
      %v835 = vadd.f32 %v834, %v676
      %836 = vadd.xlane.f32.xlu0 %v835
      %v837 = vpop.xlane.xlu0 %836
      %v838 = vadd.f32 %v677, %v678
      %v839 = vadd.f32 %v838, %v679
      %840 = vadd.xlane.f32.xlu0 %v839
      %v841 = vpop.xlane.xlu0 %840
      %v842 = vadd.f32 %v680, %v681
      %v843 = vadd.f32 %v842, %v682
      %844 = vadd.xlane.f32.xlu0 %v843
      %v845 = vpop.xlane.xlu0 %844
      %v846 = vadd.f32 %v683, %v684
      %v847 = vadd.f32 %v846, %v685
      %848 = vadd.xlane.f32.xlu0 %v847
      %v849 = vpop.xlane.xlu0 %848
      %v850 = vadd.f32 %v686, %v687
      %v851 = vadd.f32 %v850, %v688
      %852 = vadd.xlane.f32.xlu0 %v851
      %v853 = vpop.xlane.xlu0 %852
      %v854 = vadd.f32 %v689, %v690
      %v855 = vadd.f32 %v854, %v691
      %856 = vadd.xlane.f32.xlu0 %v855
      %v857 = vpop.xlane.xlu0 %856
      %v858 = vadd.f32 %v692, %v693
      %v859 = vadd.f32 %v858, %v694
      %860 = vadd.xlane.f32.xlu0 %v859
      %v861 = vpop.xlane.xlu0 %860
      %v862 = vadd.f32 %v695, %v696
      %v863 = vadd.f32 %v862, %v697
      %864 = vadd.xlane.f32.xlu0 %v863
      %v865 = vpop.xlane.xlu0 %864
      %v866 = vadd.f32 %v698, %v699
      %v867 = vadd.f32 %v866, %v700
      %868 = vadd.xlane.f32.xlu0 %v867
      %v869 = vpop.xlane.xlu0 %868
      %v870 = vadd.f32 %v701, %v702
      %v871 = vadd.f32 %v870, %v703
      %872 = vadd.xlane.f32.xlu0 %v871
      %v873 = vpop.xlane.xlu0 %872
      %v874 = vadd.f32 %v704, %v705
      %v875 = vadd.f32 %v874, %v706
      %876 = vadd.xlane.f32.xlu0 %v875
      %v877 = vpop.xlane.xlu0 %876
      %v878 = vadd.f32 %v707, %v708
      %v879 = vadd.f32 %v878, %v709
      %880 = vadd.xlane.f32.xlu0 %v879
      %v881 = vpop.xlane.xlu0 %880
      %v882 = vadd.f32 %v710, %v711
      %v883 = vadd.f32 %v882, %v712
      %884 = vadd.xlane.f32.xlu0 %v883
      %v885 = vpop.xlane.xlu0 %884
      %v886 = vadd.f32 %v713, %v714
      %v887 = vadd.f32 %v886, %v715
      %888 = vadd.xlane.f32.xlu0 %v887
      %v889 = vpop.xlane.xlu0 %888
      %v890 = vadd.f32 %v716, %v717
      %v891 = vadd.f32 %v890, %v718
      %892 = vadd.xlane.f32.xlu0 %v891
      %v893 = vpop.xlane.xlu0 %892
      %v894 = vadd.f32 %v719, %v720
      %v895 = vadd.f32 %v894, %v721
      %896 = vadd.xlane.f32.xlu0 %v895
      %v897 = vpop.xlane.xlu0 %896
      %v898 = vadd.f32 %v722, %v723
      %v899 = vadd.f32 %v898, %v724
      %900 = vadd.xlane.f32.xlu0 %v899
      %v901 = vpop.xlane.xlu0 %900
      %v902 = vadd.f32 %v725, %v726
      %v903 = vadd.f32 %v902, %v727
      %904 = vadd.xlane.f32.xlu0 %v903
      %v905 = vpop.xlane.xlu0 %904
      %v906 = vadd.f32 %v728, %v729
      %v907 = vadd.f32 %v906, %v730
      %908 = vadd.xlane.f32.xlu0 %v907
      %v909 = vpop.xlane.xlu0 %908
      %v910 = vadd.f32 %v731, %v732
      %v911 = vadd.f32 %v910, %v733
      %912 = vadd.xlane.f32.xlu0 %v911
      %v913 = vpop.xlane.xlu0 %912
      %v914 = vadd.f32 %v734, %v735
      %v915 = vadd.f32 %v914, %v736
      %916 = vadd.xlane.f32.xlu0 %v915
      %v917 = vpop.xlane.xlu0 %916
      %v918 = vadd.f32 %v737, %v738
      %v919 = vadd.f32 %v918, %v739
      %920 = vadd.xlane.f32.xlu0 %v919
      %v921 = vpop.xlane.xlu0 %920
      %v922 = vadd.f32 %v740, %v741
      %v923 = vadd.f32 %v922, %v742
      %924 = vadd.xlane.f32.xlu0 %v923
      %v925 = vpop.xlane.xlu0 %924
      %v926 = vadd.f32 %v743, %v744
      %v927 = vadd.f32 %v926, %v745
      %928 = vadd.xlane.f32.xlu0 %v927
      %v929 = vpop.xlane.xlu0 %928
      %v930 = vadd.f32 %v746, %v747
      %v931 = vadd.f32 %v930, %v748
      %932 = vadd.xlane.f32.xlu0 %v931
      %v933 = vpop.xlane.xlu0 %932
      %v934 = vadd.f32 %v749, %v750
      %v935 = vadd.f32 %v934, %v751
      %936 = vadd.xlane.f32.xlu0 %v935
      %v937 = vpop.xlane.xlu0 %936
      %v938 = vadd.f32 %v752, %v753
      %v939 = vadd.f32 %v938, %v754
      %940 = vadd.xlane.f32.xlu0 %v939
      %v941 = vpop.xlane.xlu0 %940
      %v942 = vadd.f32 %v755, %v756
      %v943 = vadd.f32 %v942, %v757
      %944 = vadd.xlane.f32.xlu0 %v943
      %v945 = vpop.xlane.xlu0 %944
      %v946 = vadd.f32 %v758, %v759
      %v947 = vadd.f32 %v946, %v760
      %948 = vadd.xlane.f32.xlu0 %v947
      %v949 = vpop.xlane.xlu0 %948
      %v950 = vadd.f32 %v761, %v762
      %v951 = vadd.f32 %v950, %v763
      %952 = vadd.xlane.f32.xlu0 %v951
      %v953 = vpop.xlane.xlu0 %952
      %v954 = vadd.f32 %v764, %v765
      %v955 = vadd.f32 %v954, %v766
      %956 = vadd.xlane.f32.xlu0 %v955
      %v957 = vpop.xlane.xlu0 %956
      %v958 = vadd.f32 %v767, %v768
      %v959 = vadd.f32 %v958, %v769
      %960 = vadd.xlane.f32.xlu0 %v959
      %v961 = vpop.xlane.xlu0 %960
      %v962 = vadd.f32 %v434, %v773
      %v963 = vadd.f32 %v435, %v777
      %v964 = vadd.f32 %v436, %v781
      %v965 = vadd.f32 %v437, %v785
      %v966 = vadd.f32 %v438, %v789
      %v967 = vadd.f32 %v439, %v793
      %v968 = vadd.f32 %v440, %v797
      %v969 = vadd.f32 %v441, %v801
      %v970 = vadd.f32 %v442, %v805
      %v971 = vadd.f32 %v443, %v809
      %v972 = vadd.f32 %v444, %v813
      %v973 = vadd.f32 %v445, %v817
      %v974 = vadd.f32 %v446, %v821
      %v975 = vadd.f32 %v447, %v825
      %v976 = vadd.f32 %v448, %v829
      %v977 = vadd.f32 %v449, %v833
      %v978 = vadd.f32 %v450, %v837
      %v979 = vadd.f32 %v451, %v841
      %v980 = vadd.f32 %v452, %v845
      %v981 = vadd.f32 %v453, %v849
      %v982 = vadd.f32 %v454, %v853
      %v983 = vadd.f32 %v455, %v857
      %v984 = vadd.f32 %v456, %v861
      %v985 = vadd.f32 %v457, %v865
      %v986 = vadd.f32 %v458, %v869
      %v987 = vadd.f32 %v459, %v873
      %v988 = vadd.f32 %v460, %v877
      %v989 = vadd.f32 %v461, %v881
      %v990 = vadd.f32 %v462, %v885
      %v991 = vadd.f32 %v463, %v889
      %v992 = vadd.f32 %v464, %v893
      %v993 = vadd.f32 %v465, %v897
      %v994 = vadd.f32 %v466, %v901
      %v995 = vadd.f32 %v467, %v905
      %v996 = vadd.f32 %v468, %v909
      %v997 = vadd.f32 %v469, %v913
      %v998 = vadd.f32 %v470, %v917
      %v999 = vadd.f32 %v471, %v921
      %v1000 = vadd.f32 %v472, %v925
      %v1001 = vadd.f32 %v473, %v929
      %v1002 = vadd.f32 %v474, %v933
      %v1003 = vadd.f32 %v475, %v937
      %v1004 = vadd.f32 %v476, %v941
      %v1005 = vadd.f32 %v477, %v945
      %v1006 = vadd.f32 %v478, %v949
      %v1007 = vadd.f32 %v479, %v953
      %v1008 = vadd.f32 %v480, %v957
      %v1009 = vadd.f32 %v481, %v961
      %vm1010 = vcmask 7168
      %1011 = vst.msk [vmem:[#allocation4] sm:$0xff] %vm1010, %v962
      %1012 = vst.msk [vmem:[#allocation4 + $0x8] sm:$0xff] %vm1010, %v963
      %1013 = vst.msk [vmem:[#allocation4 + $0x10] sm:$0xff] %vm1010, %v964
      %1014 = vst.msk [vmem:[#allocation4 + $0x18] sm:$0xff] %vm1010, %v965
      %1015 = vst.msk [vmem:[#allocation4 + $0x20] sm:$0xff] %vm1010, %v966
      %1016 = vst.msk [vmem:[#allocation4 + $0x28] sm:$0xff] %vm1010, %v967
      %1017 = vst.msk [vmem:[#allocation4 + $0x30] sm:$0xff] %vm1010, %v968
      %1018 = vst.msk [vmem:[#allocation4 + $0x38] sm:$0xff] %vm1010, %v969
      %1019 = vst.msk [vmem:[#allocation4 + $0x40] sm:$0xff] %vm1010, %v970
      %1020 = vst.msk [vmem:[#allocation4 + $0x48] sm:$0xff] %vm1010, %v971
      %1021 = vst.msk [vmem:[#allocation4 + $0x50] sm:$0xff] %vm1010, %v972
      %1022 = vst.msk [vmem:[#allocation4 + $0x58] sm:$0xff] %vm1010, %v973
      %1023 = vst.msk [vmem:[#allocation4 + $0x60] sm:$0xff] %vm1010, %v974
      %1024 = vst.msk [vmem:[#allocation4 + $0x68] sm:$0xff] %vm1010, %v975
      %1025 = vst.msk [vmem:[#allocation4 + $0x70] sm:$0xff] %vm1010, %v976
      %1026 = vst.msk [vmem:[#allocation4 + $0x78] sm:$0xff] %vm1010, %v977
      %1027 = vst.msk [vmem:[#allocation4 + $0x80] sm:$0xff] %vm1010, %v978
      %1028 = vst.msk [vmem:[#allocation4 + $0x88] sm:$0xff] %vm1010, %v979
      %1029 = vst.msk [vmem:[#allocation4 + $0x90] sm:$0xff] %vm1010, %v980
      %1030 = vst.msk [vmem:[#allocation4 + $0x98] sm:$0xff] %vm1010, %v981
      %1031 = vst.msk [vmem:[#allocation4 + $0xa0] sm:$0xff] %vm1010, %v982
      %1032 = vst.msk [vmem:[#allocation4 + $0xa8] sm:$0xff] %vm1010, %v983
      %1033 = vst.msk [vmem:[#allocation4 + $0xb0] sm:$0xff] %vm1010, %v984
      %1034 = vst.msk [vmem:[#allocation4 + $0xb8] sm:$0xff] %vm1010, %v985
      %1035 = vst.msk [vmem:[#allocation4 + $0xc0] sm:$0xff] %vm1010, %v986
      %1036 = vst.msk [vmem:[#allocation4 + $0xc8] sm:$0xff] %vm1010, %v987
      %1037 = vst.msk [vmem:[#allocation4 + $0xd0] sm:$0xff] %vm1010, %v988
      %1038 = vst.msk [vmem:[#allocation4 + $0xd8] sm:$0xff] %vm1010, %v989
      %1039 = vst.msk [vmem:[#allocation4 + $0xe0] sm:$0xff] %vm1010, %v990
      %1040 = vst.msk [vmem:[#allocation4 + $0xe8] sm:$0xff] %vm1010, %v991
      %1041 = vst.msk [vmem:[#allocation4 + $0xf0] sm:$0xff] %vm1010, %v992
      %1042 = vst.msk [vmem:[#allocation4 + $0xf8] sm:$0xff] %vm1010, %v993
      %1043 = vst.msk [vmem:[#allocation4 + $0x100] sm:$0xff] %vm1010, %v994
      %1044 = vst.msk [vmem:[#allocation4 + $0x108] sm:$0xff] %vm1010, %v995
      %1045 = vst.msk [vmem:[#allocation4 + $0x110] sm:$0xff] %vm1010, %v996
      %1046 = vst.msk [vmem:[#allocation4 + $0x118] sm:$0xff] %vm1010, %v997
      %1047 = vst.msk [vmem:[#allocation4 + $0x120] sm:$0xff] %vm1010, %v998
      %1048 = vst.msk [vmem:[#allocation4 + $0x128] sm:$0xff] %vm1010, %v999
      %1049 = vst.msk [vmem:[#allocation4 + $0x130] sm:$0xff] %vm1010, %v1000
      %1050 = vst.msk [vmem:[#allocation4 + $0x138] sm:$0xff] %vm1010, %v1001
      %1051 = vst.msk [vmem:[#allocation4 + $0x140] sm:$0xff] %vm1010, %v1002
      %1052 = vst.msk [vmem:[#allocation4 + $0x148] sm:$0xff] %vm1010, %v1003
      %1053 = vst.msk [vmem:[#allocation4 + $0x150] sm:$0xff] %vm1010, %v1004
      %1054 = vst.msk [vmem:[#allocation4 + $0x158] sm:$0xff] %vm1010, %v1005
      %1055 = vst.msk [vmem:[#allocation4 + $0x160] sm:$0xff] %vm1010, %v1006
      %1056 = vst.msk [vmem:[#allocation4 + $0x168] sm:$0xff] %vm1010, %v1007
      %1057 = vst.msk [vmem:[#allocation4 + $0x170] sm:$0xff] %vm1010, %v1008
      %1058 = vst.msk [vmem:[#allocation4 + $0x178] sm:$0xff] %vm1010, %v1009
    $region17: #{tpu_custom_call.1} parent=1 // pred_fallthru
      _
    %v1059 = vmax.f32 %v176, %v177
    %v1060 = vmax.f32 %v1059, %v178
    %1061 = vmax.xlane.f32.xlu0 %v1060
    %v1062 = vpop.xlane.xlu0 %1061
    %v1063 = vmax.f32 %v179, %v180
    %v1064 = vmax.f32 %v1063, %v181
    %1065 = vmax.xlane.f32.xlu0 %v1064
    %v1066 = vpop.xlane.xlu0 %1065
    %v1067 = vmax.f32 %v182, %v183
    %v1068 = vmax.f32 %v1067, %v184
    %1069 = vmax.xlane.f32.xlu0 %v1068
    %v1070 = vpop.xlane.xlu0 %1069
    %v1071 = vmax.f32 %v185, %v186
    %v1072 = vmax.f32 %v1071, %v187
    %1073 = vmax.xlane.f32.xlu0 %v1072
    %v1074 = vpop.xlane.xlu0 %1073
    %v1075 = vmax.f32 %v188, %v189
    %v1076 = vmax.f32 %v1075, %v190
    %1077 = vmax.xlane.f32.xlu0 %v1076
    %v1078 = vpop.xlane.xlu0 %1077
    %v1079 = vmax.f32 %v191, %v192
    %v1080 = vmax.f32 %v1079, %v193
    %1081 = vmax.xlane.f32.xlu0 %v1080
    %v1082 = vpop.xlane.xlu0 %1081
    %v1083 = vmax.f32 %v194, %v195
    %v1084 = vmax.f32 %v1083, %v196
    %1085 = vmax.xlane.f32.xlu0 %v1084
    %v1086 = vpop.xlane.xlu0 %1085
    %v1087 = vmax.f32 %v197, %v198
    %v1088 = vmax.f32 %v1087, %v199
    %1089 = vmax.xlane.f32.xlu0 %v1088
    %v1090 = vpop.xlane.xlu0 %1089
    %v1091 = vmax.f32 %v200, %v201
    %v1092 = vmax.f32 %v1091, %v202
    %1093 = vmax.xlane.f32.xlu0 %v1092
    %v1094 = vpop.xlane.xlu0 %1093
    %v1095 = vmax.f32 %v203, %v204
    %v1096 = vmax.f32 %v1095, %v205
    %1097 = vmax.xlane.f32.xlu0 %v1096
    %v1098 = vpop.xlane.xlu0 %1097
    %v1099 = vmax.f32 %v206, %v207
    %v1100 = vmax.f32 %v1099, %v208
    %1101 = vmax.xlane.f32.xlu0 %v1100
    %v1102 = vpop.xlane.xlu0 %1101
    %v1103 = vmax.f32 %v209, %v210
    %v1104 = vmax.f32 %v1103, %v211
    %1105 = vmax.xlane.f32.xlu0 %v1104
    %v1106 = vpop.xlane.xlu0 %1105
    %v1107 = vmax.f32 %v212, %v213
    %v1108 = vmax.f32 %v1107, %v214
    %1109 = vmax.xlane.f32.xlu0 %v1108
    %v1110 = vpop.xlane.xlu0 %1109
    %v1111 = vmax.f32 %v215, %v216
    %v1112 = vmax.f32 %v1111, %v217
    %1113 = vmax.xlane.f32.xlu0 %v1112
    %v1114 = vpop.xlane.xlu0 %1113
    %v1115 = vmax.f32 %v218, %v219
    %v1116 = vmax.f32 %v1115, %v220
    %1117 = vmax.xlane.f32.xlu0 %v1116
    %v1118 = vpop.xlane.xlu0 %1117
    %v1119 = vmax.f32 %v221, %v222
    %v1120 = vmax.f32 %v1119, %v223
    %1121 = vmax.xlane.f32.xlu0 %v1120
    %v1122 = vpop.xlane.xlu0 %1121
    %v1123 = vmax.f32 %v224, %v225
    %v1124 = vmax.f32 %v1123, %v226
    %1125 = vmax.xlane.f32.xlu0 %v1124
    %v1126 = vpop.xlane.xlu0 %1125
    %v1127 = vmax.f32 %v227, %v228
    %v1128 = vmax.f32 %v1127, %v229
    %1129 = vmax.xlane.f32.xlu0 %v1128
    %v1130 = vpop.xlane.xlu0 %1129
    %v1131 = vmax.f32 %v230, %v231
    %v1132 = vmax.f32 %v1131, %v232
    %1133 = vmax.xlane.f32.xlu0 %v1132
    %v1134 = vpop.xlane.xlu0 %1133
    %v1135 = vmax.f32 %v233, %v234
    %v1136 = vmax.f32 %v1135, %v235
    %1137 = vmax.xlane.f32.xlu0 %v1136
    %v1138 = vpop.xlane.xlu0 %1137
    %v1139 = vmax.f32 %v236, %v237
    %v1140 = vmax.f32 %v1139, %v238
    %1141 = vmax.xlane.f32.xlu0 %v1140
    %v1142 = vpop.xlane.xlu0 %1141
    %v1143 = vmax.f32 %v239, %v240
    %v1144 = vmax.f32 %v1143, %v241
    %1145 = vmax.xlane.f32.xlu0 %v1144
    %v1146 = vpop.xlane.xlu0 %1145
    %v1147 = vmax.f32 %v242, %v243
    %v1148 = vmax.f32 %v1147, %v244
    %1149 = vmax.xlane.f32.xlu0 %v1148
    %v1150 = vpop.xlane.xlu0 %1149
    %v1151 = vmax.f32 %v245, %v246
    %v1152 = vmax.f32 %v1151, %v247
    %1153 = vmax.xlane.f32.xlu0 %v1152
    %v1154 = vpop.xlane.xlu0 %1153
    %v1155 = vmax.f32 %v248, %v249
    %v1156 = vmax.f32 %v1155, %v250
    %1157 = vmax.xlane.f32.xlu0 %v1156
    %v1158 = vpop.xlane.xlu0 %1157
    %v1159 = vmax.f32 %v251, %v252
    %v1160 = vmax.f32 %v1159, %v253
    %1161 = vmax.xlane.f32.xlu0 %v1160
    %v1162 = vpop.xlane.xlu0 %1161
    %v1163 = vmax.f32 %v254, %v255
    %v1164 = vmax.f32 %v1163, %v256
    %1165 = vmax.xlane.f32.xlu0 %v1164
    %v1166 = vpop.xlane.xlu0 %1165
    %v1167 = vmax.f32 %v257, %v258
    %v1168 = vmax.f32 %v1167, %v259
    %1169 = vmax.xlane.f32.xlu0 %v1168
    %v1170 = vpop.xlane.xlu0 %1169
    %v1171 = vmax.f32 %v260, %v261
    %v1172 = vmax.f32 %v1171, %v262
    %1173 = vmax.xlane.f32.xlu0 %v1172
    %v1174 = vpop.xlane.xlu0 %1173
    %v1175 = vmax.f32 %v263, %v264
    %v1176 = vmax.f32 %v1175, %v265
    %1177 = vmax.xlane.f32.xlu0 %v1176
    %v1178 = vpop.xlane.xlu0 %1177
    %v1179 = vmax.f32 %v266, %v267
    %v1180 = vmax.f32 %v1179, %v268
    %1181 = vmax.xlane.f32.xlu0 %v1180
    %v1182 = vpop.xlane.xlu0 %1181
    %v1183 = vmax.f32 %v269, %v270
    %v1184 = vmax.f32 %v1183, %v271
    %1185 = vmax.xlane.f32.xlu0 %v1184
    %v1186 = vpop.xlane.xlu0 %1185
    %v1187 = vmax.f32 %v272, %v273
    %v1188 = vmax.f32 %v1187, %v274
    %1189 = vmax.xlane.f32.xlu0 %v1188
    %v1190 = vpop.xlane.xlu0 %1189
    %v1191 = vmax.f32 %v275, %v276
    %v1192 = vmax.f32 %v1191, %v277
    %1193 = vmax.xlane.f32.xlu0 %v1192
    %v1194 = vpop.xlane.xlu0 %1193
    %v1195 = vmax.f32 %v278, %v279
    %v1196 = vmax.f32 %v1195, %v280
    %1197 = vmax.xlane.f32.xlu0 %v1196
    %v1198 = vpop.xlane.xlu0 %1197
    %v1199 = vmax.f32 %v281, %v282
    %v1200 = vmax.f32 %v1199, %v283
    %1201 = vmax.xlane.f32.xlu0 %v1200
    %v1202 = vpop.xlane.xlu0 %1201
    %v1203 = vmax.f32 %v284, %v285
    %v1204 = vmax.f32 %v1203, %v286
    %1205 = vmax.xlane.f32.xlu0 %v1204
    %v1206 = vpop.xlane.xlu0 %1205
    %v1207 = vmax.f32 %v287, %v288
    %v1208 = vmax.f32 %v1207, %v289
    %1209 = vmax.xlane.f32.xlu0 %v1208
    %v1210 = vpop.xlane.xlu0 %1209
    %v1211 = vmax.f32 %v290, %v291
    %v1212 = vmax.f32 %v1211, %v292
    %1213 = vmax.xlane.f32.xlu0 %v1212
    %v1214 = vpop.xlane.xlu0 %1213
    %v1215 = vmax.f32 %v293, %v294
    %v1216 = vmax.f32 %v1215, %v295
    %1217 = vmax.xlane.f32.xlu0 %v1216
    %v1218 = vpop.xlane.xlu0 %1217
    %v1219 = vmax.f32 %v296, %v297
    %v1220 = vmax.f32 %v1219, %v298
    %1221 = vmax.xlane.f32.xlu0 %v1220
    %v1222 = vpop.xlane.xlu0 %1221
    %v1223 = vmax.f32 %v299, %v300
    %v1224 = vmax.f32 %v1223, %v301
    %1225 = vmax.xlane.f32.xlu0 %v1224
    %v1226 = vpop.xlane.xlu0 %1225
    %v1227 = vmax.f32 %v302, %v303
    %v1228 = vmax.f32 %v1227, %v304
    %1229 = vmax.xlane.f32.xlu0 %v1228
    %v1230 = vpop.xlane.xlu0 %1229
    %v1231 = vmax.f32 %v305, %v306
    %v1232 = vmax.f32 %v1231, %v307
    %1233 = vmax.xlane.f32.xlu0 %v1232
    %v1234 = vpop.xlane.xlu0 %1233
    %v1235 = vmax.f32 %v308, %v309
    %v1236 = vmax.f32 %v1235, %v310
    %1237 = vmax.xlane.f32.xlu0 %v1236
    %v1238 = vpop.xlane.xlu0 %1237
    %v1239 = vmax.f32 %v311, %v312
    %v1240 = vmax.f32 %v1239, %v313
    %1241 = vmax.xlane.f32.xlu0 %v1240
    %v1242 = vpop.xlane.xlu0 %1241
    %v1243 = vmax.f32 %v314, %v315
    %v1244 = vmax.f32 %v1243, %v316
    %1245 = vmax.xlane.f32.xlu0 %v1244
    %v1246 = vpop.xlane.xlu0 %1245
    %v1247 = vmax.f32 %v317, %v318
    %v1248 = vmax.f32 %v1247, %v319
    %1249 = vmax.xlane.f32.xlu0 %v1248
    %v1250 = vpop.xlane.xlu0 %1249
    %v1251 = vld [vmem:[#allocation2] sm:$0xff]
    %v1252 = vld [vmem:[#allocation2 + $0x8] sm:$0xff]
    %v1253 = vld [vmem:[#allocation2 + $0x10] sm:$0xff]
    %v1254 = vld [vmem:[#allocation2 + $0x18] sm:$0xff]
    %v1255 = vld [vmem:[#allocation2 + $0x20] sm:$0xff]
    %v1256 = vld [vmem:[#allocation2 + $0x28] sm:$0xff]
    %v1257 = vld [vmem:[#allocation2 + $0x30] sm:$0xff]
    %v1258 = vld [vmem:[#allocation2 + $0x38] sm:$0xff]
    %v1259 = vld [vmem:[#allocation2 + $0x40] sm:$0xff]
    %v1260 = vld [vmem:[#allocation2 + $0x48] sm:$0xff]
    %v1261 = vld [vmem:[#allocation2 + $0x50] sm:$0xff]
    %v1262 = vld [vmem:[#allocation2 + $0x58] sm:$0xff]
    %v1263 = vld [vmem:[#allocation2 + $0x60] sm:$0xff]
    %v1264 = vld [vmem:[#allocation2 + $0x68] sm:$0xff]
    %v1265 = vld [vmem:[#allocation2 + $0x70] sm:$0xff]
    %v1266 = vld [vmem:[#allocation2 + $0x78] sm:$0xff]
    %v1267 = vld [vmem:[#allocation2 + $0x80] sm:$0xff]
    %v1268 = vld [vmem:[#allocation2 + $0x88] sm:$0xff]
    %v1269 = vld [vmem:[#allocation2 + $0x90] sm:$0xff]
    %v1270 = vld [vmem:[#allocation2 + $0x98] sm:$0xff]
    %v1271 = vld [vmem:[#allocation2 + $0xa0] sm:$0xff]
    %v1272 = vld [vmem:[#allocation2 + $0xa8] sm:$0xff]
    %v1273 = vld [vmem:[#allocation2 + $0xb0] sm:$0xff]
    %v1274 = vld [vmem:[#allocation2 + $0xb8] sm:$0xff]
    %v1275 = vld [vmem:[#allocation2 + $0xc0] sm:$0xff]
    %v1276 = vld [vmem:[#allocation2 + $0xc8] sm:$0xff]
    %v1277 = vld [vmem:[#allocation2 + $0xd0] sm:$0xff]
    %v1278 = vld [vmem:[#allocation2 + $0xd8] sm:$0xff]
    %v1279 = vld [vmem:[#allocation2 + $0xe0] sm:$0xff]
    %v1280 = vld [vmem:[#allocation2 + $0xe8] sm:$0xff]
    %v1281 = vld [vmem:[#allocation2 + $0xf0] sm:$0xff]
    %v1282 = vld [vmem:[#allocation2 + $0xf8] sm:$0xff]
    %v1283 = vld [vmem:[#allocation2 + $0x100] sm:$0xff]
    %v1284 = vld [vmem:[#allocation2 + $0x108] sm:$0xff]
    %v1285 = vld [vmem:[#allocation2 + $0x110] sm:$0xff]
    %v1286 = vld [vmem:[#allocation2 + $0x118] sm:$0xff]
    %v1287 = vld [vmem:[#allocation2 + $0x120] sm:$0xff]
    %v1288 = vld [vmem:[#allocation2 + $0x128] sm:$0xff]
    %v1289 = vld [vmem:[#allocation2 + $0x130] sm:$0xff]
    %v1290 = vld [vmem:[#allocation2 + $0x138] sm:$0xff]
    %v1291 = vld [vmem:[#allocation2 + $0x140] sm:$0xff]
    %v1292 = vld [vmem:[#allocation2 + $0x148] sm:$0xff]
    %v1293 = vld [vmem:[#allocation2 + $0x150] sm:$0xff]
    %v1294 = vld [vmem:[#allocation2 + $0x158] sm:$0xff]
    %v1295 = vld [vmem:[#allocation2 + $0x160] sm:$0xff]
    %v1296 = vld [vmem:[#allocation2 + $0x168] sm:$0xff]
    %v1297 = vld [vmem:[#allocation2 + $0x170] sm:$0xff]
    %v1298 = vld [vmem:[#allocation2 + $0x178] sm:$0xff]
    %v1299 = vmax.f32 %v1251, %v1062
    %v1300 = vmax.f32 %v1252, %v1066
    %v1301 = vmax.f32 %v1253, %v1070
    %v1302 = vmax.f32 %v1254, %v1074
    %v1303 = vmax.f32 %v1255, %v1078
    %v1304 = vmax.f32 %v1256, %v1082
    %v1305 = vmax.f32 %v1257, %v1086
    %v1306 = vmax.f32 %v1258, %v1090
    %v1307 = vmax.f32 %v1259, %v1094
    %v1308 = vmax.f32 %v1260, %v1098
    %v1309 = vmax.f32 %v1261, %v1102
    %v1310 = vmax.f32 %v1262, %v1106
    %v1311 = vmax.f32 %v1263, %v1110
    %v1312 = vmax.f32 %v1264, %v1114
    %v1313 = vmax.f32 %v1265, %v1118
    %v1314 = vmax.f32 %v1266, %v1122
    %v1315 = vmax.f32 %v1267, %v1126
    %v1316 = vmax.f32 %v1268, %v1130
    %v1317 = vmax.f32 %v1269, %v1134
    %v1318 = vmax.f32 %v1270, %v1138
    %v1319 = vmax.f32 %v1271, %v1142
    %v1320 = vmax.f32 %v1272, %v1146
    %v1321 = vmax.f32 %v1273, %v1150
    %v1322 = vmax.f32 %v1274, %v1154
    %v1323 = vmax.f32 %v1275, %v1158
    %v1324 = vmax.f32 %v1276, %v1162
    %v1325 = vmax.f32 %v1277, %v1166
    %v1326 = vmax.f32 %v1278, %v1170
    %v1327 = vmax.f32 %v1279, %v1174
    %v1328 = vmax.f32 %v1280, %v1178
    %v1329 = vmax.f32 %v1281, %v1182
    %v1330 = vmax.f32 %v1282, %v1186
    %v1331 = vmax.f32 %v1283, %v1190
    %v1332 = vmax.f32 %v1284, %v1194
    %v1333 = vmax.f32 %v1285, %v1198
    %v1334 = vmax.f32 %v1286, %v1202
    %v1335 = vmax.f32 %v1287, %v1206
    %v1336 = vmax.f32 %v1288, %v1210
    %v1337 = vmax.f32 %v1289, %v1214
    %v1338 = vmax.f32 %v1290, %v1218
    %v1339 = vmax.f32 %v1291, %v1222
    %v1340 = vmax.f32 %v1292, %v1226
    %v1341 = vmax.f32 %v1293, %v1230
    %v1342 = vmax.f32 %v1294, %v1234
    %v1343 = vmax.f32 %v1295, %v1238
    %v1344 = vmax.f32 %v1296, %v1242
    %v1345 = vmax.f32 %v1297, %v1246
    %v1346 = vmax.f32 %v1298, %v1250
    %v1347 = vsub.f32 %v1251, %v1299
    %v1348 = vsub.f32 %v1252, %v1300
    %v1349 = vsub.f32 %v1253, %v1301
    %v1350 = vsub.f32 %v1254, %v1302
    %v1351 = vsub.f32 %v1255, %v1303
    %v1352 = vsub.f32 %v1256, %v1304
    %v1353 = vsub.f32 %v1257, %v1305
    %v1354 = vsub.f32 %v1258, %v1306
    %v1355 = vsub.f32 %v1259, %v1307
    %v1356 = vsub.f32 %v1260, %v1308
    %v1357 = vsub.f32 %v1261, %v1309
    %v1358 = vsub.f32 %v1262, %v1310
    %v1359 = vsub.f32 %v1263, %v1311
    %v1360 = vsub.f32 %v1264, %v1312
    %v1361 = vsub.f32 %v1265, %v1313
    %v1362 = vsub.f32 %v1266, %v1314
    %v1363 = vsub.f32 %v1267, %v1315
    %v1364 = vsub.f32 %v1268, %v1316
    %v1365 = vsub.f32 %v1269, %v1317
    %v1366 = vsub.f32 %v1270, %v1318
    %v1367 = vsub.f32 %v1271, %v1319
    %v1368 = vsub.f32 %v1272, %v1320
    %v1369 = vsub.f32 %v1273, %v1321
    %v1370 = vsub.f32 %v1274, %v1322
    %v1371 = vsub.f32 %v1275, %v1323
    %v1372 = vsub.f32 %v1276, %v1324
    %v1373 = vsub.f32 %v1277, %v1325
    %v1374 = vsub.f32 %v1278, %v1326
    %v1375 = vsub.f32 %v1279, %v1327
    %v1376 = vsub.f32 %v1280, %v1328
    %v1377 = vsub.f32 %v1281, %v1329
    %v1378 = vsub.f32 %v1282, %v1330
    %v1379 = vsub.f32 %v1283, %v1331
    %v1380 = vsub.f32 %v1284, %v1332
    %v1381 = vsub.f32 %v1285, %v1333
    %v1382 = vsub.f32 %v1286, %v1334
    %v1383 = vsub.f32 %v1287, %v1335
    %v1384 = vsub.f32 %v1288, %v1336
    %v1385 = vsub.f32 %v1289, %v1337
    %v1386 = vsub.f32 %v1290, %v1338
    %v1387 = vsub.f32 %v1291, %v1339
    %v1388 = vsub.f32 %v1292, %v1340
    %v1389 = vsub.f32 %v1293, %v1341
    %v1390 = vsub.f32 %v1294, %v1342
    %v1391 = vsub.f32 %v1295, %v1343
    %v1392 = vsub.f32 %v1296, %v1344
    %v1393 = vsub.f32 %v1297, %v1345
    %v1394 = vsub.f32 %v1298, %v1346
    %v1395 = vmul.f32 %v1347, 1.442695
    %v1396 = vpow.pop %v1395
    %v1397 = vmul.f32 %v1348, 1.442695
    %v1398 = vpow.pop %v1397
    %v1399 = vmul.f32 %v1349, 1.442695
    %v1400 = vpow.pop %v1399
    %v1401 = vmul.f32 %v1350, 1.442695
    %v1402 = vpow.pop %v1401
    %v1403 = vmul.f32 %v1351, 1.442695
    %v1404 = vpow.pop %v1403
    %v1405 = vmul.f32 %v1352, 1.442695
    %v1406 = vpow.pop %v1405
    %v1407 = vmul.f32 %v1353, 1.442695
    %v1408 = vpow.pop %v1407
    %v1409 = vmul.f32 %v1354, 1.442695
    %v1410 = vpow.pop %v1409
    %v1411 = vmul.f32 %v1355, 1.442695
    %v1412 = vpow.pop %v1411
    %v1413 = vmul.f32 %v1356, 1.442695
    %v1414 = vpow.pop %v1413
    %v1415 = vmul.f32 %v1357, 1.442695
    %v1416 = vpow.pop %v1415
    %v1417 = vmul.f32 %v1358, 1.442695
    %v1418 = vpow.pop %v1417
    %v1419 = vmul.f32 %v1359, 1.442695
    %v1420 = vpow.pop %v1419
    %v1421 = vmul.f32 %v1360, 1.442695
    %v1422 = vpow.pop %v1421
    %v1423 = vmul.f32 %v1361, 1.442695
    %v1424 = vpow.pop %v1423
    %v1425 = vmul.f32 %v1362, 1.442695
    %v1426 = vpow.pop %v1425
    %v1427 = vmul.f32 %v1363, 1.442695
    %v1428 = vpow.pop %v1427
    %v1429 = vmul.f32 %v1364, 1.442695
    %v1430 = vpow.pop %v1429
    %v1431 = vmul.f32 %v1365, 1.442695
    %v1432 = vpow.pop %v1431
    %v1433 = vmul.f32 %v1366, 1.442695
    %v1434 = vpow.pop %v1433
    %v1435 = vmul.f32 %v1367, 1.442695
    %v1436 = vpow.pop %v1435
    %v1437 = vmul.f32 %v1368, 1.442695
    %v1438 = vpow.pop %v1437
    %v1439 = vmul.f32 %v1369, 1.442695
    %v1440 = vpow.pop %v1439
    %v1441 = vmul.f32 %v1370, 1.442695
    %v1442 = vpow.pop %v1441
    %v1443 = vmul.f32 %v1371, 1.442695
    %v1444 = vpow.pop %v1443
    %v1445 = vmul.f32 %v1372, 1.442695
    %v1446 = vpow.pop %v1445
    %v1447 = vmul.f32 %v1373, 1.442695
    %v1448 = vpow.pop %v1447
    %v1449 = vmul.f32 %v1374, 1.442695
    %v1450 = vpow.pop %v1449
    %v1451 = vmul.f32 %v1375, 1.442695
    %v1452 = vpow.pop %v1451
    %v1453 = vmul.f32 %v1376, 1.442695
    %v1454 = vpow.pop %v1453
    %v1455 = vmul.f32 %v1377, 1.442695
    %v1456 = vpow.pop %v1455
    %v1457 = vmul.f32 %v1378, 1.442695
    %v1458 = vpow.pop %v1457
    %v1459 = vmul.f32 %v1379, 1.442695
    %v1460 = vpow.pop %v1459
    %v1461 = vmul.f32 %v1380, 1.442695
    %v1462 = vpow.pop %v1461
    %v1463 = vmul.f32 %v1381, 1.442695
    %v1464 = vpow.pop %v1463
    %v1465 = vmul.f32 %v1382, 1.442695
    %v1466 = vpow.pop %v1465
    %v1467 = vmul.f32 %v1383, 1.442695
    %v1468 = vpow.pop %v1467
    %v1469 = vmul.f32 %v1384, 1.442695
    %v1470 = vpow.pop %v1469
    %v1471 = vmul.f32 %v1385, 1.442695
    %v1472 = vpow.pop %v1471
    %v1473 = vmul.f32 %v1386, 1.442695
    %v1474 = vpow.pop %v1473
    %v1475 = vmul.f32 %v1387, 1.442695
    %v1476 = vpow.pop %v1475
    %v1477 = vmul.f32 %v1388, 1.442695
    %v1478 = vpow.pop %v1477
    %v1479 = vmul.f32 %v1389, 1.442695
    %v1480 = vpow.pop %v1479
    %v1481 = vmul.f32 %v1390, 1.442695
    %v1482 = vpow.pop %v1481
    %v1483 = vmul.f32 %v1391, 1.442695
    %v1484 = vpow.pop %v1483
    %v1485 = vmul.f32 %v1392, 1.442695
    %v1486 = vpow.pop %v1485
    %v1487 = vmul.f32 %v1393, 1.442695
    %v1488 = vpow.pop %v1487
    %v1489 = vmul.f32 %v1394, 1.442695
    %v1490 = vpow.pop %v1489
    %v1491 = vld [vmem:[#allocation3] sm:$0xff]
    %v1492 = vld [vmem:[#allocation3 + $0x8] sm:$0xff]
    %v1493 = vld [vmem:[#allocation3 + $0x10] sm:$0xff]
    %v1494 = vld [vmem:[#allocation3 + $0x18] sm:$0xff]
    %v1495 = vld [vmem:[#allocation3 + $0x20] sm:$0xff]
    %v1496 = vld [vmem:[#allocation3 + $0x28] sm:$0xff]
    %v1497 = vld [vmem:[#allocation3 + $0x30] sm:$0xff]
    %v1498 = vld [vmem:[#allocation3 + $0x38] sm:$0xff]
    %v1499 = vld [vmem:[#allocation3 + $0x40] sm:$0xff]
    %v1500 = vld [vmem:[#allocation3 + $0x48] sm:$0xff]
    %v1501 = vld [vmem:[#allocation3 + $0x50] sm:$0xff]
    %v1502 = vld [vmem:[#allocation3 + $0x58] sm:$0xff]
    %v1503 = vld [vmem:[#allocation3 + $0x60] sm:$0xff]
    %v1504 = vld [vmem:[#allocation3 + $0x68] sm:$0xff]
    %v1505 = vld [vmem:[#allocation3 + $0x70] sm:$0xff]
    %v1506 = vld [vmem:[#allocation3 + $0x78] sm:$0xff]
    %v1507 = vld [vmem:[#allocation3 + $0x80] sm:$0xff]
    %v1508 = vld [vmem:[#allocation3 + $0x88] sm:$0xff]
    %v1509 = vld [vmem:[#allocation3 + $0x90] sm:$0xff]
    %v1510 = vld [vmem:[#allocation3 + $0x98] sm:$0xff]
    %v1511 = vld [vmem:[#allocation3 + $0xa0] sm:$0xff]
    %v1512 = vld [vmem:[#allocation3 + $0xa8] sm:$0xff]
    %v1513 = vld [vmem:[#allocation3 + $0xb0] sm:$0xff]
    %v1514 = vld [vmem:[#allocation3 + $0xb8] sm:$0xff]
    %v1515 = vld [vmem:[#allocation3 + $0xc0] sm:$0xff]
    %v1516 = vld [vmem:[#allocation3 + $0xc8] sm:$0xff]
    %v1517 = vld [vmem:[#allocation3 + $0xd0] sm:$0xff]
    %v1518 = vld [vmem:[#allocation3 + $0xd8] sm:$0xff]
    %v1519 = vld [vmem:[#allocation3 + $0xe0] sm:$0xff]
    %v1520 = vld [vmem:[#allocation3 + $0xe8] sm:$0xff]
    %v1521 = vld [vmem:[#allocation3 + $0xf0] sm:$0xff]
    %v1522 = vld [vmem:[#allocation3 + $0xf8] sm:$0xff]
    %v1523 = vld [vmem:[#allocation3 + $0x100] sm:$0xff]
    %v1524 = vld [vmem:[#allocation3 + $0x108] sm:$0xff]
    %v1525 = vld [vmem:[#allocation3 + $0x110] sm:$0xff]
    %v1526 = vld [vmem:[#allocation3 + $0x118] sm:$0xff]
    %v1527 = vld [vmem:[#allocation3 + $0x120] sm:$0xff]
    %v1528 = vld [vmem:[#allocation3 + $0x128] sm:$0xff]
    %v1529 = vld [vmem:[#allocation3 + $0x130] sm:$0xff]
    %v1530 = vld [vmem:[#allocation3 + $0x138] sm:$0xff]
    %v1531 = vld [vmem:[#allocation3 + $0x140] sm:$0xff]
    %v1532 = vld [vmem:[#allocation3 + $0x148] sm:$0xff]
    %v1533 = vld [vmem:[#allocation3 + $0x150] sm:$0xff]
    %v1534 = vld [vmem:[#allocation3 + $0x158] sm:$0xff]
    %v1535 = vld [vmem:[#allocation3 + $0x160] sm:$0xff]
    %v1536 = vld [vmem:[#allocation3 + $0x168] sm:$0xff]
    %v1537 = vld [vmem:[#allocation3 + $0x170] sm:$0xff]
    %v1538 = vld [vmem:[#allocation3 + $0x178] sm:$0xff]
    %v1539 = vmul.f32 %v1396, %v1491
    %v1540 = vmul.f32 %v1398, %v1492
    %v1541 = vmul.f32 %v1400, %v1493
    %v1542 = vmul.f32 %v1402, %v1494
    %v1543 = vmul.f32 %v1404, %v1495
    %v1544 = vmul.f32 %v1406, %v1496
    %v1545 = vmul.f32 %v1408, %v1497
    %v1546 = vmul.f32 %v1410, %v1498
    %v1547 = vmul.f32 %v1412, %v1499
    %v1548 = vmul.f32 %v1414, %v1500
    %v1549 = vmul.f32 %v1416, %v1501
    %v1550 = vmul.f32 %v1418, %v1502
    %v1551 = vmul.f32 %v1420, %v1503
    %v1552 = vmul.f32 %v1422, %v1504
    %v1553 = vmul.f32 %v1424, %v1505
    %v1554 = vmul.f32 %v1426, %v1506
    %v1555 = vmul.f32 %v1428, %v1507
    %v1556 = vmul.f32 %v1430, %v1508
    %v1557 = vmul.f32 %v1432, %v1509
    %v1558 = vmul.f32 %v1434, %v1510
    %v1559 = vmul.f32 %v1436, %v1511
    %v1560 = vmul.f32 %v1438, %v1512
    %v1561 = vmul.f32 %v1440, %v1513
    %v1562 = vmul.f32 %v1442, %v1514
    %v1563 = vmul.f32 %v1444, %v1515
    %v1564 = vmul.f32 %v1446, %v1516
    %v1565 = vmul.f32 %v1448, %v1517
    %v1566 = vmul.f32 %v1450, %v1518
    %v1567 = vmul.f32 %v1452, %v1519
    %v1568 = vmul.f32 %v1454, %v1520
    %v1569 = vmul.f32 %v1456, %v1521
    %v1570 = vmul.f32 %v1458, %v1522
    %v1571 = vmul.f32 %v1460, %v1523
    %v1572 = vmul.f32 %v1462, %v1524
    %v1573 = vmul.f32 %v1464, %v1525
    %v1574 = vmul.f32 %v1466, %v1526
    %v1575 = vmul.f32 %v1468, %v1527
    %v1576 = vmul.f32 %v1470, %v1528
    %v1577 = vmul.f32 %v1472, %v1529
    %v1578 = vmul.f32 %v1474, %v1530
    %v1579 = vmul.f32 %v1476, %v1531
    %v1580 = vmul.f32 %v1478, %v1532
    %v1581 = vmul.f32 %v1480, %v1533
    %v1582 = vmul.f32 %v1482, %v1534
    %v1583 = vmul.f32 %v1484, %v1535
    %v1584 = vmul.f32 %v1486, %v1536
    %v1585 = vmul.f32 %v1488, %v1537
    %v1586 = vmul.f32 %v1490, %v1538
    %1588 = vset.pattern.permute.xlu0 0
    %1589 = vperm.xlu0 %1588, %v1299
    %v1590 = vpop.permute.xlu0 %1589
    %1593 = vset.pattern.permute.xlu0 0
    %1594 = vperm.xlu0 %1593, %v1300
    %v1595 = vpop.permute.xlu0 %1594
    %1598 = vset.pattern.permute.xlu0 0
    %1599 = vperm.xlu0 %1598, %v1301
    %v1600 = vpop.permute.xlu0 %1599
    %1603 = vset.pattern.permute.xlu0 0
    %1604 = vperm.xlu0 %1603, %v1302
    %v1605 = vpop.permute.xlu0 %1604
    %1608 = vset.pattern.permute.xlu0 0
    %1609 = vperm.xlu0 %1608, %v1303
    %v1610 = vpop.permute.xlu0 %1609
    %1613 = vset.pattern.permute.xlu0 0
    %1614 = vperm.xlu0 %1613, %v1304
    %v1615 = vpop.permute.xlu0 %1614
    %1618 = vset.pattern.permute.xlu0 0
    %1619 = vperm.xlu0 %1618, %v1305
    %v1620 = vpop.permute.xlu0 %1619
    %1623 = vset.pattern.permute.xlu0 0
    %1624 = vperm.xlu0 %1623, %v1306
    %v1625 = vpop.permute.xlu0 %1624
    %1628 = vset.pattern.permute.xlu0 0
    %1629 = vperm.xlu0 %1628, %v1307
    %v1630 = vpop.permute.xlu0 %1629
    %1633 = vset.pattern.permute.xlu0 0
    %1634 = vperm.xlu0 %1633, %v1308
    %v1635 = vpop.permute.xlu0 %1634
    %1638 = vset.pattern.permute.xlu0 0
    %1639 = vperm.xlu0 %1638, %v1309
    %v1640 = vpop.permute.xlu0 %1639
    %1643 = vset.pattern.permute.xlu0 0
    %1644 = vperm.xlu0 %1643, %v1310
    %v1645 = vpop.permute.xlu0 %1644
    %1648 = vset.pattern.permute.xlu0 0
    %1649 = vperm.xlu0 %1648, %v1311
    %v1650 = vpop.permute.xlu0 %1649
    %1653 = vset.pattern.permute.xlu0 0
    %1654 = vperm.xlu0 %1653, %v1312
    %v1655 = vpop.permute.xlu0 %1654
    %1658 = vset.pattern.permute.xlu0 0
    %1659 = vperm.xlu0 %1658, %v1313
    %v1660 = vpop.permute.xlu0 %1659
    %1663 = vset.pattern.permute.xlu0 0
    %1664 = vperm.xlu0 %1663, %v1314
    %v1665 = vpop.permute.xlu0 %1664
    %1668 = vset.pattern.permute.xlu0 0
    %1669 = vperm.xlu0 %1668, %v1315
    %v1670 = vpop.permute.xlu0 %1669
    %1673 = vset.pattern.permute.xlu0 0
    %1674 = vperm.xlu0 %1673, %v1316
    %v1675 = vpop.permute.xlu0 %1674
    %1678 = vset.pattern.permute.xlu0 0
    %1679 = vperm.xlu0 %1678, %v1317
    %v1680 = vpop.permute.xlu0 %1679
    %1683 = vset.pattern.permute.xlu0 0
    %1684 = vperm.xlu0 %1683, %v1318
    %v1685 = vpop.permute.xlu0 %1684
    %1688 = vset.pattern.permute.xlu0 0
    %1689 = vperm.xlu0 %1688, %v1319
    %v1690 = vpop.permute.xlu0 %1689
    %1693 = vset.pattern.permute.xlu0 0
    %1694 = vperm.xlu0 %1693, %v1320
    %v1695 = vpop.permute.xlu0 %1694
    %1698 = vset.pattern.permute.xlu0 0
    %1699 = vperm.xlu0 %1698, %v1321
    %v1700 = vpop.permute.xlu0 %1699
    %1703 = vset.pattern.permute.xlu0 0
    %1704 = vperm.xlu0 %1703, %v1322
    %v1705 = vpop.permute.xlu0 %1704
    %1708 = vset.pattern.permute.xlu0 0
    %1709 = vperm.xlu0 %1708, %v1323
    %v1710 = vpop.permute.xlu0 %1709
    %1713 = vset.pattern.permute.xlu0 0
    %1714 = vperm.xlu0 %1713, %v1324
    %v1715 = vpop.permute.xlu0 %1714
    %1718 = vset.pattern.permute.xlu0 0
    %1719 = vperm.xlu0 %1718, %v1325
    %v1720 = vpop.permute.xlu0 %1719
    %1723 = vset.pattern.permute.xlu0 0
    %1724 = vperm.xlu0 %1723, %v1326
    %v1725 = vpop.permute.xlu0 %1724
    %1728 = vset.pattern.permute.xlu0 0
    %1729 = vperm.xlu0 %1728, %v1327
    %v1730 = vpop.permute.xlu0 %1729
    %1733 = vset.pattern.permute.xlu0 0
    %1734 = vperm.xlu0 %1733, %v1328
    %v1735 = vpop.permute.xlu0 %1734
    %1738 = vset.pattern.permute.xlu0 0
    %1739 = vperm.xlu0 %1738, %v1329
    %v1740 = vpop.permute.xlu0 %1739
    %1743 = vset.pattern.permute.xlu0 0
    %1744 = vperm.xlu0 %1743, %v1330
    %v1745 = vpop.permute.xlu0 %1744
    %1748 = vset.pattern.permute.xlu0 0
    %1749 = vperm.xlu0 %1748, %v1331
    %v1750 = vpop.permute.xlu0 %1749
    %1753 = vset.pattern.permute.xlu0 0
    %1754 = vperm.xlu0 %1753, %v1332
    %v1755 = vpop.permute.xlu0 %1754
    %1758 = vset.pattern.permute.xlu0 0
    %1759 = vperm.xlu0 %1758, %v1333
    %v1760 = vpop.permute.xlu0 %1759
    %1763 = vset.pattern.permute.xlu0 0
    %1764 = vperm.xlu0 %1763, %v1334
    %v1765 = vpop.permute.xlu0 %1764
    %1768 = vset.pattern.permute.xlu0 0
    %1769 = vperm.xlu0 %1768, %v1335
    %v1770 = vpop.permute.xlu0 %1769
    %1773 = vset.pattern.permute.xlu0 0
    %1774 = vperm.xlu0 %1773, %v1336
    %v1775 = vpop.permute.xlu0 %1774
    %1778 = vset.pattern.permute.xlu0 0
    %1779 = vperm.xlu0 %1778, %v1337
    %v1780 = vpop.permute.xlu0 %1779
    %1783 = vset.pattern.permute.xlu0 0
    %1784 = vperm.xlu0 %1783, %v1338
    %v1785 = vpop.permute.xlu0 %1784
    %1788 = vset.pattern.permute.xlu0 0
    %1789 = vperm.xlu0 %1788, %v1339
    %v1790 = vpop.permute.xlu0 %1789
    %1793 = vset.pattern.permute.xlu0 0
    %1794 = vperm.xlu0 %1793, %v1340
    %v1795 = vpop.permute.xlu0 %1794
    %1798 = vset.pattern.permute.xlu0 0
    %1799 = vperm.xlu0 %1798, %v1341
    %v1800 = vpop.permute.xlu0 %1799
    %1803 = vset.pattern.permute.xlu0 0
    %1804 = vperm.xlu0 %1803, %v1342
    %v1805 = vpop.permute.xlu0 %1804
    %1808 = vset.pattern.permute.xlu0 0
    %1809 = vperm.xlu0 %1808, %v1343
    %v1810 = vpop.permute.xlu0 %1809
    %1813 = vset.pattern.permute.xlu0 0
    %1814 = vperm.xlu0 %1813, %v1344
    %v1815 = vpop.permute.xlu0 %1814
    %1818 = vset.pattern.permute.xlu0 0
    %1819 = vperm.xlu0 %1818, %v1345
    %v1820 = vpop.permute.xlu0 %1819
    %1823 = vset.pattern.permute.xlu0 0
    %1824 = vperm.xlu0 %1823, %v1346
    %v1825 = vpop.permute.xlu0 %1824
    %v1827 = vsub.f32 %v176, %v1590
    %v1828 = vsub.f32 %v177, %v1590
    %v1829 = vsub.f32 %v178, %v1590
    %v1830 = vsub.f32 %v179, %v1595
    %v1831 = vsub.f32 %v180, %v1595
    %v1832 = vsub.f32 %v181, %v1595
    %v1833 = vsub.f32 %v182, %v1600
    %v1834 = vsub.f32 %v183, %v1600
    %v1835 = vsub.f32 %v184, %v1600
    %v1836 = vsub.f32 %v185, %v1605
    %v1837 = vsub.f32 %v186, %v1605
    %v1838 = vsub.f32 %v187, %v1605
    %v1839 = vsub.f32 %v188, %v1610
    %v1840 = vsub.f32 %v189, %v1610
    %v1841 = vsub.f32 %v190, %v1610
    %v1842 = vsub.f32 %v191, %v1615
    %v1843 = vsub.f32 %v192, %v1615
    %v1844 = vsub.f32 %v193, %v1615
    %v1845 = vsub.f32 %v194, %v1620
    %v1846 = vsub.f32 %v195, %v1620
    %v1847 = vsub.f32 %v196, %v1620
    %v1848 = vsub.f32 %v197, %v1625
    %v1849 = vsub.f32 %v198, %v1625
    %v1850 = vsub.f32 %v199, %v1625
    %v1851 = vsub.f32 %v200, %v1630
    %v1852 = vsub.f32 %v201, %v1630
    %v1853 = vsub.f32 %v202, %v1630
    %v1854 = vsub.f32 %v203, %v1635
    %v1855 = vsub.f32 %v204, %v1635
    %v1856 = vsub.f32 %v205, %v1635
    %v1857 = vsub.f32 %v206, %v1640
    %v1858 = vsub.f32 %v207, %v1640
    %v1859 = vsub.f32 %v208, %v1640
    %v1860 = vsub.f32 %v209, %v1645
    %v1861 = vsub.f32 %v210, %v1645
    %v1862 = vsub.f32 %v211, %v1645
    %v1863 = vsub.f32 %v212, %v1650
    %v1864 = vsub.f32 %v213, %v1650
    %v1865 = vsub.f32 %v214, %v1650
    %v1866 = vsub.f32 %v215, %v1655
    %v1867 = vsub.f32 %v216, %v1655
    %v1868 = vsub.f32 %v217, %v1655
    %v1869 = vsub.f32 %v218, %v1660
    %v1870 = vsub.f32 %v219, %v1660
    %v1871 = vsub.f32 %v220, %v1660
    %v1872 = vsub.f32 %v221, %v1665
    %v1873 = vsub.f32 %v222, %v1665
    %v1874 = vsub.f32 %v223, %v1665
    %v1875 = vsub.f32 %v224, %v1670
    %v1876 = vsub.f32 %v225, %v1670
    %v1877 = vsub.f32 %v226, %v1670
    %v1878 = vsub.f32 %v227, %v1675
    %v1879 = vsub.f32 %v228, %v1675
    %v1880 = vsub.f32 %v229, %v1675
    %v1881 = vsub.f32 %v230, %v1680
    %v1882 = vsub.f32 %v231, %v1680
    %v1883 = vsub.f32 %v232, %v1680
    %v1884 = vsub.f32 %v233, %v1685
    %v1885 = vsub.f32 %v234, %v1685
    %v1886 = vsub.f32 %v235, %v1685
    %v1887 = vsub.f32 %v236, %v1690
    %v1888 = vsub.f32 %v237, %v1690
    %v1889 = vsub.f32 %v238, %v1690
    %v1890 = vsub.f32 %v239, %v1695
    %v1891 = vsub.f32 %v240, %v1695
    %v1892 = vsub.f32 %v241, %v1695
    %v1893 = vsub.f32 %v242, %v1700
    %v1894 = vsub.f32 %v243, %v1700
    %v1895 = vsub.f32 %v244, %v1700
    %v1896 = vsub.f32 %v245, %v1705
    %v1897 = vsub.f32 %v246, %v1705
    %v1898 = vsub.f32 %v247, %v1705
    %v1899 = vsub.f32 %v248, %v1710
    %v1900 = vsub.f32 %v249, %v1710
    %v1901 = vsub.f32 %v250, %v1710
    %v1902 = vsub.f32 %v251, %v1715
    %v1903 = vsub.f32 %v252, %v1715
    %v1904 = vsub.f32 %v253, %v1715
    %v1905 = vsub.f32 %v254, %v1720
    %v1906 = vsub.f32 %v255, %v1720
    %v1907 = vsub.f32 %v256, %v1720
    %v1908 = vsub.f32 %v257, %v1725
    %v1909 = vsub.f32 %v258, %v1725
    %v1910 = vsub.f32 %v259, %v1725
    %v1911 = vsub.f32 %v260, %v1730
    %v1912 = vsub.f32 %v261, %v1730
    %v1913 = vsub.f32 %v262, %v1730
    %v1914 = vsub.f32 %v263, %v1735
    %v1915 = vsub.f32 %v264, %v1735
    %v1916 = vsub.f32 %v265, %v1735
    %v1917 = vsub.f32 %v266, %v1740
    %v1918 = vsub.f32 %v267, %v1740
    %v1919 = vsub.f32 %v268, %v1740
    %v1920 = vsub.f32 %v269, %v1745
    %v1921 = vsub.f32 %v270, %v1745
    %v1922 = vsub.f32 %v271, %v1745
    %v1923 = vsub.f32 %v272, %v1750
    %v1924 = vsub.f32 %v273, %v1750
    %v1925 = vsub.f32 %v274, %v1750
    %v1926 = vsub.f32 %v275, %v1755
    %v1927 = vsub.f32 %v276, %v1755
    %v1928 = vsub.f32 %v277, %v1755
    %v1929 = vsub.f32 %v278, %v1760
    %v1930 = vsub.f32 %v279, %v1760
    %v1931 = vsub.f32 %v280, %v1760
    %v1932 = vsub.f32 %v281, %v1765
    %v1933 = vsub.f32 %v282, %v1765
    %v1934 = vsub.f32 %v283, %v1765
    %v1935 = vsub.f32 %v284, %v1770
    %v1936 = vsub.f32 %v285, %v1770
    %v1937 = vsub.f32 %v286, %v1770
    %v1938 = vsub.f32 %v287, %v1775
    %v1939 = vsub.f32 %v288, %v1775
    %v1940 = vsub.f32 %v289, %v1775
    %v1941 = vsub.f32 %v290, %v1780
    %v1942 = vsub.f32 %v291, %v1780
    %v1943 = vsub.f32 %v292, %v1780
    %v1944 = vsub.f32 %v293, %v1785
    %v1945 = vsub.f32 %v294, %v1785
    %v1946 = vsub.f32 %v295, %v1785
    %v1947 = vsub.f32 %v296, %v1790
    %v1948 = vsub.f32 %v297, %v1790
    %v1949 = vsub.f32 %v298, %v1790
    %v1950 = vsub.f32 %v299, %v1795
    %v1951 = vsub.f32 %v300, %v1795
    %v1952 = vsub.f32 %v301, %v1795
    %v1953 = vsub.f32 %v302, %v1800
    %v1954 = vsub.f32 %v303, %v1800
    %v1955 = vsub.f32 %v304, %v1800
    %v1956 = vsub.f32 %v305, %v1805
    %v1957 = vsub.f32 %v306, %v1805
    %v1958 = vsub.f32 %v307, %v1805
    %v1959 = vsub.f32 %v308, %v1810
    %v1960 = vsub.f32 %v309, %v1810
    %v1961 = vsub.f32 %v310, %v1810
    %v1962 = vsub.f32 %v311, %v1815
    %v1963 = vsub.f32 %v312, %v1815
    %v1964 = vsub.f32 %v313, %v1815
    %v1965 = vsub.f32 %v314, %v1820
    %v1966 = vsub.f32 %v315, %v1820
    %v1967 = vsub.f32 %v316, %v1820
    %v1968 = vsub.f32 %v317, %v1825
    %v1969 = vsub.f32 %v318, %v1825
    %v1970 = vsub.f32 %v319, %v1825
    %v1971 = vmul.f32 %v1827, 1.442695
    %v1972 = vpow.pop %v1971
    %v1973 = vmul.f32 %v1828, 1.442695
    %v1974 = vpow.pop %v1973
    %v1975 = vmul.f32 %v1829, 1.442695
    %v1976 = vpow.pop %v1975
    %v1977 = vmul.f32 %v1830, 1.442695
    %v1978 = vpow.pop %v1977
    %v1979 = vmul.f32 %v1831, 1.442695
    %v1980 = vpow.pop %v1979
    %v1981 = vmul.f32 %v1832, 1.442695
    %v1982 = vpow.pop %v1981
    %v1983 = vmul.f32 %v1833, 1.442695
    %v1984 = vpow.pop %v1983
    %v1985 = vmul.f32 %v1834, 1.442695
    %v1986 = vpow.pop %v1985
    %v1987 = vmul.f32 %v1835, 1.442695
    %v1988 = vpow.pop %v1987
    %v1989 = vmul.f32 %v1836, 1.442695
    %v1990 = vpow.pop %v1989
    %v1991 = vmul.f32 %v1837, 1.442695
    %v1992 = vpow.pop %v1991
    %v1993 = vmul.f32 %v1838, 1.442695
    %v1994 = vpow.pop %v1993
    %v1995 = vmul.f32 %v1839, 1.442695
    %v1996 = vpow.pop %v1995
    %v1997 = vmul.f32 %v1840, 1.442695
    %v1998 = vpow.pop %v1997
    %v1999 = vmul.f32 %v1841, 1.442695
    %v2000 = vpow.pop %v1999
    %v2001 = vmul.f32 %v1842, 1.442695
    %v2002 = vpow.pop %v2001
    %v2003 = vmul.f32 %v1843, 1.442695
    %v2004 = vpow.pop %v2003
    %v2005 = vmul.f32 %v1844, 1.442695
    %v2006 = vpow.pop %v2005
    %v2007 = vmul.f32 %v1845, 1.442695
    %v2008 = vpow.pop %v2007
    %v2009 = vmul.f32 %v1846, 1.442695
    %v2010 = vpow.pop %v2009
    %v2011 = vmul.f32 %v1847, 1.442695
    %v2012 = vpow.pop %v2011
    %v2013 = vmul.f32 %v1848, 1.442695
    %v2014 = vpow.pop %v2013
    %v2015 = vmul.f32 %v1849, 1.442695
    %v2016 = vpow.pop %v2015
    %v2017 = vmul.f32 %v1850, 1.442695
    %v2018 = vpow.pop %v2017
    %v2019 = vmul.f32 %v1851, 1.442695
    %v2020 = vpow.pop %v2019
    %v2021 = vmul.f32 %v1852, 1.442695
    %v2022 = vpow.pop %v2021
    %v2023 = vmul.f32 %v1853, 1.442695
    %v2024 = vpow.pop %v2023
    %v2025 = vmul.f32 %v1854, 1.442695
    %v2026 = vpow.pop %v2025
    %v2027 = vmul.f32 %v1855, 1.442695
    %v2028 = vpow.pop %v2027
    %v2029 = vmul.f32 %v1856, 1.442695
    %v2030 = vpow.pop %v2029
    %v2031 = vmul.f32 %v1857, 1.442695
    %v2032 = vpow.pop %v2031
    %v2033 = vmul.f32 %v1858, 1.442695
    %v2034 = vpow.pop %v2033
    %v2035 = vmul.f32 %v1859, 1.442695
    %v2036 = vpow.pop %v2035
    %v2037 = vmul.f32 %v1860, 1.442695
    %v2038 = vpow.pop %v2037
    %v2039 = vmul.f32 %v1861, 1.442695
    %v2040 = vpow.pop %v2039
    %v2041 = vmul.f32 %v1862, 1.442695
    %v2042 = vpow.pop %v2041
    %v2043 = vmul.f32 %v1863, 1.442695
    %v2044 = vpow.pop %v2043
    %v2045 = vmul.f32 %v1864, 1.442695
    %v2046 = vpow.pop %v2045
    %v2047 = vmul.f32 %v1865, 1.442695
    %v2048 = vpow.pop %v2047
    %v2049 = vmul.f32 %v1866, 1.442695
    %v2050 = vpow.pop %v2049
    %v2051 = vmul.f32 %v1867, 1.442695
    %v2052 = vpow.pop %v2051
    %v2053 = vmul.f32 %v1868, 1.442695
    %v2054 = vpow.pop %v2053
    %v2055 = vmul.f32 %v1869, 1.442695
    %v2056 = vpow.pop %v2055
    %v2057 = vmul.f32 %v1870, 1.442695
    %v2058 = vpow.pop %v2057
    %v2059 = vmul.f32 %v1871, 1.442695
    %v2060 = vpow.pop %v2059
    %v2061 = vmul.f32 %v1872, 1.442695
    %v2062 = vpow.pop %v2061
    %v2063 = vmul.f32 %v1873, 1.442695
    %v2064 = vpow.pop %v2063
    %v2065 = vmul.f32 %v1874, 1.442695
    %v2066 = vpow.pop %v2065
    %v2067 = vmul.f32 %v1875, 1.442695
    %v2068 = vpow.pop %v2067
    %v2069 = vmul.f32 %v1876, 1.442695
    %v2070 = vpow.pop %v2069
    %v2071 = vmul.f32 %v1877, 1.442695
    %v2072 = vpow.pop %v2071
    %v2073 = vmul.f32 %v1878, 1.442695
    %v2074 = vpow.pop %v2073
    %v2075 = vmul.f32 %v1879, 1.442695
    %v2076 = vpow.pop %v2075
    %v2077 = vmul.f32 %v1880, 1.442695
    %v2078 = vpow.pop %v2077
    %v2079 = vmul.f32 %v1881, 1.442695
    %v2080 = vpow.pop %v2079
    %v2081 = vmul.f32 %v1882, 1.442695
    %v2082 = vpow.pop %v2081
    %v2083 = vmul.f32 %v1883, 1.442695
    %v2084 = vpow.pop %v2083
    %v2085 = vmul.f32 %v1884, 1.442695
    %v2086 = vpow.pop %v2085
    %v2087 = vmul.f32 %v1885, 1.442695
    %v2088 = vpow.pop %v2087
    %v2089 = vmul.f32 %v1886, 1.442695
    %v2090 = vpow.pop %v2089
    %v2091 = vmul.f32 %v1887, 1.442695
    %v2092 = vpow.pop %v2091
    %v2093 = vmul.f32 %v1888, 1.442695
    %v2094 = vpow.pop %v2093
    %v2095 = vmul.f32 %v1889, 1.442695
    %v2096 = vpow.pop %v2095
    %v2097 = vmul.f32 %v1890, 1.442695
    %v2098 = vpow.pop %v2097
    %v2099 = vmul.f32 %v1891, 1.442695
    %v2100 = vpow.pop %v2099
    %v2101 = vmul.f32 %v1892, 1.442695
    %v2102 = vpow.pop %v2101
    %v2103 = vmul.f32 %v1893, 1.442695
    %v2104 = vpow.pop %v2103
    %v2105 = vmul.f32 %v1894, 1.442695
    %v2106 = vpow.pop %v2105
    %v2107 = vmul.f32 %v1895, 1.442695
    %v2108 = vpow.pop %v2107
    %v2109 = vmul.f32 %v1896, 1.442695
    %v2110 = vpow.pop %v2109
    %v2111 = vmul.f32 %v1897, 1.442695
    %v2112 = vpow.pop %v2111
    %v2113 = vmul.f32 %v1898, 1.442695
    %v2114 = vpow.pop %v2113
    %v2115 = vmul.f32 %v1899, 1.442695
    %v2116 = vpow.pop %v2115
    %v2117 = vmul.f32 %v1900, 1.442695
    %v2118 = vpow.pop %v2117
    %v2119 = vmul.f32 %v1901, 1.442695
    %v2120 = vpow.pop %v2119
    %v2121 = vmul.f32 %v1902, 1.442695
    %v2122 = vpow.pop %v2121
    %v2123 = vmul.f32 %v1903, 1.442695
    %v2124 = vpow.pop %v2123
    %v2125 = vmul.f32 %v1904, 1.442695
    %v2126 = vpow.pop %v2125
    %v2127 = vmul.f32 %v1905, 1.442695
    %v2128 = vpow.pop %v2127
    %v2129 = vmul.f32 %v1906, 1.442695
    %v2130 = vpow.pop %v2129
    %v2131 = vmul.f32 %v1907, 1.442695
    %v2132 = vpow.pop %v2131
    %v2133 = vmul.f32 %v1908, 1.442695
    %v2134 = vpow.pop %v2133
    %v2135 = vmul.f32 %v1909, 1.442695
    %v2136 = vpow.pop %v2135
    %v2137 = vmul.f32 %v1910, 1.442695
    %v2138 = vpow.pop %v2137
    %v2139 = vmul.f32 %v1911, 1.442695
    %v2140 = vpow.pop %v2139
    %v2141 = vmul.f32 %v1912, 1.442695
    %v2142 = vpow.pop %v2141
    %v2143 = vmul.f32 %v1913, 1.442695
    %v2144 = vpow.pop %v2143
    %v2145 = vmul.f32 %v1914, 1.442695
    %v2146 = vpow.pop %v2145
    %v2147 = vmul.f32 %v1915, 1.442695
    %v2148 = vpow.pop %v2147
    %v2149 = vmul.f32 %v1916, 1.442695
    %v2150 = vpow.pop %v2149
    %v2151 = vmul.f32 %v1917, 1.442695
    %v2152 = vpow.pop %v2151
    %v2153 = vmul.f32 %v1918, 1.442695
    %v2154 = vpow.pop %v2153
    %v2155 = vmul.f32 %v1919, 1.442695
    %v2156 = vpow.pop %v2155
    %v2157 = vmul.f32 %v1920, 1.442695
    %v2158 = vpow.pop %v2157
    %v2159 = vmul.f32 %v1921, 1.442695
    %v2160 = vpow.pop %v2159
    %v2161 = vmul.f32 %v1922, 1.442695
    %v2162 = vpow.pop %v2161
    %v2163 = vmul.f32 %v1923, 1.442695
    %v2164 = vpow.pop %v2163
    %v2165 = vmul.f32 %v1924, 1.442695
    %v2166 = vpow.pop %v2165
    %v2167 = vmul.f32 %v1925, 1.442695
    %v2168 = vpow.pop %v2167
    %v2169 = vmul.f32 %v1926, 1.442695
    %v2170 = vpow.pop %v2169
    %v2171 = vmul.f32 %v1927, 1.442695
    %v2172 = vpow.pop %v2171
    %v2173 = vmul.f32 %v1928, 1.442695
    %v2174 = vpow.pop %v2173
    %v2175 = vmul.f32 %v1929, 1.442695
    %v2176 = vpow.pop %v2175
    %v2177 = vmul.f32 %v1930, 1.442695
    %v2178 = vpow.pop %v2177
    %v2179 = vmul.f32 %v1931, 1.442695
    %v2180 = vpow.pop %v2179
    %v2181 = vmul.f32 %v1932, 1.442695
    %v2182 = vpow.pop %v2181
    %v2183 = vmul.f32 %v1933, 1.442695
    %v2184 = vpow.pop %v2183
    %v2185 = vmul.f32 %v1934, 1.442695
    %v2186 = vpow.pop %v2185
    %v2187 = vmul.f32 %v1935, 1.442695
    %v2188 = vpow.pop %v2187
    %v2189 = vmul.f32 %v1936, 1.442695
    %v2190 = vpow.pop %v2189
    %v2191 = vmul.f32 %v1937, 1.442695
    %v2192 = vpow.pop %v2191
    %v2193 = vmul.f32 %v1938, 1.442695
    %v2194 = vpow.pop %v2193
    %v2195 = vmul.f32 %v1939, 1.442695
    %v2196 = vpow.pop %v2195
    %v2197 = vmul.f32 %v1940, 1.442695
    %v2198 = vpow.pop %v2197
    %v2199 = vmul.f32 %v1941, 1.442695
    %v2200 = vpow.pop %v2199
    %v2201 = vmul.f32 %v1942, 1.442695
    %v2202 = vpow.pop %v2201
    %v2203 = vmul.f32 %v1943, 1.442695
    %v2204 = vpow.pop %v2203
    %v2205 = vmul.f32 %v1944, 1.442695
    %v2206 = vpow.pop %v2205
    %v2207 = vmul.f32 %v1945, 1.442695
    %v2208 = vpow.pop %v2207
    %v2209 = vmul.f32 %v1946, 1.442695
    %v2210 = vpow.pop %v2209
    %v2211 = vmul.f32 %v1947, 1.442695
    %v2212 = vpow.pop %v2211
    %v2213 = vmul.f32 %v1948, 1.442695
    %v2214 = vpow.pop %v2213
    %v2215 = vmul.f32 %v1949, 1.442695
    %v2216 = vpow.pop %v2215
    %v2217 = vmul.f32 %v1950, 1.442695
    %v2218 = vpow.pop %v2217
    %v2219 = vmul.f32 %v1951, 1.442695
    %v2220 = vpow.pop %v2219
    %v2221 = vmul.f32 %v1952, 1.442695
    %v2222 = vpow.pop %v2221
    %v2223 = vmul.f32 %v1953, 1.442695
    %v2224 = vpow.pop %v2223
    %v2225 = vmul.f32 %v1954, 1.442695
    %v2226 = vpow.pop %v2225
    %v2227 = vmul.f32 %v1955, 1.442695
    %v2228 = vpow.pop %v2227
    %v2229 = vmul.f32 %v1956, 1.442695
    %v2230 = vpow.pop %v2229
    %v2231 = vmul.f32 %v1957, 1.442695
    %v2232 = vpow.pop %v2231
    %v2233 = vmul.f32 %v1958, 1.442695
    %v2234 = vpow.pop %v2233
    %v2235 = vmul.f32 %v1959, 1.442695
    %v2236 = vpow.pop %v2235
    %v2237 = vmul.f32 %v1960, 1.442695
    %v2238 = vpow.pop %v2237
    %v2239 = vmul.f32 %v1961, 1.442695
    %v2240 = vpow.pop %v2239
    %v2241 = vmul.f32 %v1962, 1.442695
    %v2242 = vpow.pop %v2241
    %v2243 = vmul.f32 %v1963, 1.442695
    %v2244 = vpow.pop %v2243
    %v2245 = vmul.f32 %v1964, 1.442695
    %v2246 = vpow.pop %v2245
    %v2247 = vmul.f32 %v1965, 1.442695
    %v2248 = vpow.pop %v2247
    %v2249 = vmul.f32 %v1966, 1.442695
    %v2250 = vpow.pop %v2249
    %v2251 = vmul.f32 %v1967, 1.442695
    %v2252 = vpow.pop %v2251
    %v2253 = vmul.f32 %v1968, 1.442695
    %v2254 = vpow.pop %v2253
    %v2255 = vmul.f32 %v1969, 1.442695
    %v2256 = vpow.pop %v2255
    %v2257 = vmul.f32 %v1970, 1.442695
    %v2258 = vpow.pop %v2257
    %v2259 = vadd.f32 %v1972, %v1974
    %v2260 = vadd.f32 %v2259, %v1976
    %2261 = vadd.xlane.f32.xlu0 %v2260
    %v2262 = vpop.xlane.xlu0 %2261
    %v2263 = vadd.f32 %v1978, %v1980
    %v2264 = vadd.f32 %v2263, %v1982
    %2265 = vadd.xlane.f32.xlu0 %v2264
    %v2266 = vpop.xlane.xlu0 %2265
    %v2267 = vadd.f32 %v1984, %v1986
    %v2268 = vadd.f32 %v2267, %v1988
    %2269 = vadd.xlane.f32.xlu0 %v2268
    %v2270 = vpop.xlane.xlu0 %2269
    %v2271 = vadd.f32 %v1990, %v1992
    %v2272 = vadd.f32 %v2271, %v1994
    %2273 = vadd.xlane.f32.xlu0 %v2272
    %v2274 = vpop.xlane.xlu0 %2273
    %v2275 = vadd.f32 %v1996, %v1998
    %v2276 = vadd.f32 %v2275, %v2000
    %2277 = vadd.xlane.f32.xlu0 %v2276
    %v2278 = vpop.xlane.xlu0 %2277
    %v2279 = vadd.f32 %v2002, %v2004
    %v2280 = vadd.f32 %v2279, %v2006
    %2281 = vadd.xlane.f32.xlu0 %v2280
    %v2282 = vpop.xlane.xlu0 %2281
    %v2283 = vadd.f32 %v2008, %v2010
    %v2284 = vadd.f32 %v2283, %v2012
    %2285 = vadd.xlane.f32.xlu0 %v2284
    %v2286 = vpop.xlane.xlu0 %2285
    %v2287 = vadd.f32 %v2014, %v2016
    %v2288 = vadd.f32 %v2287, %v2018
    %2289 = vadd.xlane.f32.xlu0 %v2288
    %v2290 = vpop.xlane.xlu0 %2289
    %v2291 = vadd.f32 %v2020, %v2022
    %v2292 = vadd.f32 %v2291, %v2024
    %2293 = vadd.xlane.f32.xlu0 %v2292
    %v2294 = vpop.xlane.xlu0 %2293
    %v2295 = vadd.f32 %v2026, %v2028
    %v2296 = vadd.f32 %v2295, %v2030
    %2297 = vadd.xlane.f32.xlu0 %v2296
    %v2298 = vpop.xlane.xlu0 %2297
    %v2299 = vadd.f32 %v2032, %v2034
    %v2300 = vadd.f32 %v2299, %v2036
    %2301 = vadd.xlane.f32.xlu0 %v2300
    %v2302 = vpop.xlane.xlu0 %2301
    %v2303 = vadd.f32 %v2038, %v2040
    %v2304 = vadd.f32 %v2303, %v2042
    %2305 = vadd.xlane.f32.xlu0 %v2304
    %v2306 = vpop.xlane.xlu0 %2305
    %v2307 = vadd.f32 %v2044, %v2046
    %v2308 = vadd.f32 %v2307, %v2048
    %2309 = vadd.xlane.f32.xlu0 %v2308
    %v2310 = vpop.xlane.xlu0 %2309
    %v2311 = vadd.f32 %v2050, %v2052
    %v2312 = vadd.f32 %v2311, %v2054
    %2313 = vadd.xlane.f32.xlu0 %v2312
    %v2314 = vpop.xlane.xlu0 %2313
    %v2315 = vadd.f32 %v2056, %v2058
    %v2316 = vadd.f32 %v2315, %v2060
    %2317 = vadd.xlane.f32.xlu0 %v2316
    %v2318 = vpop.xlane.xlu0 %2317
    %v2319 = vadd.f32 %v2062, %v2064
    %v2320 = vadd.f32 %v2319, %v2066
    %2321 = vadd.xlane.f32.xlu0 %v2320
    %v2322 = vpop.xlane.xlu0 %2321
    %v2323 = vadd.f32 %v2068, %v2070
    %v2324 = vadd.f32 %v2323, %v2072
    %2325 = vadd.xlane.f32.xlu0 %v2324
    %v2326 = vpop.xlane.xlu0 %2325
    %v2327 = vadd.f32 %v2074, %v2076
    %v2328 = vadd.f32 %v2327, %v2078
    %2329 = vadd.xlane.f32.xlu0 %v2328
    %v2330 = vpop.xlane.xlu0 %2329
    %v2331 = vadd.f32 %v2080, %v2082
    %v2332 = vadd.f32 %v2331, %v2084
    %2333 = vadd.xlane.f32.xlu0 %v2332
    %v2334 = vpop.xlane.xlu0 %2333
    %v2335 = vadd.f32 %v2086, %v2088
    %v2336 = vadd.f32 %v2335, %v2090
    %2337 = vadd.xlane.f32.xlu0 %v2336
    %v2338 = vpop.xlane.xlu0 %2337
    %v2339 = vadd.f32 %v2092, %v2094
    %v2340 = vadd.f32 %v2339, %v2096
    %2341 = vadd.xlane.f32.xlu0 %v2340
    %v2342 = vpop.xlane.xlu0 %2341
    %v2343 = vadd.f32 %v2098, %v2100
    %v2344 = vadd.f32 %v2343, %v2102
    %2345 = vadd.xlane.f32.xlu0 %v2344
    %v2346 = vpop.xlane.xlu0 %2345
    %v2347 = vadd.f32 %v2104, %v2106
    %v2348 = vadd.f32 %v2347, %v2108
    %2349 = vadd.xlane.f32.xlu0 %v2348
    %v2350 = vpop.xlane.xlu0 %2349
    %v2351 = vadd.f32 %v2110, %v2112
    %v2352 = vadd.f32 %v2351, %v2114
    %2353 = vadd.xlane.f32.xlu0 %v2352
    %v2354 = vpop.xlane.xlu0 %2353
    %v2355 = vadd.f32 %v2116, %v2118
    %v2356 = vadd.f32 %v2355, %v2120
    %2357 = vadd.xlane.f32.xlu0 %v2356
    %v2358 = vpop.xlane.xlu0 %2357
    %v2359 = vadd.f32 %v2122, %v2124
    %v2360 = vadd.f32 %v2359, %v2126
    %2361 = vadd.xlane.f32.xlu0 %v2360
    %v2362 = vpop.xlane.xlu0 %2361
    %v2363 = vadd.f32 %v2128, %v2130
    %v2364 = vadd.f32 %v2363, %v2132
    %2365 = vadd.xlane.f32.xlu0 %v2364
    %v2366 = vpop.xlane.xlu0 %2365
    %v2367 = vadd.f32 %v2134, %v2136
    %v2368 = vadd.f32 %v2367, %v2138
    %2369 = vadd.xlane.f32.xlu0 %v2368
    %v2370 = vpop.xlane.xlu0 %2369
    %v2371 = vadd.f32 %v2140, %v2142
    %v2372 = vadd.f32 %v2371, %v2144
    %2373 = vadd.xlane.f32.xlu0 %v2372
    %v2374 = vpop.xlane.xlu0 %2373
    %v2375 = vadd.f32 %v2146, %v2148
    %v2376 = vadd.f32 %v2375, %v2150
    %2377 = vadd.xlane.f32.xlu0 %v2376
    %v2378 = vpop.xlane.xlu0 %2377
    %v2379 = vadd.f32 %v2152, %v2154
    %v2380 = vadd.f32 %v2379, %v2156
    %2381 = vadd.xlane.f32.xlu0 %v2380
    %v2382 = vpop.xlane.xlu0 %2381
    %v2383 = vadd.f32 %v2158, %v2160
    %v2384 = vadd.f32 %v2383, %v2162
    %2385 = vadd.xlane.f32.xlu0 %v2384
    %v2386 = vpop.xlane.xlu0 %2385
    %v2387 = vadd.f32 %v2164, %v2166
    %v2388 = vadd.f32 %v2387, %v2168
    %2389 = vadd.xlane.f32.xlu0 %v2388
    %v2390 = vpop.xlane.xlu0 %2389
    %v2391 = vadd.f32 %v2170, %v2172
    %v2392 = vadd.f32 %v2391, %v2174
    %2393 = vadd.xlane.f32.xlu0 %v2392
    %v2394 = vpop.xlane.xlu0 %2393
    %v2395 = vadd.f32 %v2176, %v2178
    %v2396 = vadd.f32 %v2395, %v2180
    %2397 = vadd.xlane.f32.xlu0 %v2396
    %v2398 = vpop.xlane.xlu0 %2397
    %v2399 = vadd.f32 %v2182, %v2184
    %v2400 = vadd.f32 %v2399, %v2186
    %2401 = vadd.xlane.f32.xlu0 %v2400
    %v2402 = vpop.xlane.xlu0 %2401
    %v2403 = vadd.f32 %v2188, %v2190
    %v2404 = vadd.f32 %v2403, %v2192
    %2405 = vadd.xlane.f32.xlu0 %v2404
    %v2406 = vpop.xlane.xlu0 %2405
    %v2407 = vadd.f32 %v2194, %v2196
    %v2408 = vadd.f32 %v2407, %v2198
    %2409 = vadd.xlane.f32.xlu0 %v2408
    %v2410 = vpop.xlane.xlu0 %2409
    %v2411 = vadd.f32 %v2200, %v2202
    %v2412 = vadd.f32 %v2411, %v2204
    %2413 = vadd.xlane.f32.xlu0 %v2412
    %v2414 = vpop.xlane.xlu0 %2413
    %v2415 = vadd.f32 %v2206, %v2208
    %v2416 = vadd.f32 %v2415, %v2210
    %2417 = vadd.xlane.f32.xlu0 %v2416
    %v2418 = vpop.xlane.xlu0 %2417
    %v2419 = vadd.f32 %v2212, %v2214
    %v2420 = vadd.f32 %v2419, %v2216
    %2421 = vadd.xlane.f32.xlu0 %v2420
    %v2422 = vpop.xlane.xlu0 %2421
    %v2423 = vadd.f32 %v2218, %v2220
    %v2424 = vadd.f32 %v2423, %v2222
    %2425 = vadd.xlane.f32.xlu0 %v2424
    %v2426 = vpop.xlane.xlu0 %2425
    %v2427 = vadd.f32 %v2224, %v2226
    %v2428 = vadd.f32 %v2427, %v2228
    %2429 = vadd.xlane.f32.xlu0 %v2428
    %v2430 = vpop.xlane.xlu0 %2429
    %v2431 = vadd.f32 %v2230, %v2232
    %v2432 = vadd.f32 %v2431, %v2234
    %2433 = vadd.xlane.f32.xlu0 %v2432
    %v2434 = vpop.xlane.xlu0 %2433
    %v2435 = vadd.f32 %v2236, %v2238
    %v2436 = vadd.f32 %v2435, %v2240
    %2437 = vadd.xlane.f32.xlu0 %v2436
    %v2438 = vpop.xlane.xlu0 %2437
    %v2439 = vadd.f32 %v2242, %v2244
    %v2440 = vadd.f32 %v2439, %v2246
    %2441 = vadd.xlane.f32.xlu0 %v2440
    %v2442 = vpop.xlane.xlu0 %2441
    %v2443 = vadd.f32 %v2248, %v2250
    %v2444 = vadd.f32 %v2443, %v2252
    %2445 = vadd.xlane.f32.xlu0 %v2444
    %v2446 = vpop.xlane.xlu0 %2445
    %v2447 = vadd.f32 %v2254, %v2256
    %v2448 = vadd.f32 %v2447, %v2258
    %2449 = vadd.xlane.f32.xlu0 %v2448
    %v2450 = vpop.xlane.xlu0 %2449
    %v2451 = vadd.f32 %v1539, %v2262
    %v2452 = vadd.f32 %v1540, %v2266
    %v2453 = vadd.f32 %v1541, %v2270
    %v2454 = vadd.f32 %v1542, %v2274
    %v2455 = vadd.f32 %v1543, %v2278
    %v2456 = vadd.f32 %v1544, %v2282
    %v2457 = vadd.f32 %v1545, %v2286
    %v2458 = vadd.f32 %v1546, %v2290
    %v2459 = vadd.f32 %v1547, %v2294
    %v2460 = vadd.f32 %v1548, %v2298
    %v2461 = vadd.f32 %v1549, %v2302
    %v2462 = vadd.f32 %v1550, %v2306
    %v2463 = vadd.f32 %v1551, %v2310
    %v2464 = vadd.f32 %v1552, %v2314
    %v2465 = vadd.f32 %v1553, %v2318
    %v2466 = vadd.f32 %v1554, %v2322
    %v2467 = vadd.f32 %v1555, %v2326
    %v2468 = vadd.f32 %v1556, %v2330
    %v2469 = vadd.f32 %v1557, %v2334
    %v2470 = vadd.f32 %v1558, %v2338
    %v2471 = vadd.f32 %v1559, %v2342
    %v2472 = vadd.f32 %v1560, %v2346
    %v2473 = vadd.f32 %v1561, %v2350
    %v2474 = vadd.f32 %v1562, %v2354
    %v2475 = vadd.f32 %v1563, %v2358
    %v2476 = vadd.f32 %v1564, %v2362
    %v2477 = vadd.f32 %v1565, %v2366
    %v2478 = vadd.f32 %v1566, %v2370
    %v2479 = vadd.f32 %v1567, %v2374
    %v2480 = vadd.f32 %v1568, %v2378
    %v2481 = vadd.f32 %v1569, %v2382
    %v2482 = vadd.f32 %v1570, %v2386
    %v2483 = vadd.f32 %v1571, %v2390
    %v2484 = vadd.f32 %v1572, %v2394
    %v2485 = vadd.f32 %v1573, %v2398
    %v2486 = vadd.f32 %v1574, %v2402
    %v2487 = vadd.f32 %v1575, %v2406
    %v2488 = vadd.f32 %v1576, %v2410
    %v2489 = vadd.f32 %v1577, %v2414
    %v2490 = vadd.f32 %v1578, %v2418
    %v2491 = vadd.f32 %v1579, %v2422
    %v2492 = vadd.f32 %v1580, %v2426
    %v2493 = vadd.f32 %v1581, %v2430
    %v2494 = vadd.f32 %v1582, %v2434
    %v2495 = vadd.f32 %v1583, %v2438
    %v2496 = vadd.f32 %v1584, %v2442
    %v2497 = vadd.f32 %v1585, %v2446
    %v2498 = vadd.f32 %v1586, %v2450
    %vm2499 = vcmask 7168
    %2500 = vst.msk [vmem:[#allocation3] sm:$0xff] %vm2499, %v2451
    %2501 = vst.msk [vmem:[#allocation3 + $0x8] sm:$0xff] %vm2499, %v2452
    %2502 = vst.msk [vmem:[#allocation3 + $0x10] sm:$0xff] %vm2499, %v2453
    %2503 = vst.msk [vmem:[#allocation3 + $0x18] sm:$0xff] %vm2499, %v2454
    %2504 = vst.msk [vmem:[#allocation3 + $0x20] sm:$0xff] %vm2499, %v2455
    %2505 = vst.msk [vmem:[#allocation3 + $0x28] sm:$0xff] %vm2499, %v2456
    %2506 = vst.msk [vmem:[#allocation3 + $0x30] sm:$0xff] %vm2499, %v2457
    %2507 = vst.msk [vmem:[#allocation3 + $0x38] sm:$0xff] %vm2499, %v2458
    %2508 = vst.msk [vmem:[#allocation3 + $0x40] sm:$0xff] %vm2499, %v2459
    %2509 = vst.msk [vmem:[#allocation3 + $0x48] sm:$0xff] %vm2499, %v2460
    %2510 = vst.msk [vmem:[#allocation3 + $0x50] sm:$0xff] %vm2499, %v2461
    %2511 = vst.msk [vmem:[#allocation3 + $0x58] sm:$0xff] %vm2499, %v2462
    %2512 = vst.msk [vmem:[#allocation3 + $0x60] sm:$0xff] %vm2499, %v2463
    %2513 = vst.msk [vmem:[#allocation3 + $0x68] sm:$0xff] %vm2499, %v2464
    %2514 = vst.msk [vmem:[#allocation3 + $0x70] sm:$0xff] %vm2499, %v2465
    %2515 = vst.msk [vmem:[#allocation3 + $0x78] sm:$0xff] %vm2499, %v2466
    %2516 = vst.msk [vmem:[#allocation3 + $0x80] sm:$0xff] %vm2499, %v2467
    %2517 = vst.msk [vmem:[#allocation3 + $0x88] sm:$0xff] %vm2499, %v2468
    %2518 = vst.msk [vmem:[#allocation3 + $0x90] sm:$0xff] %vm2499, %v2469
    %2519 = vst.msk [vmem:[#allocation3 + $0x98] sm:$0xff] %vm2499, %v2470
    %2520 = vst.msk [vmem:[#allocation3 + $0xa0] sm:$0xff] %vm2499, %v2471
    %2521 = vst.msk [vmem:[#allocation3 + $0xa8] sm:$0xff] %vm2499, %v2472
    %2522 = vst.msk [vmem:[#allocation3 + $0xb0] sm:$0xff] %vm2499, %v2473
    %2523 = vst.msk [vmem:[#allocation3 + $0xb8] sm:$0xff] %vm2499, %v2474
    %2524 = vst.msk [vmem:[#allocation3 + $0xc0] sm:$0xff] %vm2499, %v2475
    %2525 = vst.msk [vmem:[#allocation3 + $0xc8] sm:$0xff] %vm2499, %v2476
    %2526 = vst.msk [vmem:[#allocation3 + $0xd0] sm:$0xff] %vm2499, %v2477
    %2527 = vst.msk [vmem:[#allocation3 + $0xd8] sm:$0xff] %vm2499, %v2478
    %2528 = vst.msk [vmem:[#allocation3 + $0xe0] sm:$0xff] %vm2499, %v2479
    %2529 = vst.msk [vmem:[#allocation3 + $0xe8] sm:$0xff] %vm2499, %v2480
    %2530 = vst.msk [vmem:[#allocation3 + $0xf0] sm:$0xff] %vm2499, %v2481
    %2531 = vst.msk [vmem:[#allocation3 + $0xf8] sm:$0xff] %vm2499, %v2482
    %2532 = vst.msk [vmem:[#allocation3 + $0x100] sm:$0xff] %vm2499, %v2483
    %2533 = vst.msk [vmem:[#allocation3 + $0x108] sm:$0xff] %vm2499, %v2484
    %2534 = vst.msk [vmem:[#allocation3 + $0x110] sm:$0xff] %vm2499, %v2485
    %2535 = vst.msk [vmem:[#allocation3 + $0x118] sm:$0xff] %vm2499, %v2486
    %2536 = vst.msk [vmem:[#allocation3 + $0x120] sm:$0xff] %vm2499, %v2487
    %2537 = vst.msk [vmem:[#allocation3 + $0x128] sm:$0xff] %vm2499, %v2488
    %2538 = vst.msk [vmem:[#allocation3 + $0x130] sm:$0xff] %vm2499, %v2489
    %2539 = vst.msk [vmem:[#allocation3 + $0x138] sm:$0xff] %vm2499, %v2490
    %2540 = vst.msk [vmem:[#allocation3 + $0x140] sm:$0xff] %vm2499, %v2491
    %2541 = vst.msk [vmem:[#allocation3 + $0x148] sm:$0xff] %vm2499, %v2492
    %2542 = vst.msk [vmem:[#allocation3 + $0x150] sm:$0xff] %vm2499, %v2493
    %2543 = vst.msk [vmem:[#allocation3 + $0x158] sm:$0xff] %vm2499, %v2494
    %2544 = vst.msk [vmem:[#allocation3 + $0x160] sm:$0xff] %vm2499, %v2495
    %2545 = vst.msk [vmem:[#allocation3 + $0x168] sm:$0xff] %vm2499, %v2496
    %2546 = vst.msk [vmem:[#allocation3 + $0x170] sm:$0xff] %vm2499, %v2497
    %2547 = vst.msk [vmem:[#allocation3 + $0x178] sm:$0xff] %vm2499, %v2498
    %2548 = vst.msk [vmem:[#allocation2] sm:$0xff] %vm2499, %v1299
    %2549 = vst.msk [vmem:[#allocation2 + $0x8] sm:$0xff] %vm2499, %v1300
    %2550 = vst.msk [vmem:[#allocation2 + $0x10] sm:$0xff] %vm2499, %v1301
    %2551 = vst.msk [vmem:[#allocation2 + $0x18] sm:$0xff] %vm2499, %v1302
    %2552 = vst.msk [vmem:[#allocation2 + $0x20] sm:$0xff] %vm2499, %v1303
    %2553 = vst.msk [vmem:[#allocation2 + $0x28] sm:$0xff] %vm2499, %v1304
    %2554 = vst.msk [vmem:[#allocation2 + $0x30] sm:$0xff] %vm2499, %v1305
    %2555 = vst.msk [vmem:[#allocation2 + $0x38] sm:$0xff] %vm2499, %v1306
    %2556 = vst.msk [vmem:[#allocation2 + $0x40] sm:$0xff] %vm2499, %v1307
    %2557 = vst.msk [vmem:[#allocation2 + $0x48] sm:$0xff] %vm2499, %v1308
    %2558 = vst.msk [vmem:[#allocation2 + $0x50] sm:$0xff] %vm2499, %v1309
    %2559 = vst.msk [vmem:[#allocation2 + $0x58] sm:$0xff] %vm2499, %v1310
    %2560 = vst.msk [vmem:[#allocation2 + $0x60] sm:$0xff] %vm2499, %v1311
    %2561 = vst.msk [vmem:[#allocation2 + $0x68] sm:$0xff] %vm2499, %v1312
    %2562 = vst.msk [vmem:[#allocation2 + $0x70] sm:$0xff] %vm2499, %v1313
    %2563 = vst.msk [vmem:[#allocation2 + $0x78] sm:$0xff] %vm2499, %v1314
    %2564 = vst.msk [vmem:[#allocation2 + $0x80] sm:$0xff] %vm2499, %v1315
    %2565 = vst.msk [vmem:[#allocation2 + $0x88] sm:$0xff] %vm2499, %v1316
    %2566 = vst.msk [vmem:[#allocation2 + $0x90] sm:$0xff] %vm2499, %v1317
    %2567 = vst.msk [vmem:[#allocation2 + $0x98] sm:$0xff] %vm2499, %v1318
    %2568 = vst.msk [vmem:[#allocation2 + $0xa0] sm:$0xff] %vm2499, %v1319
    %2569 = vst.msk [vmem:[#allocation2 + $0xa8] sm:$0xff] %vm2499, %v1320
    %2570 = vst.msk [vmem:[#allocation2 + $0xb0] sm:$0xff] %vm2499, %v1321
    %2571 = vst.msk [vmem:[#allocation2 + $0xb8] sm:$0xff] %vm2499, %v1322
    %2572 = vst.msk [vmem:[#allocation2 + $0xc0] sm:$0xff] %vm2499, %v1323
    %2573 = vst.msk [vmem:[#allocation2 + $0xc8] sm:$0xff] %vm2499, %v1324
    %2574 = vst.msk [vmem:[#allocation2 + $0xd0] sm:$0xff] %vm2499, %v1325
    %2575 = vst.msk [vmem:[#allocation2 + $0xd8] sm:$0xff] %vm2499, %v1326
    %2576 = vst.msk [vmem:[#allocation2 + $0xe0] sm:$0xff] %vm2499, %v1327
    %2577 = vst.msk [vmem:[#allocation2 + $0xe8] sm:$0xff] %vm2499, %v1328
    %2578 = vst.msk [vmem:[#allocation2 + $0xf0] sm:$0xff] %vm2499, %v1329
    %2579 = vst.msk [vmem:[#allocation2 + $0xf8] sm:$0xff] %vm2499, %v1330
    %2580 = vst.msk [vmem:[#allocation2 + $0x100] sm:$0xff] %vm2499, %v1331
    %2581 = vst.msk [vmem:[#allocation2 + $0x108] sm:$0xff] %vm2499, %v1332
    %2582 = vst.msk [vmem:[#allocation2 + $0x110] sm:$0xff] %vm2499, %v1333
    %2583 = vst.msk [vmem:[#allocation2 + $0x118] sm:$0xff] %vm2499, %v1334
    %2584 = vst.msk [vmem:[#allocation2 + $0x120] sm:$0xff] %vm2499, %v1335
    %2585 = vst.msk [vmem:[#allocation2 + $0x128] sm:$0xff] %vm2499, %v1336
    %2586 = vst.msk [vmem:[#allocation2 + $0x130] sm:$0xff] %vm2499, %v1337
    %2587 = vst.msk [vmem:[#allocation2 + $0x138] sm:$0xff] %vm2499, %v1338
    %2588 = vst.msk [vmem:[#allocation2 + $0x140] sm:$0xff] %vm2499, %v1339
    %2589 = vst.msk [vmem:[#allocation2 + $0x148] sm:$0xff] %vm2499, %v1340
    %2590 = vst.msk [vmem:[#allocation2 + $0x150] sm:$0xff] %vm2499, %v1341
    %2591 = vst.msk [vmem:[#allocation2 + $0x158] sm:$0xff] %vm2499, %v1342
    %2592 = vst.msk [vmem:[#allocation2 + $0x160] sm:$0xff] %vm2499, %v1343
    %2593 = vst.msk [vmem:[#allocation2 + $0x168] sm:$0xff] %vm2499, %v1344
    %2594 = vst.msk [vmem:[#allocation2 + $0x170] sm:$0xff] %vm2499, %v1345
    %2595 = vst.msk [vmem:[#allocation2 + $0x178] sm:$0xff] %vm2499, %v1346
    // Predicated region
    $region18: #{tpu_custom_call.1} parent=1 // pred_check
      %p2596 = pneg %p27
    $region19: #{tpu_custom_call.1} parent=1 // pred_check_branch
      %2598 = sbr.rel (%p2596) target = $region21
    $region20: #{tpu_custom_call.1} parent=1 // pred_region
      %v2599 = vld [vmem:[#allocation2] sm:$0xff]
      %v2600 = vld [vmem:[#allocation2 + $0x8] sm:$0xff]
      %v2601 = vld [vmem:[#allocation2 + $0x10] sm:$0xff]
      %v2602 = vld [vmem:[#allocation2 + $0x18] sm:$0xff]
      %v2603 = vld [vmem:[#allocation2 + $0x20] sm:$0xff]
      %v2604 = vld [vmem:[#allocation2 + $0x28] sm:$0xff]
      %v2605 = vld [vmem:[#allocation2 + $0x30] sm:$0xff]
      %v2606 = vld [vmem:[#allocation2 + $0x38] sm:$0xff]
      %v2607 = vld [vmem:[#allocation2 + $0x40] sm:$0xff]
      %v2608 = vld [vmem:[#allocation2 + $0x48] sm:$0xff]
      %v2609 = vld [vmem:[#allocation2 + $0x50] sm:$0xff]
      %v2610 = vld [vmem:[#allocation2 + $0x58] sm:$0xff]
      %v2611 = vld [vmem:[#allocation2 + $0x60] sm:$0xff]
      %v2612 = vld [vmem:[#allocation2 + $0x68] sm:$0xff]
      %v2613 = vld [vmem:[#allocation2 + $0x70] sm:$0xff]
      %v2614 = vld [vmem:[#allocation2 + $0x78] sm:$0xff]
      %v2615 = vld [vmem:[#allocation2 + $0x80] sm:$0xff]
      %v2616 = vld [vmem:[#allocation2 + $0x88] sm:$0xff]
      %v2617 = vld [vmem:[#allocation2 + $0x90] sm:$0xff]
      %v2618 = vld [vmem:[#allocation2 + $0x98] sm:$0xff]
      %v2619 = vld [vmem:[#allocation2 + $0xa0] sm:$0xff]
      %v2620 = vld [vmem:[#allocation2 + $0xa8] sm:$0xff]
      %v2621 = vld [vmem:[#allocation2 + $0xb0] sm:$0xff]
      %v2622 = vld [vmem:[#allocation2 + $0xb8] sm:$0xff]
      %v2623 = vld [vmem:[#allocation2 + $0xc0] sm:$0xff]
      %v2624 = vld [vmem:[#allocation2 + $0xc8] sm:$0xff]
      %v2625 = vld [vmem:[#allocation2 + $0xd0] sm:$0xff]
      %v2626 = vld [vmem:[#allocation2 + $0xd8] sm:$0xff]
      %v2627 = vld [vmem:[#allocation2 + $0xe0] sm:$0xff]
      %v2628 = vld [vmem:[#allocation2 + $0xe8] sm:$0xff]
      %v2629 = vld [vmem:[#allocation2 + $0xf0] sm:$0xff]
      %v2630 = vld [vmem:[#allocation2 + $0xf8] sm:$0xff]
      %v2631 = vld [vmem:[#allocation2 + $0x100] sm:$0xff]
      %v2632 = vld [vmem:[#allocation2 + $0x108] sm:$0xff]
      %v2633 = vld [vmem:[#allocation2 + $0x110] sm:$0xff]
      %v2634 = vld [vmem:[#allocation2 + $0x118] sm:$0xff]
      %v2635 = vld [vmem:[#allocation2 + $0x120] sm:$0xff]
      %v2636 = vld [vmem:[#allocation2 + $0x128] sm:$0xff]
      %v2637 = vld [vmem:[#allocation2 + $0x130] sm:$0xff]
      %v2638 = vld [vmem:[#allocation2 + $0x138] sm:$0xff]
      %v2639 = vld [vmem:[#allocation2 + $0x140] sm:$0xff]
      %v2640 = vld [vmem:[#allocation2 + $0x148] sm:$0xff]
      %v2641 = vld [vmem:[#allocation2 + $0x150] sm:$0xff]
      %v2642 = vld [vmem:[#allocation2 + $0x158] sm:$0xff]
      %v2643 = vld [vmem:[#allocation2 + $0x160] sm:$0xff]
      %v2644 = vld [vmem:[#allocation2 + $0x168] sm:$0xff]
      %v2645 = vld [vmem:[#allocation2 + $0x170] sm:$0xff]
      %v2646 = vld [vmem:[#allocation2 + $0x178] sm:$0xff]
      %v2647 = vld [vmem:[#allocation3] sm:$0xff]
      %v2648 = vld [vmem:[#allocation3 + $0x8] sm:$0xff]
      %v2649 = vld [vmem:[#allocation3 + $0x10] sm:$0xff]
      %v2650 = vld [vmem:[#allocation3 + $0x18] sm:$0xff]
      %v2651 = vld [vmem:[#allocation3 + $0x20] sm:$0xff]
      %v2652 = vld [vmem:[#allocation3 + $0x28] sm:$0xff]
      %v2653 = vld [vmem:[#allocation3 + $0x30] sm:$0xff]
      %v2654 = vld [vmem:[#allocation3 + $0x38] sm:$0xff]
      %v2655 = vld [vmem:[#allocation3 + $0x40] sm:$0xff]
      %v2656 = vld [vmem:[#allocation3 + $0x48] sm:$0xff]
      %v2657 = vld [vmem:[#allocation3 + $0x50] sm:$0xff]
      %v2658 = vld [vmem:[#allocation3 + $0x58] sm:$0xff]
      %v2659 = vld [vmem:[#allocation3 + $0x60] sm:$0xff]
      %v2660 = vld [vmem:[#allocation3 + $0x68] sm:$0xff]
      %v2661 = vld [vmem:[#allocation3 + $0x70] sm:$0xff]
      %v2662 = vld [vmem:[#allocation3 + $0x78] sm:$0xff]
      %v2663 = vld [vmem:[#allocation3 + $0x80] sm:$0xff]
      %v2664 = vld [vmem:[#allocation3 + $0x88] sm:$0xff]
      %v2665 = vld [vmem:[#allocation3 + $0x90] sm:$0xff]
      %v2666 = vld [vmem:[#allocation3 + $0x98] sm:$0xff]
      %v2667 = vld [vmem:[#allocation3 + $0xa0] sm:$0xff]
      %v2668 = vld [vmem:[#allocation3 + $0xa8] sm:$0xff]
      %v2669 = vld [vmem:[#allocation3 + $0xb0] sm:$0xff]
      %v2670 = vld [vmem:[#allocation3 + $0xb8] sm:$0xff]
      %v2671 = vld [vmem:[#allocation3 + $0xc0] sm:$0xff]
      %v2672 = vld [vmem:[#allocation3 + $0xc8] sm:$0xff]
      %v2673 = vld [vmem:[#allocation3 + $0xd0] sm:$0xff]
      %v2674 = vld [vmem:[#allocation3 + $0xd8] sm:$0xff]
      %v2675 = vld [vmem:[#allocation3 + $0xe0] sm:$0xff]
      %v2676 = vld [vmem:[#allocation3 + $0xe8] sm:$0xff]
      %v2677 = vld [vmem:[#allocation3 + $0xf0] sm:$0xff]
      %v2678 = vld [vmem:[#allocation3 + $0xf8] sm:$0xff]
      %v2679 = vld [vmem:[#allocation3 + $0x100] sm:$0xff]
      %v2680 = vld [vmem:[#allocation3 + $0x108] sm:$0xff]
      %v2681 = vld [vmem:[#allocation3 + $0x110] sm:$0xff]
      %v2682 = vld [vmem:[#allocation3 + $0x118] sm:$0xff]
      %v2683 = vld [vmem:[#allocation3 + $0x120] sm:$0xff]
      %v2684 = vld [vmem:[#allocation3 + $0x128] sm:$0xff]
      %v2685 = vld [vmem:[#allocation3 + $0x130] sm:$0xff]
      %v2686 = vld [vmem:[#allocation3 + $0x138] sm:$0xff]
      %v2687 = vld [vmem:[#allocation3 + $0x140] sm:$0xff]
      %v2688 = vld [vmem:[#allocation3 + $0x148] sm:$0xff]
      %v2689 = vld [vmem:[#allocation3 + $0x150] sm:$0xff]
      %v2690 = vld [vmem:[#allocation3 + $0x158] sm:$0xff]
      %v2691 = vld [vmem:[#allocation3 + $0x160] sm:$0xff]
      %v2692 = vld [vmem:[#allocation3 + $0x168] sm:$0xff]
      %v2693 = vld [vmem:[#allocation3 + $0x170] sm:$0xff]
      %v2694 = vld [vmem:[#allocation3 + $0x178] sm:$0xff]
      %v2695 = vlog2.pop %v2647
      %v2696 = vmul.f32 %v2695, 0.6931472
      %v2697 = vlog2.pop %v2648
      %v2698 = vmul.f32 %v2697, 0.6931472
      %v2699 = vlog2.pop %v2649
      %v2700 = vmul.f32 %v2699, 0.6931472
      %v2701 = vlog2.pop %v2650
      %v2702 = vmul.f32 %v2701, 0.6931472
      %v2703 = vlog2.pop %v2651
      %v2704 = vmul.f32 %v2703, 0.6931472
      %v2705 = vlog2.pop %v2652
      %v2706 = vmul.f32 %v2705, 0.6931472
      %v2707 = vlog2.pop %v2653
      %v2708 = vmul.f32 %v2707, 0.6931472
      %v2709 = vlog2.pop %v2654
      %v2710 = vmul.f32 %v2709, 0.6931472
      %v2711 = vlog2.pop %v2655
      %v2712 = vmul.f32 %v2711, 0.6931472
      %v2713 = vlog2.pop %v2656
      %v2714 = vmul.f32 %v2713, 0.6931472
      %v2715 = vlog2.pop %v2657
      %v2716 = vmul.f32 %v2715, 0.6931472
      %v2717 = vlog2.pop %v2658
      %v2718 = vmul.f32 %v2717, 0.6931472
      %v2719 = vlog2.pop %v2659
      %v2720 = vmul.f32 %v2719, 0.6931472
      %v2721 = vlog2.pop %v2660
      %v2722 = vmul.f32 %v2721, 0.6931472
      %v2723 = vlog2.pop %v2661
      %v2724 = vmul.f32 %v2723, 0.6931472
      %v2725 = vlog2.pop %v2662
      %v2726 = vmul.f32 %v2725, 0.6931472
      %v2727 = vlog2.pop %v2663
      %v2728 = vmul.f32 %v2727, 0.6931472
      %v2729 = vlog2.pop %v2664
      %v2730 = vmul.f32 %v2729, 0.6931472
      %v2731 = vlog2.pop %v2665
      %v2732 = vmul.f32 %v2731, 0.6931472
      %v2733 = vlog2.pop %v2666
      %v2734 = vmul.f32 %v2733, 0.6931472
      %v2735 = vlog2.pop %v2667
      %v2736 = vmul.f32 %v2735, 0.6931472
      %v2737 = vlog2.pop %v2668
      %v2738 = vmul.f32 %v2737, 0.6931472
      %v2739 = vlog2.pop %v2669
      %v2740 = vmul.f32 %v2739, 0.6931472
      %v2741 = vlog2.pop %v2670
      %v2742 = vmul.f32 %v2741, 0.6931472
      %v2743 = vlog2.pop %v2671
      %v2744 = vmul.f32 %v2743, 0.6931472
      %v2745 = vlog2.pop %v2672
      %v2746 = vmul.f32 %v2745, 0.6931472
      %v2747 = vlog2.pop %v2673
      %v2748 = vmul.f32 %v2747, 0.6931472
      %v2749 = vlog2.pop %v2674
      %v2750 = vmul.f32 %v2749, 0.6931472
      %v2751 = vlog2.pop %v2675
      %v2752 = vmul.f32 %v2751, 0.6931472
      %v2753 = vlog2.pop %v2676
      %v2754 = vmul.f32 %v2753, 0.6931472
      %v2755 = vlog2.pop %v2677
      %v2756 = vmul.f32 %v2755, 0.6931472
      %v2757 = vlog2.pop %v2678
      %v2758 = vmul.f32 %v2757, 0.6931472
      %v2759 = vlog2.pop %v2679
      %v2760 = vmul.f32 %v2759, 0.6931472
      %v2761 = vlog2.pop %v2680
      %v2762 = vmul.f32 %v2761, 0.6931472
      %v2763 = vlog2.pop %v2681
      %v2764 = vmul.f32 %v2763, 0.6931472
      %v2765 = vlog2.pop %v2682
      %v2766 = vmul.f32 %v2765, 0.6931472
      %v2767 = vlog2.pop %v2683
      %v2768 = vmul.f32 %v2767, 0.6931472
      %v2769 = vlog2.pop %v2684
      %v2770 = vmul.f32 %v2769, 0.6931472
      %v2771 = vlog2.pop %v2685
      %v2772 = vmul.f32 %v2771, 0.6931472
      %v2773 = vlog2.pop %v2686
      %v2774 = vmul.f32 %v2773, 0.6931472
      %v2775 = vlog2.pop %v2687
      %v2776 = vmul.f32 %v2775, 0.6931472
      %v2777 = vlog2.pop %v2688
      %v2778 = vmul.f32 %v2777, 0.6931472
      %v2779 = vlog2.pop %v2689
      %v2780 = vmul.f32 %v2779, 0.6931472
      %v2781 = vlog2.pop %v2690
      %v2782 = vmul.f32 %v2781, 0.6931472
      %v2783 = vlog2.pop %v2691
      %v2784 = vmul.f32 %v2783, 0.6931472
      %v2785 = vlog2.pop %v2692
      %v2786 = vmul.f32 %v2785, 0.6931472
      %v2787 = vlog2.pop %v2693
      %v2788 = vmul.f32 %v2787, 0.6931472
      %v2789 = vlog2.pop %v2694
      %v2790 = vmul.f32 %v2789, 0.6931472
      %v2791 = vadd.f32 %v2599, %v2696
      %v2792 = vadd.f32 %v2600, %v2698
      %v2793 = vadd.f32 %v2601, %v2700
      %v2794 = vadd.f32 %v2602, %v2702
      %v2795 = vadd.f32 %v2603, %v2704
      %v2796 = vadd.f32 %v2604, %v2706
      %v2797 = vadd.f32 %v2605, %v2708
      %v2798 = vadd.f32 %v2606, %v2710
      %v2799 = vadd.f32 %v2607, %v2712
      %v2800 = vadd.f32 %v2608, %v2714
      %v2801 = vadd.f32 %v2609, %v2716
      %v2802 = vadd.f32 %v2610, %v2718
      %v2803 = vadd.f32 %v2611, %v2720
      %v2804 = vadd.f32 %v2612, %v2722
      %v2805 = vadd.f32 %v2613, %v2724
      %v2806 = vadd.f32 %v2614, %v2726
      %v2807 = vadd.f32 %v2615, %v2728
      %v2808 = vadd.f32 %v2616, %v2730
      %v2809 = vadd.f32 %v2617, %v2732
      %v2810 = vadd.f32 %v2618, %v2734
      %v2811 = vadd.f32 %v2619, %v2736
      %v2812 = vadd.f32 %v2620, %v2738
      %v2813 = vadd.f32 %v2621, %v2740
      %v2814 = vadd.f32 %v2622, %v2742
      %v2815 = vadd.f32 %v2623, %v2744
      %v2816 = vadd.f32 %v2624, %v2746
      %v2817 = vadd.f32 %v2625, %v2748
      %v2818 = vadd.f32 %v2626, %v2750
      %v2819 = vadd.f32 %v2627, %v2752
      %v2820 = vadd.f32 %v2628, %v2754
      %v2821 = vadd.f32 %v2629, %v2756
      %v2822 = vadd.f32 %v2630, %v2758
      %v2823 = vadd.f32 %v2631, %v2760
      %v2824 = vadd.f32 %v2632, %v2762
      %v2825 = vadd.f32 %v2633, %v2764
      %v2826 = vadd.f32 %v2634, %v2766
      %v2827 = vadd.f32 %v2635, %v2768
      %v2828 = vadd.f32 %v2636, %v2770
      %v2829 = vadd.f32 %v2637, %v2772
      %v2830 = vadd.f32 %v2638, %v2774
      %v2831 = vadd.f32 %v2639, %v2776
      %v2832 = vadd.f32 %v2640, %v2778
      %v2833 = vadd.f32 %v2641, %v2780
      %v2834 = vadd.f32 %v2642, %v2782
      %v2835 = vadd.f32 %v2643, %v2784
      %v2836 = vadd.f32 %v2644, %v2786
      %v2837 = vadd.f32 %v2645, %v2788
      %v2838 = vadd.f32 %v2646, %v2790
      %v2839 = vlaneseq
      %v2840 = vshrl.u32 %v2839, 7
      %v2841 = vadd.s32 %v2840, 8
      %v2842 = vadd.s32 %v2840, 16
      %v2843 = vadd.s32 %v2840, 24
      %v2844 = vadd.s32 %v2840, 32
      %v2845 = vadd.s32 %v2840, 40
      %v2846 = vadd.s32 %v2840, 48
      %v2847 = vadd.s32 %v2840, 56
      %v2848 = vadd.s32 %v2840, 64
      %v2849 = vadd.s32 %v2840, 72
      %v2850 = vadd.s32 %v2840, 80
      %v2851 = vadd.s32 %v2840, 88
      %v2852 = vadd.s32 %v2840, 96
      %v2853 = vadd.s32 %v2840, 104
      %v2854 = vadd.s32 %v2840, 112
      %v2855 = vadd.s32 %v2840, 120
      %v2856 = vadd.s32 %v2840, 128
      %v2857 = vadd.s32 %v2840, 136
      %v2858 = vadd.s32 %v2840, 144
      %v2859 = vadd.s32 %v2840, 152
      %v2860 = vadd.s32 %v2840, 160
      %v2861 = vadd.s32 %v2840, 168
      %v2862 = vadd.s32 %v2840, 176
      %v2863 = vadd.s32 %v2840, 184
      %v2864 = vadd.s32 %v2840, 192
      %v2865 = vadd.s32 %v2840, 200
      %v2866 = vadd.s32 %v2840, 208
      %v2867 = vadd.s32 %v2840, 216
      %v2868 = vadd.s32 %v2840, 224
      %v2869 = vadd.s32 %v2840, 232
      %v2870 = vadd.s32 %v2840, 240
      %v2871 = vadd.s32 %v2840, 248
      %v2872 = vadd.s32 %v2840, 256
      %v2873 = vadd.s32 %v2840, 264
      %v2874 = vadd.s32 %v2840, 272
      %v2875 = vadd.s32 %v2840, 280
      %v2876 = vadd.s32 %v2840, 288
      %v2877 = vadd.s32 %v2840, 296
      %v2878 = vadd.s32 %v2840, 304
      %v2879 = vadd.s32 %v2840, 312
      %v2880 = vadd.s32 %v2840, 320
      %v2881 = vadd.s32 %v2840, 328
      %v2882 = vadd.s32 %v2840, 336
      %v2883 = vadd.s32 %v2840, 344
      %v2884 = vadd.s32 %v2840, 352
      %v2885 = vadd.s32 %v2840, 360
      %v2886 = vadd.s32 %v2840, 368
      %v2887 = vadd.s32 %v2840, 376
      %v2888 = vstv %s25
      %v2889 = vadd.s32 %v2888, %v2840
      %v2890 = vadd.s32 %v2888, %v2841
      %v2891 = vadd.s32 %v2888, %v2842
      %v2892 = vadd.s32 %v2888, %v2843
      %v2893 = vadd.s32 %v2888, %v2844
      %v2894 = vadd.s32 %v2888, %v2845
      %v2895 = vadd.s32 %v2888, %v2846
      %v2896 = vadd.s32 %v2888, %v2847
      %v2897 = vadd.s32 %v2888, %v2848
      %v2898 = vadd.s32 %v2888, %v2849
      %v2899 = vadd.s32 %v2888, %v2850
      %v2900 = vadd.s32 %v2888, %v2851
      %v2901 = vadd.s32 %v2888, %v2852
      %v2902 = vadd.s32 %v2888, %v2853
      %v2903 = vadd.s32 %v2888, %v2854
      %v2904 = vadd.s32 %v2888, %v2855
      %v2905 = vadd.s32 %v2888, %v2856
      %v2906 = vadd.s32 %v2888, %v2857
      %v2907 = vadd.s32 %v2888, %v2858
      %v2908 = vadd.s32 %v2888, %v2859
      %v2909 = vadd.s32 %v2888, %v2860
      %v2910 = vadd.s32 %v2888, %v2861
      %v2911 = vadd.s32 %v2888, %v2862
      %v2912 = vadd.s32 %v2888, %v2863
      %v2913 = vadd.s32 %v2888, %v2864
      %v2914 = vadd.s32 %v2888, %v2865
      %v2915 = vadd.s32 %v2888, %v2866
      %v2916 = vadd.s32 %v2888, %v2867
      %v2917 = vadd.s32 %v2888, %v2868
      %v2918 = vadd.s32 %v2888, %v2869
      %v2919 = vadd.s32 %v2888, %v2870
      %v2920 = vadd.s32 %v2888, %v2871
      %v2921 = vadd.s32 %v2888, %v2872
      %v2922 = vadd.s32 %v2888, %v2873
      %v2923 = vadd.s32 %v2888, %v2874
      %v2924 = vadd.s32 %v2888, %v2875
      %v2925 = vadd.s32 %v2888, %v2876
      %v2926 = vadd.s32 %v2888, %v2877
      %v2927 = vadd.s32 %v2888, %v2878
      %v2928 = vadd.s32 %v2888, %v2879
      %v2929 = vadd.s32 %v2888, %v2880
      %v2930 = vadd.s32 %v2888, %v2881
      %v2931 = vadd.s32 %v2888, %v2882
      %v2932 = vadd.s32 %v2888, %v2883
      %v2933 = vadd.s32 %v2888, %v2884
      %v2934 = vadd.s32 %v2888, %v2885
      %v2935 = vadd.s32 %v2888, %v2886
      %v2936 = vadd.s32 %v2888, %v2887
      %vm2937 = vcmp.lt.s32.totalorder %v2889, 384
      %vm2938 = vcmp.lt.s32.totalorder %v2890, 384
      %vm2939 = vcmp.lt.s32.totalorder %v2891, 384
      %vm2940 = vcmp.lt.s32.totalorder %v2892, 384
      %vm2941 = vcmp.lt.s32.totalorder %v2893, 384
      %vm2942 = vcmp.lt.s32.totalorder %v2894, 384
      %vm2943 = vcmp.lt.s32.totalorder %v2895, 384
      %vm2944 = vcmp.lt.s32.totalorder %v2896, 384
      %vm2945 = vcmp.lt.s32.totalorder %v2897, 384
      %vm2946 = vcmp.lt.s32.totalorder %v2898, 384
      %vm2947 = vcmp.lt.s32.totalorder %v2899, 384
      %vm2948 = vcmp.lt.s32.totalorder %v2900, 384
      %vm2949 = vcmp.lt.s32.totalorder %v2901, 384
      %vm2950 = vcmp.lt.s32.totalorder %v2902, 384
      %vm2951 = vcmp.lt.s32.totalorder %v2903, 384
      %vm2952 = vcmp.lt.s32.totalorder %v2904, 384
      %vm2953 = vcmp.lt.s32.totalorder %v2905, 384
      %vm2954 = vcmp.lt.s32.totalorder %v2906, 384
      %vm2955 = vcmp.lt.s32.totalorder %v2907, 384
      %vm2956 = vcmp.lt.s32.totalorder %v2908, 384
      %vm2957 = vcmp.lt.s32.totalorder %v2909, 384
      %vm2958 = vcmp.lt.s32.totalorder %v2910, 384
      %vm2959 = vcmp.lt.s32.totalorder %v2911, 384
      %vm2960 = vcmp.lt.s32.totalorder %v2912, 384
      %vm2961 = vcmp.lt.s32.totalorder %v2913, 384
      %vm2962 = vcmp.lt.s32.totalorder %v2914, 384
      %vm2963 = vcmp.lt.s32.totalorder %v2915, 384
      %vm2964 = vcmp.lt.s32.totalorder %v2916, 384
      %vm2965 = vcmp.lt.s32.totalorder %v2917, 384
      %vm2966 = vcmp.lt.s32.totalorder %v2918, 384
      %vm2967 = vcmp.lt.s32.totalorder %v2919, 384
      %vm2968 = vcmp.lt.s32.totalorder %v2920, 384
      %vm2969 = vcmp.lt.s32.totalorder %v2921, 384
      %vm2970 = vcmp.lt.s32.totalorder %v2922, 384
      %vm2971 = vcmp.lt.s32.totalorder %v2923, 384
      %vm2972 = vcmp.lt.s32.totalorder %v2924, 384
      %vm2973 = vcmp.lt.s32.totalorder %v2925, 384
      %vm2974 = vcmp.lt.s32.totalorder %v2926, 384
      %vm2975 = vcmp.lt.s32.totalorder %v2927, 384
      %vm2976 = vcmp.lt.s32.totalorder %v2928, 384
      %vm2977 = vcmp.lt.s32.totalorder %v2929, 384
      %vm2978 = vcmp.lt.s32.totalorder %v2930, 384
      %vm2979 = vcmp.lt.s32.totalorder %v2931, 384
      %vm2980 = vcmp.lt.s32.totalorder %v2932, 384
      %vm2981 = vcmp.lt.s32.totalorder %v2933, 384
      %vm2982 = vcmp.lt.s32.totalorder %v2934, 384
      %vm2983 = vcmp.lt.s32.totalorder %v2935, 384
      %vm2984 = vcmp.lt.s32.totalorder %v2936, 384
      %v2985 = vld [vmem:[#allocation4] sm:$0xff]
      %v2986 = vld [vmem:[#allocation4 + $0x8] sm:$0xff]
      %v2987 = vld [vmem:[#allocation4 + $0x10] sm:$0xff]
      %v2988 = vld [vmem:[#allocation4 + $0x18] sm:$0xff]
      %v2989 = vld [vmem:[#allocation4 + $0x20] sm:$0xff]
      %v2990 = vld [vmem:[#allocation4 + $0x28] sm:$0xff]
      %v2991 = vld [vmem:[#allocation4 + $0x30] sm:$0xff]
      %v2992 = vld [vmem:[#allocation4 + $0x38] sm:$0xff]
      %v2993 = vld [vmem:[#allocation4 + $0x40] sm:$0xff]
      %v2994 = vld [vmem:[#allocation4 + $0x48] sm:$0xff]
      %v2995 = vld [vmem:[#allocation4 + $0x50] sm:$0xff]
      %v2996 = vld [vmem:[#allocation4 + $0x58] sm:$0xff]
      %v2997 = vld [vmem:[#allocation4 + $0x60] sm:$0xff]
      %v2998 = vld [vmem:[#allocation4 + $0x68] sm:$0xff]
      %v2999 = vld [vmem:[#allocation4 + $0x70] sm:$0xff]
      %v3000 = vld [vmem:[#allocation4 + $0x78] sm:$0xff]
      %v3001 = vld [vmem:[#allocation4 + $0x80] sm:$0xff]
      %v3002 = vld [vmem:[#allocation4 + $0x88] sm:$0xff]
      %v3003 = vld [vmem:[#allocation4 + $0x90] sm:$0xff]
      %v3004 = vld [vmem:[#allocation4 + $0x98] sm:$0xff]
      %v3005 = vld [vmem:[#allocation4 + $0xa0] sm:$0xff]
      %v3006 = vld [vmem:[#allocation4 + $0xa8] sm:$0xff]
      %v3007 = vld [vmem:[#allocation4 + $0xb0] sm:$0xff]
      %v3008 = vld [vmem:[#allocation4 + $0xb8] sm:$0xff]
      %v3009 = vld [vmem:[#allocation4 + $0xc0] sm:$0xff]
      %v3010 = vld [vmem:[#allocation4 + $0xc8] sm:$0xff]
      %v3011 = vld [vmem:[#allocation4 + $0xd0] sm:$0xff]
      %v3012 = vld [vmem:[#allocation4 + $0xd8] sm:$0xff]
      %v3013 = vld [vmem:[#allocation4 + $0xe0] sm:$0xff]
      %v3014 = vld [vmem:[#allocation4 + $0xe8] sm:$0xff]
      %v3015 = vld [vmem:[#allocation4 + $0xf0] sm:$0xff]
      %v3016 = vld [vmem:[#allocation4 + $0xf8] sm:$0xff]
      %v3017 = vld [vmem:[#allocation4 + $0x100] sm:$0xff]
      %v3018 = vld [vmem:[#allocation4 + $0x108] sm:$0xff]
      %v3019 = vld [vmem:[#allocation4 + $0x110] sm:$0xff]
      %v3020 = vld [vmem:[#allocation4 + $0x118] sm:$0xff]
      %v3021 = vld [vmem:[#allocation4 + $0x120] sm:$0xff]
      %v3022 = vld [vmem:[#allocation4 + $0x128] sm:$0xff]
      %v3023 = vld [vmem:[#allocation4 + $0x130] sm:$0xff]
      %v3024 = vld [vmem:[#allocation4 + $0x138] sm:$0xff]
      %v3025 = vld [vmem:[#allocation4 + $0x140] sm:$0xff]
      %v3026 = vld [vmem:[#allocation4 + $0x148] sm:$0xff]
      %v3027 = vld [vmem:[#allocation4 + $0x150] sm:$0xff]
      %v3028 = vld [vmem:[#allocation4 + $0x158] sm:$0xff]
      %v3029 = vld [vmem:[#allocation4 + $0x160] sm:$0xff]
      %v3030 = vld [vmem:[#allocation4 + $0x168] sm:$0xff]
      %v3031 = vld [vmem:[#allocation4 + $0x170] sm:$0xff]
      %v3032 = vld [vmem:[#allocation4 + $0x178] sm:$0xff]
      %v3033 = vsub.f32 %v2791, %v2985
      %v3034 = vsub.f32 %v2792, %v2986
      %v3035 = vsub.f32 %v2793, %v2987
      %v3036 = vsub.f32 %v2794, %v2988
      %v3037 = vsub.f32 %v2795, %v2989
      %v3038 = vsub.f32 %v2796, %v2990
      %v3039 = vsub.f32 %v2797, %v2991
      %v3040 = vsub.f32 %v2798, %v2992
      %v3041 = vsub.f32 %v2799, %v2993
      %v3042 = vsub.f32 %v2800, %v2994
      %v3043 = vsub.f32 %v2801, %v2995
      %v3044 = vsub.f32 %v2802, %v2996
      %v3045 = vsub.f32 %v2803, %v2997
      %v3046 = vsub.f32 %v2804, %v2998
      %v3047 = vsub.f32 %v2805, %v2999
      %v3048 = vsub.f32 %v2806, %v3000
      %v3049 = vsub.f32 %v2807, %v3001
      %v3050 = vsub.f32 %v2808, %v3002
      %v3051 = vsub.f32 %v2809, %v3003
      %v3052 = vsub.f32 %v2810, %v3004
      %v3053 = vsub.f32 %v2811, %v3005
      %v3054 = vsub.f32 %v2812, %v3006
      %v3055 = vsub.f32 %v2813, %v3007
      %v3056 = vsub.f32 %v2814, %v3008
      %v3057 = vsub.f32 %v2815, %v3009
      %v3058 = vsub.f32 %v2816, %v3010
      %v3059 = vsub.f32 %v2817, %v3011
      %v3060 = vsub.f32 %v2818, %v3012
      %v3061 = vsub.f32 %v2819, %v3013
      %v3062 = vsub.f32 %v2820, %v3014
      %v3063 = vsub.f32 %v2821, %v3015
      %v3064 = vsub.f32 %v2822, %v3016
      %v3065 = vsub.f32 %v2823, %v3017
      %v3066 = vsub.f32 %v2824, %v3018
      %v3067 = vsub.f32 %v2825, %v3019
      %v3068 = vsub.f32 %v2826, %v3020
      %v3069 = vsub.f32 %v2827, %v3021
      %v3070 = vsub.f32 %v2828, %v3022
      %v3071 = vsub.f32 %v2829, %v3023
      %v3072 = vsub.f32 %v2830, %v3024
      %v3073 = vsub.f32 %v2831, %v3025
      %v3074 = vsub.f32 %v2832, %v3026
      %v3075 = vsub.f32 %v2833, %v3027
      %v3076 = vsub.f32 %v2834, %v3028
      %v3077 = vsub.f32 %v2835, %v3029
      %v3078 = vsub.f32 %v2836, %v3030
      %v3079 = vsub.f32 %v2837, %v3031
      %v3080 = vsub.f32 %v2838, %v3032
      %v3081 = vsel %vm2937, %v3033, 0.0
      %v3082 = vsel %vm2938, %v3034, 0.0
      %v3083 = vsel %vm2939, %v3035, 0.0
      %v3084 = vsel %vm2940, %v3036, 0.0
      %v3085 = vsel %vm2941, %v3037, 0.0
      %v3086 = vsel %vm2942, %v3038, 0.0
      %v3087 = vsel %vm2943, %v3039, 0.0
      %v3088 = vsel %vm2944, %v3040, 0.0
      %v3089 = vsel %vm2945, %v3041, 0.0
      %v3090 = vsel %vm2946, %v3042, 0.0
      %v3091 = vsel %vm2947, %v3043, 0.0
      %v3092 = vsel %vm2948, %v3044, 0.0
      %v3093 = vsel %vm2949, %v3045, 0.0
      %v3094 = vsel %vm2950, %v3046, 0.0
      %v3095 = vsel %vm2951, %v3047, 0.0
      %v3096 = vsel %vm2952, %v3048, 0.0
      %v3097 = vsel %vm2953, %v3049, 0.0
      %v3098 = vsel %vm2954, %v3050, 0.0
      %v3099 = vsel %vm2955, %v3051, 0.0
      %v3100 = vsel %vm2956, %v3052, 0.0
      %v3101 = vsel %vm2957, %v3053, 0.0
      %v3102 = vsel %vm2958, %v3054, 0.0
      %v3103 = vsel %vm2959, %v3055, 0.0
      %v3104 = vsel %vm2960, %v3056, 0.0
      %v3105 = vsel %vm2961, %v3057, 0.0
      %v3106 = vsel %vm2962, %v3058, 0.0
      %v3107 = vsel %vm2963, %v3059, 0.0
      %v3108 = vsel %vm2964, %v3060, 0.0
      %v3109 = vsel %vm2965, %v3061, 0.0
      %v3110 = vsel %vm2966, %v3062, 0.0
      %v3111 = vsel %vm2967, %v3063, 0.0
      %v3112 = vsel %vm2968, %v3064, 0.0
      %v3113 = vsel %vm2969, %v3065, 0.0
      %v3114 = vsel %vm2970, %v3066, 0.0
      %v3115 = vsel %vm2971, %v3067, 0.0
      %v3116 = vsel %vm2972, %v3068, 0.0
      %v3117 = vsel %vm2973, %v3069, 0.0
      %v3118 = vsel %vm2974, %v3070, 0.0
      %v3119 = vsel %vm2975, %v3071, 0.0
      %v3120 = vsel %vm2976, %v3072, 0.0
      %v3121 = vsel %vm2977, %v3073, 0.0
      %v3122 = vsel %vm2978, %v3074, 0.0
      %v3123 = vsel %vm2979, %v3075, 0.0
      %v3124 = vsel %vm2980, %v3076, 0.0
      %v3125 = vsel %vm2981, %v3077, 0.0
      %v3126 = vsel %vm2982, %v3078, 0.0
      %v3127 = vsel %vm2983, %v3079, 0.0
      %v3128 = vsel %vm2984, %v3080, 0.0
      %v3129 = vsel %vm2499, %v3081, 0.0
      %v3130 = vsel %vm2499, %v3082, 0.0
      %v3131 = vadd.f32 %v3129, %v3130
      %v3132 = vsel %vm2499, %v3083, 0.0
      %v3133 = vadd.f32 %v3131, %v3132
      %v3134 = vsel %vm2499, %v3084, 0.0
      %v3135 = vadd.f32 %v3133, %v3134
      %v3136 = vsel %vm2499, %v3085, 0.0
      %v3137 = vadd.f32 %v3135, %v3136
      %v3138 = vsel %vm2499, %v3086, 0.0
      %v3139 = vadd.f32 %v3137, %v3138
      %v3140 = vsel %vm2499, %v3087, 0.0
      %v3141 = vadd.f32 %v3139, %v3140
      %v3142 = vsel %vm2499, %v3088, 0.0
      %v3143 = vadd.f32 %v3141, %v3142
      %v3144 = vsel %vm2499, %v3089, 0.0
      %v3145 = vadd.f32 %v3143, %v3144
      %v3146 = vsel %vm2499, %v3090, 0.0
      %v3147 = vadd.f32 %v3145, %v3146
      %v3148 = vsel %vm2499, %v3091, 0.0
      %v3149 = vadd.f32 %v3147, %v3148
      %v3150 = vsel %vm2499, %v3092, 0.0
      %v3151 = vadd.f32 %v3149, %v3150
      %v3152 = vsel %vm2499, %v3093, 0.0
      %v3153 = vadd.f32 %v3151, %v3152
      %v3154 = vsel %vm2499, %v3094, 0.0
      %v3155 = vadd.f32 %v3153, %v3154
      %v3156 = vsel %vm2499, %v3095, 0.0
      %v3157 = vadd.f32 %v3155, %v3156
      %v3158 = vsel %vm2499, %v3096, 0.0
      %v3159 = vadd.f32 %v3157, %v3158
      %v3160 = vsel %vm2499, %v3097, 0.0
      %v3161 = vadd.f32 %v3159, %v3160
      %v3162 = vsel %vm2499, %v3098, 0.0
      %v3163 = vadd.f32 %v3161, %v3162
      %v3164 = vsel %vm2499, %v3099, 0.0
      %v3165 = vadd.f32 %v3163, %v3164
      %v3166 = vsel %vm2499, %v3100, 0.0
      %v3167 = vadd.f32 %v3165, %v3166
      %v3168 = vsel %vm2499, %v3101, 0.0
      %v3169 = vadd.f32 %v3167, %v3168
      %v3170 = vsel %vm2499, %v3102, 0.0
      %v3171 = vadd.f32 %v3169, %v3170
      %v3172 = vsel %vm2499, %v3103, 0.0
      %v3173 = vadd.f32 %v3171, %v3172
      %v3174 = vsel %vm2499, %v3104, 0.0
      %v3175 = vadd.f32 %v3173, %v3174
      %v3176 = vsel %vm2499, %v3105, 0.0
      %v3177 = vadd.f32 %v3175, %v3176
      %v3178 = vsel %vm2499, %v3106, 0.0
      %v3179 = vadd.f32 %v3177, %v3178
      %v3180 = vsel %vm2499, %v3107, 0.0
      %v3181 = vadd.f32 %v3179, %v3180
      %v3182 = vsel %vm2499, %v3108, 0.0
      %v3183 = vadd.f32 %v3181, %v3182
      %v3184 = vsel %vm2499, %v3109, 0.0
      %v3185 = vadd.f32 %v3183, %v3184
      %v3186 = vsel %vm2499, %v3110, 0.0
      %v3187 = vadd.f32 %v3185, %v3186
      %v3188 = vsel %vm2499, %v3111, 0.0
      %v3189 = vadd.f32 %v3187, %v3188
      %v3190 = vsel %vm2499, %v3112, 0.0
      %v3191 = vadd.f32 %v3189, %v3190
      %v3192 = vsel %vm2499, %v3113, 0.0
      %v3193 = vadd.f32 %v3191, %v3192
      %v3194 = vsel %vm2499, %v3114, 0.0
      %v3195 = vadd.f32 %v3193, %v3194
      %v3196 = vsel %vm2499, %v3115, 0.0
      %v3197 = vadd.f32 %v3195, %v3196
      %v3198 = vsel %vm2499, %v3116, 0.0
      %v3199 = vadd.f32 %v3197, %v3198
      %v3200 = vsel %vm2499, %v3117, 0.0
      %v3201 = vadd.f32 %v3199, %v3200
      %v3202 = vsel %vm2499, %v3118, 0.0
      %v3203 = vadd.f32 %v3201, %v3202
      %v3204 = vsel %vm2499, %v3119, 0.0
      %v3205 = vadd.f32 %v3203, %v3204
      %v3206 = vsel %vm2499, %v3120, 0.0
      %v3207 = vadd.f32 %v3205, %v3206
      %v3208 = vsel %vm2499, %v3121, 0.0
      %v3209 = vadd.f32 %v3207, %v3208
      %v3210 = vsel %vm2499, %v3122, 0.0
      %v3211 = vadd.f32 %v3209, %v3210
      %v3212 = vsel %vm2499, %v3123, 0.0
      %v3213 = vadd.f32 %v3211, %v3212
      %v3214 = vsel %vm2499, %v3124, 0.0
      %v3215 = vadd.f32 %v3213, %v3214
      %v3216 = vsel %vm2499, %v3125, 0.0
      %v3217 = vadd.f32 %v3215, %v3216
      %v3218 = vsel %vm2499, %v3126, 0.0
      %v3219 = vadd.f32 %v3217, %v3218
      %v3220 = vsel %vm2499, %v3127, 0.0
      %v3221 = vadd.f32 %v3219, %v3220
      %v3222 = vsel %vm2499, %v3128, 0.0
      %v3223 = vadd.f32 %v3221, %v3222
      %3224 = vadd.xlane.f32.xlu0 %v3223
      %v3225 = vpop.xlane.xlu0 %3224
      %v3226 = vrot.slane %v3225, 4
      %v3227 = vadd.f32 %v3225, %v3226
      %v3228 = vrot.slane %v3227, 2
      %v3229 = vadd.f32 %v3227, %v3228
      %v3230 = vrot.slane %v3229, 1
      %v3231 = vadd.f32 %v3229, %v3230
      %s3232 = vtos %v3231
      %v3233 = vstv %s3232
      %3234 = vst [vmem:[#allocation8] sm:$0xff] %v3233
    $region21: #{tpu_custom_call.1} parent=1 // pred_fallthru
      _
    // Predicated region
    $region22: #{tpu_custom_call.1} parent=1 // pred_check
      _
    $region23: #{tpu_custom_call.1} parent=1 // pred_check_branch
      %3236 = sbr.rel (0) target = $region25
    $region24: #{tpu_custom_call.1} parent=1 // pred_region
      %3238 = vsyncadd [#allocation7], 0
      %s3240 = sshll.u32 [#allocation8], 4
      %s3241 = int_to_ptr.vmem [resolvable:$true] %s3240
      %s3242 = sshll.u32 %s1, 4
      %s3243 = int_to_ptr.hbm [resolvable:$true] %s3242
      %3245 = dma.vmem_to_hbm [thread:$0]  %s3241, 128, %s3243, [#allocation7]
    $region25: #{tpu_custom_call.1} parent=1 // pred_fallthru
      _
    // Predicated region
    $region26: #{tpu_custom_call.1} parent=1 // pred_check
      _
    $region27: #{tpu_custom_call.1} parent=1 // pred_check_branch
      %3247 = sbr.rel (0) target = $region29
    $region28: #{tpu_custom_call.1} parent=1 // pred_region
      %3249 = dma.done [#allocation7], 128
    $region29: #{tpu_custom_call.1} parent=1 // pred_fallthru
      _
    %3250 = vsyncpa [#allocation6], 1
    %3251 = vsyncpa [#allocation7], 1

</llo_original>
